<compile_context>
chip_gen: v5e
topology: v5e:2x2
jax: 0.10.0
libtpu: 0.0.40
codegen_flags: <defaults>
</compile_context>

<pallas_src>
import functools

import jax
import jax.numpy as jnp
import numpy as np
from jax.experimental import pallas as pl
from jax.experimental.pallas import tpu as pltpu

EPS = 1e-5


@functools.lru_cache(maxsize=None)
def _vmem_limit_bytes():
    """Generation-aware VMEM budget (~75% of physical, capped at 100 MiB)."""
    cap = 64 * 1024 * 1024
    try:
        cap = int(getattr(pltpu.get_tpu_info(), "vmem_capacity_bytes", cap))
    except Exception:
        pass
    return int(min(cap * 3 // 4, 100 * 1024 * 1024))


def _pick_tile_h(h, requested):
    """Largest divisor of h that is <= requested (avoids silent whole-image tiles)."""
    t = max(1, min(int(requested), int(h)))
    while h % t != 0:
        t -= 1
    return t


# --------------------------------------------------------------------------- #
# kernels
# --------------------------------------------------------------------------- #
def _conv3x3_bn_stats_kernel(*refs, apply_act, tile_h, width):
    """3x3 conv on one (TH, W) tile + fused BN partial stats.

    Inputs per grid step: optional BN affine of the *previous* layer,
    the (3,3,Cin,Cout) weights, and three row slabs of the activation
    (halo row above, TH interior rows, halo row below).
    """
    if apply_act:
        aff_ref, w_ref, top_ref, mid_ref, bot_ref, z_ref, st_ref = refs
    else:
        w_ref, top_ref, mid_ref, bot_ref, z_ref, st_ref = refs
        aff_ref = None

    j = pl.program_id(1)
    n_h = pl.num_programs(1)
    cdt = mid_ref.dtype
    cin = mid_ref.shape[-1]
    cout = w_ref.shape[-1]

    top = top_ref[0]                     # (1,  W, Cin)  halo row above (maybe clamped)
    mid = mid_ref[0]                     # (TH, W, Cin)  interior rows of this tile
    bot = bot_ref[0]                     # (1,  W, Cin)  halo row below (maybe clamped)

    if apply_act:
        # Fused BatchNorm+ReLU of the previous layer, applied on the fly to the
        # conv input (saves a full HBM pass).  Affine stays in f32.
        aff = aff_ref[...]
        sc = aff[0:1, :].reshape(1, 1, cin)
        sh = aff[1:2, :].reshape(1, 1, cin)
        act = lambda v: jnp.maximum(v.astype(jnp.float32) * sc + sh, 0.0).astype(cdt)
        top, mid, bot = act(top), act(mid), act(bot)

    # Conv zero-padding along H: the halo rows are real data except at the
    # image border, where the index_map clamped them -> zero via scalar preds.
    zrow = jnp.zeros_like(top)
    top = jnp.where(j > 0, top, zrow)
    bot = jnp.where(j < n_h - 1, bot, zrow)

    col = jnp.concatenate([top, mid, bot], axis=0)            # (TH+2, W,   Cin)
    zcol = jnp.zeros((tile_h + 2, 1, cin), cdt)
    slab = jnp.concatenate([zcol, col, zcol], axis=1)         # (TH+2, W+2, Cin)

    # 3x3 conv = 9 accumulated K=Cin MXU matmuls (no 9x im2col buffer).
    acc = jnp.zeros((tile_h * width, cout), jnp.float32)
    for kh in range(3):
        for kw in range(3):
            lhs = slab[kh:kh + tile_h, kw:kw + width, :].reshape(tile_h * width, cin)
            acc = acc + jnp.dot(lhs, w_ref[kh, kw, :, :],
                                preferred_element_type=jnp.float32)

    z_ref[0] = acc.reshape(tile_h, width, cout).astype(z_ref.dtype)

    # Per-tile BN partial statistics in f32: (sum, centered M2) so the wrapper
    # can combine tiles (Chan) without E[x^2]-E[x]^2 cancellation.
    s = jnp.sum(acc, axis=0, keepdims=True)                   # (1, Cout)
    mu = s * (1.0 / (tile_h * width))
    d = acc - mu
    st_ref[0, 0:1, :] = s
    st_ref[0, 1:2, :] = jnp.sum(d * d, axis=0, keepdims=True)


def _bn_relu_kernel(z_ref, aff_ref, o_ref):
    """Element-wise epilogue (NHWC path): y = relu(z*scale + shift)."""
    aff = aff_ref[...]
    sc = aff[0:1, :].reshape(1, 1, 1, -1)
    sh = aff[1:2, :].reshape(1, 1, 1, -1)
    o_ref[...] = jnp.maximum(z_ref[...].astype(jnp.float32) * sc + sh,
                             0.0).astype(o_ref.dtype)


# --------------------------------------------------------------------------- #
# wrappers
# --------------------------------------------------------------------------- #
def _conv3x3_bn_stats(x_nhwc, w_hwio, affine, *, tile_h, vmem_limit):
    n, h, width, cin = x_nhwc.shape
    cout = w_hwio.shape[-1]
    ht = h // tile_h
    apply_act = affine is not None

    kernel = functools.partial(_conv3x3_bn_stats_kernel,
                               apply_act=apply_act, tile_h=tile_h, width=width)

    in_specs = []
    args = []
    if apply_act:
        in_specs.append(pl.BlockSpec((2, cin), lambda i, j: (0, 0)))
        args.append(affine)
    # TODO(synk): pipeline_mode=pl.Buffered(1) for these grid-constant operands
    # would reclaim their 2x double-buffer VMEM at large channel counts.
    in_specs.append(pl.BlockSpec((3, 3, cin, cout), lambda i, j: (0, 0, 0, 0)))
    args.append(w_hwio)

    # Overlapping (TH+2)-row window = halo-above + TH interior + halo-below,
    # each its own auto-pipelined BlockSpec straight from the unpadded HBM
    # activation (no padded / gathered copy).  Border rows are clamped here
    # and zeroed inside the kernel.
    in_specs += [
        pl.BlockSpec((1, 1, width, cin),
                     lambda i, j: (i, jnp.maximum(j * tile_h - 1, 0), 0, 0)),
        pl.BlockSpec((1, tile_h, width, cin), lambda i, j: (i, j, 0, 0)),
        pl.BlockSpec((1, 1, width, cin),
                     lambda i, j: (i, jnp.minimum((j + 1) * tile_h, h - 1), 0, 0)),
    ]
    args += [x_nhwc, x_nhwc, x_nhwc]

    out_specs = [
        pl.BlockSpec((1, tile_h, width, cout), lambda i, j: (i, j, 0, 0)),
        pl.BlockSpec((1, 2, cout), lambda i, j: (i * ht + j, 0, 0)),
    ]
    out_shape = [
        jax.ShapeDtypeStruct((n, h, width, cout), x_nhwc.dtype),   # conv out (compute dtype)
        jax.ShapeDtypeStruct((n * ht, 2, cout), jnp.float32),      # per-tile BN stats
    ]
    return pl.pallas_call(
        kernel,
        grid=(n, ht),
        in_specs=in_specs,
        out_specs=out_specs,
        out_shape=out_shape,
        compiler_params=pltpu.CompilerParams(
            dimension_semantics=("parallel", "parallel"),
            vmem_limit_bytes=vmem_limit),
    )(*args)


def _bn_affine(stats, gamma, beta, total_count, tile_count):
    """Combine per-tile (sum, centered M2) -> per-channel BN (scale, shift)."""
    sums = stats[:, 0, :]                                   # (T, C)
    m2s = stats[:, 1, :]                                    # (T, C)
    total = jnp.float32(total_count)
    tc = jnp.float32(tile_count)
    mean = jnp.sum(sums, axis=0) / total
    tile_means = sums / tc
    m2 = jnp.sum(m2s, axis=0) + tc * jnp.sum((tile_means - mean[None, :]) ** 2, axis=0)
    var = jnp.maximum(m2 / total, 0.0)                      # biased variance (training BN)
    scale = gamma.astype(jnp.float32) * jax.lax.rsqrt(var + EPS)
    shift = beta.astype(jnp.float32) - mean * scale
    return jnp.stack([scale, shift], axis=0)                # (2, C), f32


def _bn_relu(z, affine, *, tile_h, out_dtype, vmem_limit):
    n, h, width, c = z.shape
    ht = h // tile_h
    return pl.pallas_call(
        _bn_relu_kernel,
        grid=(n, ht),
        in_specs=[pl.BlockSpec((1, tile_h, width, c), lambda i, j: (i, j, 0, 0)),
                  pl.BlockSpec((2, c), lambda i, j: (0, 0))],
        out_specs=pl.BlockSpec((1, tile_h, width, c), lambda i, j: (i, j, 0, 0)),
        out_shape=jax.ShapeDtypeStruct((n, h, width, c), out_dtype),
        compiler_params=pltpu.CompilerParams(
            dimension_semantics=("parallel", "parallel"),
            vmem_limit_bytes=vmem_limit),
    )(z, affine)


@functools.partial(jax.jit, static_argnames=("tile_h", "out_layout", "compute_dtype"))
def double_conv(x_nchw, w1, g1, b1, w2, g2, b2, *, tile_h=8,
                out_layout="NCHW", compute_dtype=jnp.bfloat16):
    """DoubleConv forward (training-mode BatchNorm).  NCHW in; NCHW/NHWC out."""
    n, cin, h, w = x_nchw.shape
    cout = w1.shape[0]
    tile_h = _pick_tile_h(h, tile_h)
    total = n * h * w
    tile_count = tile_h * w
    vmem_limit = _vmem_limit_bytes()

    # TODO(synk): keep the surrounding model NHWC end-to-end to drop the two
    # boundary layout changes entirely.
    x = jnp.transpose(x_nchw, (0, 2, 3, 1)).astype(compute_dtype)       # NHWC
    # (O, I, 3, 3) -> (kh, kw, I, O)
    w1m = jnp.transpose(w1, (2, 3, 1, 0)).astype(compute_dtype)
    w2m = jnp.transpose(w2, (2, 3, 1, 0)).astype(compute_dtype)

    # ---- conv1 + fused BN1 partial stats ----
    z1, st1 = _conv3x3_bn_stats(x, w1m, None, tile_h=tile_h, vmem_limit=vmem_limit)
    aff1 = _bn_affine(st1, g1, b1, total, tile_count)

    # ---- BN1+ReLU fused into conv2's input path + fused BN2 partial stats ----
    z2, st2 = _conv3x3_bn_stats(z1, w2m, aff1, tile_h=tile_h, vmem_limit=vmem_limit)
    aff2 = _bn_affine(st2, g2, b2, total, tile_count)

    if out_layout == "NHWC":
        # Pallas epilogue; no transpose needed.
        return _bn_relu(z2, aff2, tile_h=tile_h, out_dtype=jnp.float32,
                        vmem_limit=vmem_limit)

    # NCHW (module-matching) path: transpose the narrow (bf16) conv output
    # first and let XLA fuse the BN2+ReLU elementwise epilogue into the same
    # single pass over the final tensor.
    z2t = jnp.transpose(z2, (0, 3, 1, 2))
    sc = aff2[0].reshape(1, -1, 1, 1)
    sh = aff2[1].reshape(1, -1, 1, 1)
    return jnp.maximum(z2t.astype(jnp.float32) * sc + sh, 0.0)


# --------------------------------------------------------------------------- #
# pure-JAX reference (mirrors the PyTorch module, training-mode BN)
# --------------------------------------------------------------------------- #
def ref_double_conv(x, w1, g1, b1, w2, g2, b2):
    def conv(x, w):
        return jax.lax.conv_general_dilated(
            x, w, window_strides=(1, 1), padding=((1, 1), (1, 1)),
            dimension_numbers=("NCHW", "OIHW", "NCHW"))

    def bn_relu(y, g, b):
        mu = jnp.mean(y, axis=(0, 2, 3), keepdims=True)
        var = jnp.mean((y - mu) ** 2, axis=(0, 2, 3), keepdims=True)
        yn = (y - mu) * jax.lax.rsqrt(var + EPS)
        yn = yn * g.reshape(1, -1, 1, 1) + b.reshape(1, -1, 1, 1)
        return jnp.maximum(yn, 0.0)

    y = bn_relu(conv(x, w1), g1, b1)
    return bn_relu(conv(y, w2), g2, b2)


if __name__ == "__main__":
    N, Cin, Cout, H, W = 2, 4, 8, 16, 16

    key = jax.random.PRNGKey(0)
    kx, kw1, kw2, kg1, kb1, kg2, kb2 = jax.random.split(key, 7)

    x = jax.random.normal(kx, (N, Cin, H, W), jnp.float32)
    w1 = jax.random.normal(kw1, (Cout, Cin, 3, 3), jnp.float32) / np.sqrt(Cin * 9)
    w2 = jax.random.normal(kw2, (Cout, Cout, 3, 3), jnp.float32) / np.sqrt(Cout * 9)
    g1 = 1.0 + 0.1 * jax.random.normal(kg1, (Cout,), jnp.float32)
    b1 = 0.1 * jax.random.normal(kb1, (Cout,), jnp.float32)
    g2 = 1.0 + 0.1 * jax.random.normal(kg2, (Cout,), jnp.float32)
    b2 = 0.1 * jax.random.normal(kb2, (Cout,), jnp.float32)

    ref = ref_double_conv(x, w1, g1, b1, w2, g2, b2)

    # 1) bit-accurate path (f32 compute) -> tight tolerance vs reference
    out_f32 = double_conv(x, w1, g1, b1, w2, g2, b2, compute_dtype=jnp.float32)
    out_f32 = jax.block_until_ready(out_f32)
    np.testing.assert_allclose(np.asarray(out_f32), np.asarray(ref),
                               rtol=1e-3, atol=1e-3)

    # 2) default fast path (bf16 on the MXU, f32 accumulation/stats)
    out_bf16 = double_conv(x, w1, g1, b1, w2, g2, b2)
    out_bf16 = jax.block_until_ready(out_bf16)
    np.testing.assert_allclose(np.asarray(out_bf16), np.asarray(ref),
                               rtol=5e-2, atol=1e-1)

    # 3) NHWC output path exercises the Pallas BN2+ReLU epilogue kernel
    out_nhwc = double_conv(x, w1, g1, b1, w2, g2, b2, out_layout="NHWC")
    out_nhwc = jax.block_until_ready(out_nhwc)
    np.testing.assert_allclose(np.asarray(out_nhwc),
                               np.asarray(jnp.transpose(ref, (0, 2, 3, 1))),
                               rtol=5e-2, atol=1e-1)

    print("KERNEL_OK")
</pallas_src>

<mosaic_0001>
module attributes {stable_mosaic.version = 11 : i64} {
  func.func @_conv3x3_bn_stats_kernel(%arg0: i32, %arg1: i32, %arg2: memref<3x3x4x8xf32, #tpu.memory_space<vmem>>, %arg3: memref<1x1x16x4xf32, #tpu.memory_space<vmem>>, %arg4: memref<1x8x16x4xf32, #tpu.memory_space<vmem>>, %arg5: memref<1x1x16x4xf32, #tpu.memory_space<vmem>>, %arg6: memref<1x8x16x8xf32, #tpu.memory_space<vmem>>, %arg7: memref<1x2x8xf32, #tpu.memory_space<vmem>>) attributes {dimension_semantics = [#tpu.dimension_semantics<parallel>, #tpu.dimension_semantics<parallel>], iteration_bounds = array<i64: 2, 2>, scalar_prefetch = 0 : i64, scratch_operands = 0 : i64, tpu.core_type = #tpu.core_type<tc>, window_params = [{pipeline_mode = #tpu.pipeline_mode<synchronous>, transform_indices = @transform_0, window_bounds = array<i64: 3, 3, 4, 8>}, {transform_indices = @transform_1, window_bounds = array<i64: 1, 1, 16, 4>}, {transform_indices = @transform_2, window_bounds = array<i64: 1, 8, 16, 4>}, {transform_indices = @transform_3, window_bounds = array<i64: 1, 1, 16, 4>}, {transform_indices = @transform_4, window_bounds = array<i64: 1, 8, 16, 8>}, {transform_indices = @transform_5, window_bounds = array<i64: 1, 2, 8>}]} {
    %c0 = arith.constant 0 : index
    %c0_0 = arith.constant 0 : index
    %c0_1 = arith.constant 0 : index
    %c0_2 = arith.constant 0 : index
    %0 = vector.load %arg3[%c0, %c0_0, %c0_1, %c0_2] : memref<1x1x16x4xf32, #tpu.memory_space<vmem>>, vector<1x1x16x4xf32>
    %1 = vector.shape_cast %0 : vector<1x1x16x4xf32> to vector<1x16x4xf32>
    %c0_3 = arith.constant 0 : index
    %c0_4 = arith.constant 0 : index
    %c0_5 = arith.constant 0 : index
    %c0_6 = arith.constant 0 : index
    %2 = vector.load %arg4[%c0_3, %c0_4, %c0_5, %c0_6] : memref<1x8x16x4xf32, #tpu.memory_space<vmem>>, vector<1x8x16x4xf32>
    %3 = vector.shape_cast %2 : vector<1x8x16x4xf32> to vector<8x16x4xf32>
    %c0_7 = arith.constant 0 : index
    %c0_8 = arith.constant 0 : index
    %c0_9 = arith.constant 0 : index
    %c0_10 = arith.constant 0 : index
    %4 = vector.load %arg5[%c0_7, %c0_8, %c0_9, %c0_10] : memref<1x1x16x4xf32, #tpu.memory_space<vmem>>, vector<1x1x16x4xf32>
    %5 = vector.shape_cast %4 : vector<1x1x16x4xf32> to vector<1x16x4xf32>
    %cst = arith.constant 0.000000e+00 : f32
    %6 = vector.broadcast %cst : f32 to vector<1x16x4xf32>
    %c0_i32 = arith.constant 0 : i32
    %7 = arith.cmpi sgt, %arg1, %c0_i32 : i32
    %8 = arith.select %7, %1, %6 : vector<1x16x4xf32>
    %c1_i32 = arith.constant 1 : i32
    %9 = arith.cmpi slt, %arg1, %c1_i32 : i32
    %10 = arith.select %9, %5, %6 : vector<1x16x4xf32>
    %11 = tpu.concatenate %8, %3, %10 in 0 : vector<1x16x4xf32>, vector<8x16x4xf32>, vector<1x16x4xf32> -> vector<10x16x4xf32>
    %cst_11 = arith.constant 0.000000e+00 : f32
    %12 = vector.broadcast %cst_11 : f32 to vector<10x1x4xf32>
    %13 = tpu.concatenate %12, %11, %12 in 1 : vector<10x1x4xf32>, vector<10x16x4xf32>, vector<10x1x4xf32> -> vector<10x18x4xf32>
    %cst_12 = arith.constant 0.000000e+00 : f32
    %14 = vector.broadcast %cst_12 : f32 to vector<128x8xf32>
    %15 = vector.extract_strided_slice %13 {offsets = [0, 0, 0], sizes = [8, 16, 4], strides = [1, 1, 1]} : vector<10x18x4xf32> to vector<8x16x4xf32>
    %16 = vector.shape_cast %15 : vector<8x16x4xf32> to vector<128x4xf32>
    %c0_13 = arith.constant 0 : index
    %c0_14 = arith.constant 0 : index
    %c0_15 = arith.constant 0 : index
    %c0_16 = arith.constant 0 : index
    %17 = vector.load %arg2[%c0_13, %c0_14, %c0_15, %c0_16] : memref<3x3x4x8xf32, #tpu.memory_space<vmem>>, vector<1x1x4x8xf32>
    %18 = vector.shape_cast %17 : vector<1x1x4x8xf32> to vector<4x8xf32>
    %cst_17 = arith.constant dense<0.000000e+00> : vector<128x8xf32>
    %19 = tpu.matmul %16, %18, %cst_17 {dimension_numbers = #tpu.dot_dimension_numbers<[1], [0], [0], [1], [0, 0, 1, 1], [], []>} : vector<128x4xf32>, vector<4x8xf32>, vector<128x8xf32> -> vector<128x8xf32>
    %20 = arith.addf %14, %19 : vector<128x8xf32>
    %21 = vector.extract_strided_slice %13 {offsets = [0, 1, 0], sizes = [8, 16, 4], strides = [1, 1, 1]} : vector<10x18x4xf32> to vector<8x16x4xf32>
    %22 = vector.shape_cast %21 : vector<8x16x4xf32> to vector<128x4xf32>
    %c0_18 = arith.constant 0 : index
    %c1 = arith.constant 1 : index
    %c0_19 = arith.constant 0 : index
    %c0_20 = arith.constant 0 : index
    %23 = vector.load %arg2[%c0_18, %c1, %c0_19, %c0_20] : memref<3x3x4x8xf32, #tpu.memory_space<vmem>>, vector<1x1x4x8xf32>
    %24 = vector.shape_cast %23 : vector<1x1x4x8xf32> to vector<4x8xf32>
    %cst_21 = arith.constant dense<0.000000e+00> : vector<128x8xf32>
    %25 = tpu.matmul %22, %24, %cst_21 {dimension_numbers = #tpu.dot_dimension_numbers<[1], [0], [0], [1], [0, 0, 1, 1], [], []>} : vector<128x4xf32>, vector<4x8xf32>, vector<128x8xf32> -> vector<128x8xf32>
    %26 = arith.addf %20, %25 : vector<128x8xf32>
    %27 = vector.extract_strided_slice %13 {offsets = [0, 2, 0], sizes = [8, 16, 4], strides = [1, 1, 1]} : vector<10x18x4xf32> to vector<8x16x4xf32>
    %28 = vector.shape_cast %27 : vector<8x16x4xf32> to vector<128x4xf32>
    %c0_22 = arith.constant 0 : index
    %c2 = arith.constant 2 : index
    %c0_23 = arith.constant 0 : index
    %c0_24 = arith.constant 0 : index
    %29 = vector.load %arg2[%c0_22, %c2, %c0_23, %c0_24] : memref<3x3x4x8xf32, #tpu.memory_space<vmem>>, vector<1x1x4x8xf32>
    %30 = vector.shape_cast %29 : vector<1x1x4x8xf32> to vector<4x8xf32>
    %cst_25 = arith.constant dense<0.000000e+00> : vector<128x8xf32>
    %31 = tpu.matmul %28, %30, %cst_25 {dimension_numbers = #tpu.dot_dimension_numbers<[1], [0], [0], [1], [0, 0, 1, 1], [], []>} : vector<128x4xf32>, vector<4x8xf32>, vector<128x8xf32> -> vector<128x8xf32>
    %32 = arith.addf %26, %31 : vector<128x8xf32>
    %33 = vector.extract_strided_slice %13 {offsets = [1, 0, 0], sizes = [8, 16, 4], strides = [1, 1, 1]} : vector<10x18x4xf32> to vector<8x16x4xf32>
    %34 = vector.shape_cast %33 : vector<8x16x4xf32> to vector<128x4xf32>
    %c1_26 = arith.constant 1 : index
    %c0_27 = arith.constant 0 : index
    %c0_28 = arith.constant 0 : index
    %c0_29 = arith.constant 0 : index
    %35 = vector.load %arg2[%c1_26, %c0_27, %c0_28, %c0_29] : memref<3x3x4x8xf32, #tpu.memory_space<vmem>>, vector<1x1x4x8xf32>
    %36 = vector.shape_cast %35 : vector<1x1x4x8xf32> to vector<4x8xf32>
    %cst_30 = arith.constant dense<0.000000e+00> : vector<128x8xf32>
    %37 = tpu.matmul %34, %36, %cst_30 {dimension_numbers = #tpu.dot_dimension_numbers<[1], [0], [0], [1], [0, 0, 1, 1], [], []>} : vector<128x4xf32>, vector<4x8xf32>, vector<128x8xf32> -> vector<128x8xf32>
    %38 = arith.addf %32, %37 : vector<128x8xf32>
    %39 = vector.extract_strided_slice %13 {offsets = [1, 1, 0], sizes = [8, 16, 4], strides = [1, 1, 1]} : vector<10x18x4xf32> to vector<8x16x4xf32>
    %40 = vector.shape_cast %39 : vector<8x16x4xf32> to vector<128x4xf32>
    %c1_31 = arith.constant 1 : index
    %c1_32 = arith.constant 1 : index
    %c0_33 = arith.constant 0 : index
    %c0_34 = arith.constant 0 : index
    %41 = vector.load %arg2[%c1_31, %c1_32, %c0_33, %c0_34] : memref<3x3x4x8xf32, #tpu.memory_space<vmem>>, vector<1x1x4x8xf32>
    %42 = vector.shape_cast %41 : vector<1x1x4x8xf32> to vector<4x8xf32>
    %cst_35 = arith.constant dense<0.000000e+00> : vector<128x8xf32>
    %43 = tpu.matmul %40, %42, %cst_35 {dimension_numbers = #tpu.dot_dimension_numbers<[1], [0], [0], [1], [0, 0, 1, 1], [], []>} : vector<128x4xf32>, vector<4x8xf32>, vector<128x8xf32> -> vector<128x8xf32>
    %44 = arith.addf %38, %43 : vector<128x8xf32>
    %45 = vector.extract_strided_slice %13 {offsets = [1, 2, 0], sizes = [8, 16, 4], strides = [1, 1, 1]} : vector<10x18x4xf32> to vector<8x16x4xf32>
    %46 = vector.shape_cast %45 : vector<8x16x4xf32> to vector<128x4xf32>
    %c1_36 = arith.constant 1 : index
    %c2_37 = arith.constant 2 : index
    %c0_38 = arith.constant 0 : index
    %c0_39 = arith.constant 0 : index
    %47 = vector.load %arg2[%c1_36, %c2_37, %c0_38, %c0_39] : memref<3x3x4x8xf32, #tpu.memory_space<vmem>>, vector<1x1x4x8xf32>
    %48 = vector.shape_cast %47 : vector<1x1x4x8xf32> to vector<4x8xf32>
    %cst_40 = arith.constant dense<0.000000e+00> : vector<128x8xf32>
    %49 = tpu.matmul %46, %48, %cst_40 {dimension_numbers = #tpu.dot_dimension_numbers<[1], [0], [0], [1], [0, 0, 1, 1], [], []>} : vector<128x4xf32>, vector<4x8xf32>, vector<128x8xf32> -> vector<128x8xf32>
    %50 = arith.addf %44, %49 : vector<128x8xf32>
    %51 = vector.extract_strided_slice %13 {offsets = [2, 0, 0], sizes = [8, 16, 4], strides = [1, 1, 1]} : vector<10x18x4xf32> to vector<8x16x4xf32>
    %52 = vector.shape_cast %51 : vector<8x16x4xf32> to vector<128x4xf32>
    %c2_41 = arith.constant 2 : index
    %c0_42 = arith.constant 0 : index
    %c0_43 = arith.constant 0 : index
    %c0_44 = arith.constant 0 : index
    %53 = vector.load %arg2[%c2_41, %c0_42, %c0_43, %c0_44] : memref<3x3x4x8xf32, #tpu.memory_space<vmem>>, vector<1x1x4x8xf32>
    %54 = vector.shape_cast %53 : vector<1x1x4x8xf32> to vector<4x8xf32>
    %cst_45 = arith.constant dense<0.000000e+00> : vector<128x8xf32>
    %55 = tpu.matmul %52, %54, %cst_45 {dimension_numbers = #tpu.dot_dimension_numbers<[1], [0], [0], [1], [0, 0, 1, 1], [], []>} : vector<128x4xf32>, vector<4x8xf32>, vector<128x8xf32> -> vector<128x8xf32>
    %56 = arith.addf %50, %55 : vector<128x8xf32>
    %57 = vector.extract_strided_slice %13 {offsets = [2, 1, 0], sizes = [8, 16, 4], strides = [1, 1, 1]} : vector<10x18x4xf32> to vector<8x16x4xf32>
    %58 = vector.shape_cast %57 : vector<8x16x4xf32> to vector<128x4xf32>
    %c2_46 = arith.constant 2 : index
    %c1_47 = arith.constant 1 : index
    %c0_48 = arith.constant 0 : index
    %c0_49 = arith.constant 0 : index
    %59 = vector.load %arg2[%c2_46, %c1_47, %c0_48, %c0_49] : memref<3x3x4x8xf32, #tpu.memory_space<vmem>>, vector<1x1x4x8xf32>
    %60 = vector.shape_cast %59 : vector<1x1x4x8xf32> to vector<4x8xf32>
    %cst_50 = arith.constant dense<0.000000e+00> : vector<128x8xf32>
    %61 = tpu.matmul %58, %60, %cst_50 {dimension_numbers = #tpu.dot_dimension_numbers<[1], [0], [0], [1], [0, 0, 1, 1], [], []>} : vector<128x4xf32>, vector<4x8xf32>, vector<128x8xf32> -> vector<128x8xf32>
    %62 = arith.addf %56, %61 : vector<128x8xf32>
    %63 = vector.extract_strided_slice %13 {offsets = [2, 2, 0], sizes = [8, 16, 4], strides = [1, 1, 1]} : vector<10x18x4xf32> to vector<8x16x4xf32>
    %64 = vector.shape_cast %63 : vector<8x16x4xf32> to vector<128x4xf32>
    %c2_51 = arith.constant 2 : index
    %c2_52 = arith.constant 2 : index
    %c0_53 = arith.constant 0 : index
    %c0_54 = arith.constant 0 : index
    %65 = vector.load %arg2[%c2_51, %c2_52, %c0_53, %c0_54] : memref<3x3x4x8xf32, #tpu.memory_space<vmem>>, vector<1x1x4x8xf32>
    %66 = vector.shape_cast %65 : vector<1x1x4x8xf32> to vector<4x8xf32>
    %cst_55 = arith.constant dense<0.000000e+00> : vector<128x8xf32>
    %67 = tpu.matmul %64, %66, %cst_55 {dimension_numbers = #tpu.dot_dimension_numbers<[1], [0], [0], [1], [0, 0, 1, 1], [], []>} : vector<128x4xf32>, vector<4x8xf32>, vector<128x8xf32> -> vector<128x8xf32>
    %68 = arith.addf %62, %67 : vector<128x8xf32>
    %69 = vector.shape_cast %68 : vector<128x8xf32> to vector<8x16x8xf32>
    %c0_56 = arith.constant 0 : index
    %c0_57 = arith.constant 0 : index
    %c0_58 = arith.constant 0 : index
    %c0_59 = arith.constant 0 : index
    %70 = vector.load %arg6[%c0_56, %c0_57, %c0_58, %c0_59] : memref<1x8x16x8xf32, #tpu.memory_space<vmem>>, vector<1x8x16x8xf32>
    %71 = vector.shape_cast %70 : vector<1x8x16x8xf32> to vector<8x16x8xf32>
    %72 = vector.shape_cast %69 : vector<8x16x8xf32> to vector<1x8x16x8xf32>
    tpu.vector_store %arg6[%c0_56, %c0_57, %c0_58, %c0_59], %72 {strides = array<i32>} : memref<1x8x16x8xf32, #tpu.memory_space<vmem>>, vector<1x8x16x8xf32>,
    %cst_60 = arith.constant dense<0.000000e+00> : vector<8xf32>
    %73 = vector.multi_reduction <add>, %68, %cst_60 [0] : vector<128x8xf32> to vector<8xf32>
    %74 = vector.shape_cast %73 : vector<8xf32> to vector<1x8xf32>
    %cst_61 = arith.constant 7.812500e-03 : f32
    %75 = vector.broadcast %cst_61 : f32 to vector<1x8xf32>
    %76 = arith.mulf %74, %75 : vector<1x8xf32>
    %77 = vector.broadcast %76 : vector<1x8xf32> to vector<128x8xf32>
    %78 = arith.subf %68, %77 : vector<128x8xf32>
    %c0_62 = arith.constant 0 : index
    %c0_63 = arith.constant 0 : index
    %c0_64 = arith.constant 0 : index
    %79 = vector.load %arg7[%c0_62, %c0_63, %c0_64] : memref<1x2x8xf32, #tpu.memory_space<vmem>>, vector<1x1x8xf32>
    %80 = vector.shape_cast %79 : vector<1x1x8xf32> to vector<1x8xf32>
    %81 = vector.shape_cast %74 : vector<1x8xf32> to vector<1x1x8xf32>
    tpu.vector_store %arg7[%c0_62, %c0_63, %c0_64], %81 {strides = array<i32>} : memref<1x2x8xf32, #tpu.memory_space<vmem>>, vector<1x1x8xf32>,
    %82 = arith.mulf %78, %78 : vector<128x8xf32>
    %cst_65 = arith.constant dense<0.000000e+00> : vector<8xf32>
    %83 = vector.multi_reduction <add>, %82, %cst_65 [0] : vector<128x8xf32> to vector<8xf32>
    %84 = vector.shape_cast %83 : vector<8xf32> to vector<1x8xf32>
    %c0_66 = arith.constant 0 : index
    %c1_67 = arith.constant 1 : index
    %c0_68 = arith.constant 0 : index
    %85 = vector.load %arg7[%c0_66, %c1_67, %c0_68] : memref<1x2x8xf32, #tpu.memory_space<vmem>>, vector<1x1x8xf32>
    %86 = vector.shape_cast %85 : vector<1x1x8xf32> to vector<1x8xf32>
    %87 = vector.shape_cast %84 : vector<1x8xf32> to vector<1x1x8xf32>
    tpu.vector_store %arg7[%c0_66, %c1_67, %c0_68], %87 {strides = array<i32>} : memref<1x2x8xf32, #tpu.memory_space<vmem>>, vector<1x1x8xf32>,
    return
  }
  func.func @transform_0(%arg0: i32, %arg1: i32) -> (i32, i32, i32, i32) {
    %c0_i32 = arith.constant 0 : i32
    %c0_i32_0 = arith.constant 0 : i32
    %c0_i32_1 = arith.constant 0 : i32
    %c0_i32_2 = arith.constant 0 : i32
    %c0_i32_3 = arith.constant 0 : i32
    return %c0_i32, %c0_i32_0, %c0_i32_1, %c0_i32_2 : i32, i32, i32, i32
  }
  func.func @transform_1(%arg0: i32, %arg1: i32) -> (i32, i32, i32, i32) {
    %c8_i32 = arith.constant 8 : i32
    %0 = arith.muli %arg1, %c8_i32 : i32
    %c1_i32 = arith.constant 1 : i32
    %1 = arith.subi %0, %c1_i32 : i32
    %c0_i32 = arith.constant 0 : i32
    %2 = arith.maxsi %1, %c0_i32 : i32
    %c0_i32_0 = arith.constant 0 : i32
    %c0_i32_1 = arith.constant 0 : i32
    %c0_i32_2 = arith.constant 0 : i32
    return %arg0, %2, %c0_i32_0, %c0_i32_1 : i32, i32, i32, i32
  }
  func.func @transform_2(%arg0: i32, %arg1: i32) -> (i32, i32, i32, i32) {
    %c0_i32 = arith.constant 0 : i32
    %c0_i32_0 = arith.constant 0 : i32
    %c0_i32_1 = arith.constant 0 : i32
    return %arg0, %arg1, %c0_i32, %c0_i32_0 : i32, i32, i32, i32
  }
  func.func @transform_3(%arg0: i32, %arg1: i32) -> (i32, i32, i32, i32) {
    %c1_i32 = arith.constant 1 : i32
    %0 = arith.addi %arg1, %c1_i32 : i32
    %c8_i32 = arith.constant 8 : i32
    %1 = arith.muli %0, %c8_i32 : i32
    %c15_i32 = arith.constant 15 : i32
    %2 = arith.minsi %1, %c15_i32 : i32
    %c0_i32 = arith.constant 0 : i32
    %c0_i32_0 = arith.constant 0 : i32
    %c0_i32_1 = arith.constant 0 : i32
    return %arg0, %2, %c0_i32, %c0_i32_0 : i32, i32, i32, i32
  }
  func.func @transform_4(%arg0: i32, %arg1: i32) -> (i32, i32, i32, i32) {
    %c0_i32 = arith.constant 0 : i32
    %c0_i32_0 = arith.constant 0 : i32
    %c0_i32_1 = arith.constant 0 : i32
    return %arg0, %arg1, %c0_i32, %c0_i32_0 : i32, i32, i32, i32
  }
  func.func @transform_5(%arg0: i32, %arg1: i32) -> (i32, i32, i32) {
    %c2_i32 = arith.constant 2 : i32
    %0 = arith.muli %arg0, %c2_i32 : i32
    %1 = arith.addi %0, %arg1 : i32
    %c0_i32 = arith.constant 0 : i32
    %c0_i32_0 = arith.constant 0 : i32
    %c0_i32_1 = arith.constant 0 : i32
    return %1, %c0_i32, %c0_i32_0 : i32, i32, i32
  }
}

module attributes {stable_mosaic.version = 11 : i64} {
  func.func @_conv3x3_bn_stats_kernel(%arg0: i32, %arg1: i32, %arg2: memref<2x8xf32, #tpu.memory_space<vmem>>, %arg3: memref<3x3x8x8xf32, #tpu.memory_space<vmem>>, %arg4: memref<1x1x16x8xf32, #tpu.memory_space<vmem>>, %arg5: memref<1x8x16x8xf32, #tpu.memory_space<vmem>>, %arg6: memref<1x1x16x8xf32, #tpu.memory_space<vmem>>, %arg7: memref<1x8x16x8xf32, #tpu.memory_space<vmem>>, %arg8: memref<1x2x8xf32, #tpu.memory_space<vmem>>) attributes {dimension_semantics = [#tpu.dimension_semantics<parallel>, #tpu.dimension_semantics<parallel>], iteration_bounds = array<i64: 2, 2>, scalar_prefetch = 0 : i64, scratch_operands = 0 : i64, tpu.core_type = #tpu.core_type<tc>, window_params = [{pipeline_mode = #tpu.pipeline_mode<synchronous>, transform_indices = @transform_0, window_bounds = array<i64: 2, 8>}, {pipeline_mode = #tpu.pipeline_mode<synchronous>, transform_indices = @transform_1, window_bounds = array<i64: 3, 3, 8, 8>}, {transform_indices = @transform_2, window_bounds = array<i64: 1, 1, 16, 8>}, {transform_indices = @transform_3, window_bounds = array<i64: 1, 8, 16, 8>}, {transform_indices = @transform_4, window_bounds = array<i64: 1, 1, 16, 8>}, {transform_indices = @transform_5, window_bounds = array<i64: 1, 8, 16, 8>}, {transform_indices = @transform_6, window_bounds = array<i64: 1, 2, 8>}]} {
    %c0 = arith.constant 0 : index
    %c0_0 = arith.constant 0 : index
    %c0_1 = arith.constant 0 : index
    %c0_2 = arith.constant 0 : index
    %0 = vector.load %arg4[%c0, %c0_0, %c0_1, %c0_2] : memref<1x1x16x8xf32, #tpu.memory_space<vmem>>, vector<1x1x16x8xf32>
    %1 = vector.shape_cast %0 : vector<1x1x16x8xf32> to vector<1x16x8xf32>
    %c0_3 = arith.constant 0 : index
    %c0_4 = arith.constant 0 : index
    %c0_5 = arith.constant 0 : index
    %c0_6 = arith.constant 0 : index
    %2 = vector.load %arg5[%c0_3, %c0_4, %c0_5, %c0_6] : memref<1x8x16x8xf32, #tpu.memory_space<vmem>>, vector<1x8x16x8xf32>
    %3 = vector.shape_cast %2 : vector<1x8x16x8xf32> to vector<8x16x8xf32>
    %c0_7 = arith.constant 0 : index
    %c0_8 = arith.constant 0 : index
    %c0_9 = arith.constant 0 : index
    %c0_10 = arith.constant 0 : index
    %4 = vector.load %arg6[%c0_7, %c0_8, %c0_9, %c0_10] : memref<1x1x16x8xf32, #tpu.memory_space<vmem>>, vector<1x1x16x8xf32>
    %5 = vector.shape_cast %4 : vector<1x1x16x8xf32> to vector<1x16x8xf32>
    %c0_11 = arith.constant 0 : index
    %c0_12 = arith.constant 0 : index
    %6 = vector.load %arg2[%c0_11, %c0_12] : memref<2x8xf32, #tpu.memory_space<vmem>>, vector<2x8xf32>
    %7 = vector.extract_strided_slice %6 {offsets = [0, 0], sizes = [1, 8], strides = [1, 1]} : vector<2x8xf32> to vector<1x8xf32>
    %8 = vector.shape_cast %7 : vector<1x8xf32> to vector<1x1x8xf32>
    %9 = vector.extract_strided_slice %6 {offsets = [1, 0], sizes = [1, 8], strides = [1, 1]} : vector<2x8xf32> to vector<1x8xf32>
    %10 = vector.shape_cast %9 : vector<1x8xf32> to vector<1x1x8xf32>
    %11 = vector.broadcast %8 : vector<1x1x8xf32> to vector<1x16x8xf32>
    %12 = arith.mulf %1, %11 : vector<1x16x8xf32>
    %13 = vector.broadcast %10 : vector<1x1x8xf32> to vector<1x16x8xf32>
    %14 = arith.addf %12, %13 : vector<1x16x8xf32>
    %cst = arith.constant 0.000000e+00 : f32
    %15 = vector.broadcast %cst : f32 to vector<1x16x8xf32>
    %16 = arith.maximumf %14, %15 : vector<1x16x8xf32>
    %17 = vector.broadcast %8 : vector<1x1x8xf32> to vector<8x16x8xf32>
    %18 = arith.mulf %3, %17 : vector<8x16x8xf32>
    %19 = vector.broadcast %10 : vector<1x1x8xf32> to vector<8x16x8xf32>
    %20 = arith.addf %18, %19 : vector<8x16x8xf32>
    %cst_13 = arith.constant 0.000000e+00 : f32
    %21 = vector.broadcast %cst_13 : f32 to vector<8x16x8xf32>
    %22 = arith.maximumf %20, %21 : vector<8x16x8xf32>
    %23 = vector.broadcast %8 : vector<1x1x8xf32> to vector<1x16x8xf32>
    %24 = arith.mulf %5, %23 : vector<1x16x8xf32>
    %25 = vector.broadcast %10 : vector<1x1x8xf32> to vector<1x16x8xf32>
    %26 = arith.addf %24, %25 : vector<1x16x8xf32>
    %cst_14 = arith.constant 0.000000e+00 : f32
    %27 = vector.broadcast %cst_14 : f32 to vector<1x16x8xf32>
    %28 = arith.maximumf %26, %27 : vector<1x16x8xf32>
    %cst_15 = arith.constant 0.000000e+00 : f32
    %29 = vector.broadcast %cst_15 : f32 to vector<1x16x8xf32>
    %c0_i32 = arith.constant 0 : i32
    %30 = arith.cmpi sgt, %arg1, %c0_i32 : i32
    %31 = arith.select %30, %16, %29 : vector<1x16x8xf32>
    %c1_i32 = arith.constant 1 : i32
    %32 = arith.cmpi slt, %arg1, %c1_i32 : i32
    %33 = arith.select %32, %28, %29 : vector<1x16x8xf32>
    %34 = tpu.concatenate %31, %22, %33 in 0 : vector<1x16x8xf32>, vector<8x16x8xf32>, vector<1x16x8xf32> -> vector<10x16x8xf32>
    %cst_16 = arith.constant 0.000000e+00 : f32
    %35 = vector.broadcast %cst_16 : f32 to vector<10x1x8xf32>
    %36 = tpu.concatenate %35, %34, %35 in 1 : vector<10x1x8xf32>, vector<10x16x8xf32>, vector<10x1x8xf32> -> vector<10x18x8xf32>
    %cst_17 = arith.constant 0.000000e+00 : f32
    %37 = vector.broadcast %cst_17 : f32 to vector<128x8xf32>
    %38 = vector.extract_strided_slice %36 {offsets = [0, 0, 0], sizes = [8, 16, 8], strides = [1, 1, 1]} : vector<10x18x8xf32> to vector<8x16x8xf32>
    %39 = vector.shape_cast %38 : vector<8x16x8xf32> to vector<128x8xf32>
    %c0_18 = arith.constant 0 : index
    %c0_19 = arith.constant 0 : index
    %c0_20 = arith.constant 0 : index
    %c0_21 = arith.constant 0 : index
    %40 = vector.load %arg3[%c0_18, %c0_19, %c0_20, %c0_21] : memref<3x3x8x8xf32, #tpu.memory_space<vmem>>, vector<1x1x8x8xf32>
    %41 = vector.shape_cast %40 : vector<1x1x8x8xf32> to vector<8x8xf32>
    %cst_22 = arith.constant dense<0.000000e+00> : vector<128x8xf32>
    %42 = tpu.matmul %39, %41, %cst_22 {dimension_numbers = #tpu.dot_dimension_numbers<[1], [0], [0], [1], [0, 0, 1, 1], [], []>} : vector<128x8xf32>, vector<8x8xf32>, vector<128x8xf32> -> vector<128x8xf32>
    %43 = arith.addf %37, %42 : vector<128x8xf32>
    %44 = vector.extract_strided_slice %36 {offsets = [0, 1, 0], sizes = [8, 16, 8], strides = [1, 1, 1]} : vector<10x18x8xf32> to vector<8x16x8xf32>
    %45 = vector.shape_cast %44 : vector<8x16x8xf32> to vector<128x8xf32>
    %c0_23 = arith.constant 0 : index
    %c1 = arith.constant 1 : index
    %c0_24 = arith.constant 0 : index
    %c0_25 = arith.constant 0 : index
    %46 = vector.load %arg3[%c0_23, %c1, %c0_24, %c0_25] : memref<3x3x8x8xf32, #tpu.memory_space<vmem>>, vector<1x1x8x8xf32>
    %47 = vector.shape_cast %46 : vector<1x1x8x8xf32> to vector<8x8xf32>
    %cst_26 = arith.constant dense<0.000000e+00> : vector<128x8xf32>
    %48 = tpu.matmul %45, %47, %cst_26 {dimension_numbers = #tpu.dot_dimension_numbers<[1], [0], [0], [1], [0, 0, 1, 1], [], []>} : vector<128x8xf32>, vector<8x8xf32>, vector<128x8xf32> -> vector<128x8xf32>
    %49 = arith.addf %43, %48 : vector<128x8xf32>
    %50 = vector.extract_strided_slice %36 {offsets = [0, 2, 0], sizes = [8, 16, 8], strides = [1, 1, 1]} : vector<10x18x8xf32> to vector<8x16x8xf32>
    %51 = vector.shape_cast %50 : vector<8x16x8xf32> to vector<128x8xf32>
    %c0_27 = arith.constant 0 : index
    %c2 = arith.constant 2 : index
    %c0_28 = arith.constant 0 : index
    %c0_29 = arith.constant 0 : index
    %52 = vector.load %arg3[%c0_27, %c2, %c0_28, %c0_29] : memref<3x3x8x8xf32, #tpu.memory_space<vmem>>, vector<1x1x8x8xf32>
    %53 = vector.shape_cast %52 : vector<1x1x8x8xf32> to vector<8x8xf32>
    %cst_30 = arith.constant dense<0.000000e+00> : vector<128x8xf32>
    %54 = tpu.matmul %51, %53, %cst_30 {dimension_numbers = #tpu.dot_dimension_numbers<[1], [0], [0], [1], [0, 0, 1, 1], [], []>} : vector<128x8xf32>, vector<8x8xf32>, vector<128x8xf32> -> vector<128x8xf32>
    %55 = arith.addf %49, %54 : vector<128x8xf32>
    %56 = vector.extract_strided_slice %36 {offsets = [1, 0, 0], sizes = [8, 16, 8], strides = [1, 1, 1]} : vector<10x18x8xf32> to vector<8x16x8xf32>
    %57 = vector.shape_cast %56 : vector<8x16x8xf32> to vector<128x8xf32>
    %c1_31 = arith.constant 1 : index
    %c0_32 = arith.constant 0 : index
    %c0_33 = arith.constant 0 : index
    %c0_34 = arith.constant 0 : index
    %58 = vector.load %arg3[%c1_31, %c0_32, %c0_33, %c0_34] : memref<3x3x8x8xf32, #tpu.memory_space<vmem>>, vector<1x1x8x8xf32>
    %59 = vector.shape_cast %58 : vector<1x1x8x8xf32> to vector<8x8xf32>
    %cst_35 = arith.constant dense<0.000000e+00> : vector<128x8xf32>
    %60 = tpu.matmul %57, %59, %cst_35 {dimension_numbers = #tpu.dot_dimension_numbers<[1], [0], [0], [1], [0, 0, 1, 1], [], []>} : vector<128x8xf32>, vector<8x8xf32>, vector<128x8xf32> -> vector<128x8xf32>
    %61 = arith.addf %55, %60 : vector<128x8xf32>
    %62 = vector.extract_strided_slice %36 {offsets = [1, 1, 0], sizes = [8, 16, 8], strides = [1, 1, 1]} : vector<10x18x8xf32> to vector<8x16x8xf32>
    %63 = vector.shape_cast %62 : vector<8x16x8xf32> to vector<128x8xf32>
    %c1_36 = arith.constant 1 : index
    %c1_37 = arith.constant 1 : index
    %c0_38 = arith.constant 0 : index
    %c0_39 = arith.constant 0 : index
    %64 = vector.load %arg3[%c1_36, %c1_37, %c0_38, %c0_39] : memref<3x3x8x8xf32, #tpu.memory_space<vmem>>, vector<1x1x8x8xf32>
    %65 = vector.shape_cast %64 : vector<1x1x8x8xf32> to vector<8x8xf32>
    %cst_40 = arith.constant dense<0.000000e+00> : vector<128x8xf32>
    %66 = tpu.matmul %63, %65, %cst_40 {dimension_numbers = #tpu.dot_dimension_numbers<[1], [0], [0], [1], [0, 0, 1, 1], [], []>} : vector<128x8xf32>, vector<8x8xf32>, vector<128x8xf32> -> vector<128x8xf32>
    %67 = arith.addf %61, %66 : vector<128x8xf32>
    %68 = vector.extract_strided_slice %36 {offsets = [1, 2, 0], sizes = [8, 16, 8], strides = [1, 1, 1]} : vector<10x18x8xf32> to vector<8x16x8xf32>
    %69 = vector.shape_cast %68 : vector<8x16x8xf32> to vector<128x8xf32>
    %c1_41 = arith.constant 1 : index
    %c2_42 = arith.constant 2 : index
    %c0_43 = arith.constant 0 : index
    %c0_44 = arith.constant 0 : index
    %70 = vector.load %arg3[%c1_41, %c2_42, %c0_43, %c0_44] : memref<3x3x8x8xf32, #tpu.memory_space<vmem>>, vector<1x1x8x8xf32>
    %71 = vector.shape_cast %70 : vector<1x1x8x8xf32> to vector<8x8xf32>
    %cst_45 = arith.constant dense<0.000000e+00> : vector<128x8xf32>
    %72 = tpu.matmul %69, %71, %cst_45 {dimension_numbers = #tpu.dot_dimension_numbers<[1], [0], [0], [1], [0, 0, 1, 1], [], []>} : vector<128x8xf32>, vector<8x8xf32>, vector<128x8xf32> -> vector<128x8xf32>
    %73 = arith.addf %67, %72 : vector<128x8xf32>
    %74 = vector.extract_strided_slice %36 {offsets = [2, 0, 0], sizes = [8, 16, 8], strides = [1, 1, 1]} : vector<10x18x8xf32> to vector<8x16x8xf32>
    %75 = vector.shape_cast %74 : vector<8x16x8xf32> to vector<128x8xf32>
    %c2_46 = arith.constant 2 : index
    %c0_47 = arith.constant 0 : index
    %c0_48 = arith.constant 0 : index
    %c0_49 = arith.constant 0 : index
    %76 = vector.load %arg3[%c2_46, %c0_47, %c0_48, %c0_49] : memref<3x3x8x8xf32, #tpu.memory_space<vmem>>, vector<1x1x8x8xf32>
    %77 = vector.shape_cast %76 : vector<1x1x8x8xf32> to vector<8x8xf32>
    %cst_50 = arith.constant dense<0.000000e+00> : vector<128x8xf32>
    %78 = tpu.matmul %75, %77, %cst_50 {dimension_numbers = #tpu.dot_dimension_numbers<[1], [0], [0], [1], [0, 0, 1, 1], [], []>} : vector<128x8xf32>, vector<8x8xf32>, vector<128x8xf32> -> vector<128x8xf32>
    %79 = arith.addf %73, %78 : vector<128x8xf32>
    %80 = vector.extract_strided_slice %36 {offsets = [2, 1, 0], sizes = [8, 16, 8], strides = [1, 1, 1]} : vector<10x18x8xf32> to vector<8x16x8xf32>
    %81 = vector.shape_cast %80 : vector<8x16x8xf32> to vector<128x8xf32>
    %c2_51 = arith.constant 2 : index
    %c1_52 = arith.constant 1 : index
    %c0_53 = arith.constant 0 : index
    %c0_54 = arith.constant 0 : index
    %82 = vector.load %arg3[%c2_51, %c1_52, %c0_53, %c0_54] : memref<3x3x8x8xf32, #tpu.memory_space<vmem>>, vector<1x1x8x8xf32>
    %83 = vector.shape_cast %82 : vector<1x1x8x8xf32> to vector<8x8xf32>
    %cst_55 = arith.constant dense<0.000000e+00> : vector<128x8xf32>
    %84 = tpu.matmul %81, %83, %cst_55 {dimension_numbers = #tpu.dot_dimension_numbers<[1], [0], [0], [1], [0, 0, 1, 1], [], []>} : vector<128x8xf32>, vector<8x8xf32>, vector<128x8xf32> -> vector<128x8xf32>
    %85 = arith.addf %79, %84 : vector<128x8xf32>
    %86 = vector.extract_strided_slice %36 {offsets = [2, 2, 0], sizes = [8, 16, 8], strides = [1, 1, 1]} : vector<10x18x8xf32> to vector<8x16x8xf32>
    %87 = vector.shape_cast %86 : vector<8x16x8xf32> to vector<128x8xf32>
    %c2_56 = arith.constant 2 : index
    %c2_57 = arith.constant 2 : index
    %c0_58 = arith.constant 0 : index
    %c0_59 = arith.constant 0 : index
    %88 = vector.load %arg3[%c2_56, %c2_57, %c0_58, %c0_59] : memref<3x3x8x8xf32, #tpu.memory_space<vmem>>, vector<1x1x8x8xf32>
    %89 = vector.shape_cast %88 : vector<1x1x8x8xf32> to vector<8x8xf32>
    %cst_60 = arith.constant dense<0.000000e+00> : vector<128x8xf32>
    %90 = tpu.matmul %87, %89, %cst_60 {dimension_numbers = #tpu.dot_dimension_numbers<[1], [0], [0], [1], [0, 0, 1, 1], [], []>} : vector<128x8xf32>, vector<8x8xf32>, vector<128x8xf32> -> vector<128x8xf32>
    %91 = arith.addf %85, %90 : vector<128x8xf32>
    %92 = vector.shape_cast %91 : vector<128x8xf32> to vector<8x16x8xf32>
    %c0_61 = arith.constant 0 : index
    %c0_62 = arith.constant 0 : index
    %c0_63 = arith.constant 0 : index
    %c0_64 = arith.constant 0 : index
    %93 = vector.load %arg7[%c0_61, %c0_62, %c0_63, %c0_64] : memref<1x8x16x8xf32, #tpu.memory_space<vmem>>, vector<1x8x16x8xf32>
    %94 = vector.shape_cast %93 : vector<1x8x16x8xf32> to vector<8x16x8xf32>
    %95 = vector.shape_cast %92 : vector<8x16x8xf32> to vector<1x8x16x8xf32>
    tpu.vector_store %arg7[%c0_61, %c0_62, %c0_63, %c0_64], %95 {strides = array<i32>} : memref<1x8x16x8xf32, #tpu.memory_space<vmem>>, vector<1x8x16x8xf32>,
    %cst_65 = arith.constant dense<0.000000e+00> : vector<8xf32>
    %96 = vector.multi_reduction <add>, %91, %cst_65 [0] : vector<128x8xf32> to vector<8xf32>
    %97 = vector.shape_cast %96 : vector<8xf32> to vector<1x8xf32>
    %cst_66 = arith.constant 7.812500e-03 : f32
    %98 = vector.broadcast %cst_66 : f32 to vector<1x8xf32>
    %99 = arith.mulf %97, %98 : vector<1x8xf32>
    %100 = vector.broadcast %99 : vector<1x8xf32> to vector<128x8xf32>
    %101 = arith.subf %91, %100 : vector<128x8xf32>
    %c0_67 = arith.constant 0 : index
    %c0_68 = arith.constant 0 : index
    %c0_69 = arith.constant 0 : index
    %102 = vector.load %arg8[%c0_67, %c0_68, %c0_69] : memref<1x2x8xf32, #tpu.memory_space<vmem>>, vector<1x1x8xf32>
    %103 = vector.shape_cast %102 : vector<1x1x8xf32> to vector<1x8xf32>
    %104 = vector.shape_cast %97 : vector<1x8xf32> to vector<1x1x8xf32>
    tpu.vector_store %arg8[%c0_67, %c0_68, %c0_69], %104 {strides = array<i32>} : memref<1x2x8xf32, #tpu.memory_space<vmem>>, vector<1x1x8xf32>,
    %105 = arith.mulf %101, %101 : vector<128x8xf32>
    %cst_70 = arith.constant dense<0.000000e+00> : vector<8xf32>
    %106 = vector.multi_reduction <add>, %105, %cst_70 [0] : vector<128x8xf32> to vector<8xf32>
    %107 = vector.shape_cast %106 : vector<8xf32> to vector<1x8xf32>
    %c0_71 = arith.constant 0 : index
    %c1_72 = arith.constant 1 : index
    %c0_73 = arith.constant 0 : index
    %108 = vector.load %arg8[%c0_71, %c1_72, %c0_73] : memref<1x2x8xf32, #tpu.memory_space<vmem>>, vector<1x1x8xf32>
    %109 = vector.shape_cast %108 : vector<1x1x8xf32> to vector<1x8xf32>
    %110 = vector.shape_cast %107 : vector<1x8xf32> to vector<1x1x8xf32>
    tpu.vector_store %arg8[%c0_71, %c1_72, %c0_73], %110 {strides = array<i32>} : memref<1x2x8xf32, #tpu.memory_space<vmem>>, vector<1x1x8xf32>,
    return
  }
  func.func @transform_0(%arg0: i32, %arg1: i32) -> (i32, i32) {
    %c0_i32 = arith.constant 0 : i32
    %c0_i32_0 = arith.constant 0 : i32
    %c0_i32_1 = arith.constant 0 : i32
    return %c0_i32, %c0_i32_0 : i32, i32
  }
  func.func @transform_1(%arg0: i32, %arg1: i32) -> (i32, i32, i32, i32) {
    %c0_i32 = arith.constant 0 : i32
    %c0_i32_0 = arith.constant 0 : i32
    %c0_i32_1 = arith.constant 0 : i32
    %c0_i32_2 = arith.constant 0 : i32
    %c0_i32_3 = arith.constant 0 : i32
    return %c0_i32, %c0_i32_0, %c0_i32_1, %c0_i32_2 : i32, i32, i32, i32
  }
  func.func @transform_2(%arg0: i32, %arg1: i32) -> (i32, i32, i32, i32) {
    %c8_i32 = arith.constant 8 : i32
    %0 = arith.muli %arg1, %c8_i32 : i32
    %c1_i32 = arith.constant 1 : i32
    %1 = arith.subi %0, %c1_i32 : i32
    %c0_i32 = arith.constant 0 : i32
    %2 = arith.maxsi %1, %c0_i32 : i32
    %c0_i32_0 = arith.constant 0 : i32
    %c0_i32_1 = arith.constant 0 : i32
    %c0_i32_2 = arith.constant 0 : i32
    return %arg0, %2, %c0_i32_0, %c0_i32_1 : i32, i32, i32, i32
  }
  func.func @transform_3(%arg0: i32, %arg1: i32) -> (i32, i32, i32, i32) {
    %c0_i32 = arith.constant 0 : i32
    %c0_i32_0 = arith.constant 0 : i32
    %c0_i32_1 = arith.constant 0 : i32
    return %arg0, %arg1, %c0_i32, %c0_i32_0 : i32, i32, i32, i32
  }
  func.func @transform_4(%arg0: i32, %arg1: i32) -> (i32, i32, i32, i32) {
    %c1_i32 = arith.constant 1 : i32
    %0 = arith.addi %arg1, %c1_i32 : i32
    %c8_i32 = arith.constant 8 : i32
    %1 = arith.muli %0, %c8_i32 : i32
    %c15_i32 = arith.constant 15 : i32
    %2 = arith.minsi %1, %c15_i32 : i32
    %c0_i32 = arith.constant 0 : i32
    %c0_i32_0 = arith.constant 0 : i32
    %c0_i32_1 = arith.constant 0 : i32
    return %arg0, %2, %c0_i32, %c0_i32_0 : i32, i32, i32, i32
  }
  func.func @transform_5(%arg0: i32, %arg1: i32) -> (i32, i32, i32, i32) {
    %c0_i32 = arith.constant 0 : i32
    %c0_i32_0 = arith.constant 0 : i32
    %c0_i32_1 = arith.constant 0 : i32
    return %arg0, %arg1, %c0_i32, %c0_i32_0 : i32, i32, i32, i32
  }
  func.func @transform_6(%arg0: i32, %arg1: i32) -> (i32, i32, i32) {
    %c2_i32 = arith.constant 2 : i32
    %0 = arith.muli %arg0, %c2_i32 : i32
    %1 = arith.addi %0, %arg1 : i32
    %c0_i32 = arith.constant 0 : i32
    %c0_i32_0 = arith.constant 0 : i32
    %c0_i32_1 = arith.constant 0 : i32
    return %1, %c0_i32, %c0_i32_0 : i32, i32, i32
  }
}

</mosaic_0001>

<llo_original>
// kernel: double_conv.2
$region0: #{double_conv.2}
  #allocation0 [shape = 'u32[]', space=smem, size = 0x4, offset = 0x4, fixed_abs, tag = 'smem constant byte address 0x4 - core index']
  #allocation1 [shape = 'u32[72,128]{1,0:T(1,128)}', space=vmem, size = 0x9000, scoped, tag = 'internal scratch']
  %s0 = inlined_call_operand.vmem [shape: f32[3,3,4,8], index: 0, kind: input, shape index: {}]
  %s1 = inlined_call_operand.vmem [shape: f32[2,16,16,4], index: 1, kind: input, shape index: {}, may-alias: {1,2,3}]
  %s2 = inlined_call_operand.vmem [shape: f32[2,16,16,4], index: 2, kind: input, shape index: {}, may-alias: {1,2,3}]
  %s3 = inlined_call_operand.vmem [shape: f32[2,16,16,4], index: 3, kind: input, shape index: {}, may-alias: {1,2,3}]
  %s4 = inlined_call_operand.vmem [shape: f32[2,16,16,8], index: 4, kind: output, shape index: {0}]
  %s5 = inlined_call_operand.vmem [shape: f32[4,2,8], index: 5, kind: output, shape index: {1}]
  %6 = xla_tuple %s4, %s5
  %s7 = sld [smem:[#allocation0]]
  $region57: #{double_conv.2} parent=0
    _
  %s9 = ssub.s32 1, %s7
  %s10 = scalar_select 0, %s9, %s7
  loop: start=0, step=1, limit=6
  $region2: #{double_conv.2} parent=0 // loop_pre_header
    _
  $region3: #{double_conv.2} parent=0 // loop_header
    %s12 = sphi 0, %s16
    %p13 = scmp.ge.s32.totalorder %s12, 6
    %s19 = sphi 0, %s31
    %s20 = sphi 0, %s27
    %s21 = sphi 0, %s19
    %s22 = sphi 0, %s20
    %s23 = sphi 0, %s21
    %s24 = sphi 0, %s22
    %s32 = sphi 0, %s32
    %s34 = sphi 0, %s32
    %s35 = sphi 0, %s34
    %s49 = sphi 0, %s35
    %s65 = sphi 0, %s67
    %s68 = sphi 0, %s65
    %s69 = sphi 0, %s68
    %s85 = sphi 0, %s69
    %s93 = sphi 0, %s95
    %s96 = sphi 0, %s93
    %s97 = sphi 0, %s96
    %s113 = sphi 0, %s97
    %s129 = sphi 0, %s131
    %s132 = sphi 0, %s129
    %s133 = sphi 0, %s132
    %s149 = sphi 0, %s133
    %s157 = sphi 0, %s159
    %s160 = sphi 0, %s157
    %s161 = sphi 0, %s160
    %s177 = sphi 0, %s161
    %s187 = sphi 0, %s189
    %s190 = sphi 0, %s187
    %s191 = sphi 0, %s190
    %s207 = sphi 0, %s191
  $region4: #{double_conv.2} parent=0 // loop_header_branch
    %15 = sbr.rel (%p13) target = $region8
  $region5: #{double_conv.2} parent=0 // loop_body
    %s17 = ssub.s32 %s12, 1
    %s18 = ssub.s32 %s12, 2
    %s25 = sadd.s32 1, %s20
    %p26 = scmp.ge.s32.totalorder %s25, 2
    %s27 = scalar_select %p26, 0, %s25
    %s28 = sadd.s32 1, %s19
    %s29 = scalar_select %p26, %s28, %s19
    %p30 = scmp.ge.s32.totalorder %s29, 2
    %s31 = scalar_select %p30, 0, %s29
    %s33 = sadd.s32 %s32, 1
    %p36 = scmp.eq.s32.totalorder %s12, 3
    %p37 = scmp.ne.s32.totalorder %s32, %s34
    %p38 = scmp.eq.s32.totalorder %s12, 0
    %p39 = por %p37, %p38
    %p40 = scmp.ne.s32.totalorder %s32, %s34
    %p41 = scmp.eq.s32.totalorder %s17, 3
    %p42 = por %p40, %p41
    %p43 = scmp.ne.s32.totalorder %s34, %s35
    %p44 = scmp.eq.s32.totalorder %s17, 0
    %p45 = por %p43, %p44
    %p46 = scmp.ne.s32.totalorder %s34, %s35
    %p47 = scmp.eq.s32.totalorder %s18, 3
    %p48 = por %p46, %p47
    %p50 = scmp.ne.s32.totalorder %s35, %s49
    %p51 = scmp.eq.s32.totalorder %s18, 0
    %p52 = por %p50, %p51
    %s53 = smul.u32 %s20, 8
    %s54 = ssub.s32 %s53, 1
    %p55 = scmp.gt.s32.totalorder %s54, 0
    %s56 = scalar_select %p55, %s54, 0
    %s57 = smul.u32 %s27, 8
    %s58 = ssub.s32 %s57, 1
    %p59 = scmp.gt.s32.totalorder %s58, 0
    %s60 = scalar_select %p59, %s58, 0
    %s61 = ssub.s32 %s19, %s31
    %s62 = ssub.s32 %s56, %s60
    %s63 = sor.u32 %s61, %s62
    %p64 = scmp.eq.s32.totalorder %s63, 0
    %s66 = sadd.s32 %s65, 1
    %s67 = scalar_select %p64, %s65, %s66
    %p70 = pneg %p64
    %p71 = scmp.eq.s32.totalorder %s12, 3
    %p72 = por %p70, %p71
    %p73 = scmp.ne.s32.totalorder %s65, %s68
    %p74 = scmp.eq.s32.totalorder %s12, 0
    %p75 = por %p73, %p74
    %p76 = scmp.ne.s32.totalorder %s65, %s68
    %p77 = scmp.eq.s32.totalorder %s17, 3
    %p78 = por %p76, %p77
    %p79 = scmp.ne.s32.totalorder %s68, %s69
    %p80 = scmp.eq.s32.totalorder %s17, 0
    %p81 = por %p79, %p80
    %p82 = scmp.ne.s32.totalorder %s68, %s69
    %p83 = scmp.eq.s32.totalorder %s18, 3
    %p84 = por %p82, %p83
    %p86 = scmp.ne.s32.totalorder %s69, %s85
    %p87 = scmp.eq.s32.totalorder %s18, 0
    %p88 = por %p86, %p87
    %s89 = ssub.s32 %s19, %s31
    %s90 = ssub.s32 %s20, %s27
    %s91 = sor.u32 %s89, %s90
    %p92 = scmp.eq.s32.totalorder %s91, 0
    %s94 = sadd.s32 %s93, 1
    %s95 = scalar_select %p92, %s93, %s94
    %p98 = pneg %p92
    %p99 = scmp.eq.s32.totalorder %s12, 3
    %p100 = por %p98, %p99
    %p101 = scmp.ne.s32.totalorder %s93, %s96
    %p102 = scmp.eq.s32.totalorder %s12, 0
    %p103 = por %p101, %p102
    %p104 = scmp.ne.s32.totalorder %s93, %s96
    %p105 = scmp.eq.s32.totalorder %s17, 3
    %p106 = por %p104, %p105
    %p107 = scmp.ne.s32.totalorder %s96, %s97
    %p108 = scmp.eq.s32.totalorder %s17, 0
    %p109 = por %p107, %p108
    %p110 = scmp.ne.s32.totalorder %s96, %s97
    %p111 = scmp.eq.s32.totalorder %s18, 3
    %p112 = por %p110, %p111
    %p114 = scmp.ne.s32.totalorder %s97, %s113
    %p115 = scmp.eq.s32.totalorder %s18, 0
    %p116 = por %p114, %p115
    %s117 = sadd.s32 %s20, 1
    %s118 = smul.u32 %s117, 8
    %p119 = scmp.lt.s32.totalorder %s118, 15
    %s120 = scalar_select %p119, %s118, 15
    %s121 = sadd.s32 %s27, 1
    %s122 = smul.u32 %s121, 8
    %p123 = scmp.lt.s32.totalorder %s122, 15
    %s124 = scalar_select %p123, %s122, 15
    %s125 = ssub.s32 %s19, %s31
    %s126 = ssub.s32 %s120, %s124
    %s127 = sor.u32 %s125, %s126
    %p128 = scmp.eq.s32.totalorder %s127, 0
    %s130 = sadd.s32 %s129, 1
    %s131 = scalar_select %p128, %s129, %s130
    %p134 = pneg %p128
    %p135 = scmp.eq.s32.totalorder %s12, 3
    %p136 = por %p134, %p135
    %p137 = scmp.ne.s32.totalorder %s129, %s132
    %p138 = scmp.eq.s32.totalorder %s12, 0
    %p139 = por %p137, %p138
    %p140 = scmp.ne.s32.totalorder %s129, %s132
    %p141 = scmp.eq.s32.totalorder %s17, 3
    %p142 = por %p140, %p141
    %p143 = scmp.ne.s32.totalorder %s132, %s133
    %p144 = scmp.eq.s32.totalorder %s17, 0
    %p145 = por %p143, %p144
    %p146 = scmp.ne.s32.totalorder %s132, %s133
    %p147 = scmp.eq.s32.totalorder %s18, 3
    %p148 = por %p146, %p147
    %p150 = scmp.ne.s32.totalorder %s133, %s149
    %p151 = scmp.eq.s32.totalorder %s18, 0
    %p152 = por %p150, %p151
    %s153 = ssub.s32 %s19, %s31
    %s154 = ssub.s32 %s20, %s27
    %s155 = sor.u32 %s153, %s154
    %p156 = scmp.eq.s32.totalorder %s155, 0
    %s158 = sadd.s32 %s157, 1
    %s159 = scalar_select %p156, %s157, %s158
    %p162 = pneg %p156
    %p163 = scmp.eq.s32.totalorder %s12, 3
    %p164 = por %p162, %p163
    %p165 = scmp.ne.s32.totalorder %s157, %s160
    %p166 = scmp.eq.s32.totalorder %s12, 0
    %p167 = por %p165, %p166
    %p168 = scmp.ne.s32.totalorder %s157, %s160
    %p169 = scmp.eq.s32.totalorder %s17, 3
    %p170 = por %p168, %p169
    %p171 = scmp.ne.s32.totalorder %s160, %s161
    %p172 = scmp.eq.s32.totalorder %s17, 0
    %p173 = por %p171, %p172
    %p174 = scmp.ne.s32.totalorder %s160, %s161
    %p175 = scmp.eq.s32.totalorder %s18, 3
    %p176 = por %p174, %p175
    %p178 = scmp.ne.s32.totalorder %s161, %s177
    %p179 = scmp.eq.s32.totalorder %s18, 0
    %p180 = por %p178, %p179
    %s181 = smul.u32 %s19, 2
    %s182 = sadd.s32 %s181, %s20
    %s183 = smul.u32 %s31, 2
    %s184 = sadd.s32 %s183, %s27
    %s185 = ssub.s32 %s182, %s184
    %p186 = scmp.eq.s32.totalorder %s185, 0
    %s188 = sadd.s32 %s187, 1
    %s189 = scalar_select %p186, %s187, %s188
    %p192 = pneg %p186
    %p193 = scmp.eq.s32.totalorder %s12, 3
    %p194 = por %p192, %p193
    %p195 = scmp.ne.s32.totalorder %s187, %s190
    %p196 = scmp.eq.s32.totalorder %s12, 0
    %p197 = por %p195, %p196
    %p198 = scmp.ne.s32.totalorder %s187, %s190
    %p199 = scmp.eq.s32.totalorder %s17, 3
    %p200 = por %p198, %p199
    %p201 = scmp.ne.s32.totalorder %s190, %s191
    %p202 = scmp.eq.s32.totalorder %s17, 0
    %p203 = por %p201, %p202
    %p204 = scmp.ne.s32.totalorder %s190, %s191
    %p205 = scmp.eq.s32.totalorder %s18, 3
    %p206 = por %p204, %p205
    %p208 = scmp.ne.s32.totalorder %s191, %s207
    %p209 = scmp.eq.s32.totalorder %s18, 0
    %p210 = por %p208, %p209
    %p211 = scmp.le.s32.totalorder 1, %s12
    %p212 = scmp.lt.s32.totalorder %s12, 5
    %p213 = pnand %p211, %p212
    %p214 = pneg %p213
    // Predicated region
    $region9: #{double_conv.2} parent=5 // pred_check
      _
    $region10: #{double_conv.2} parent=5 // pred_check_branch
      %216 = sbr.rel (%p213) target = $region12
    $region11: #{double_conv.2} parent=5 // pred_region
      %s217 = ssub.s32 %s12, 1
      // Predicated region
      $region13: #{double_conv.2} parent=11 // pred_check
        %p218 = pneg %p45
      $region14: #{double_conv.2} parent=11 // pred_check_branch
        %220 = sbr.rel (%p218) target = $region16
      $region15: #{double_conv.2} parent=11 // pred_region
        _
      $region16: #{double_conv.2} parent=11 // pred_fallthru
        _
    $region12: #{double_conv.2} parent=5 // pred_fallthru
      _
    %p221 = scmp.lt.s32.totalorder %s12, 4
    // Predicated region
    $region17: #{double_conv.2} parent=5 // pred_check
      %p222 = pneg %p221
    $region18: #{double_conv.2} parent=5 // pred_check_branch
      %224 = sbr.rel (%p222) target = $region20
    $region19: #{double_conv.2} parent=5 // pred_region
      // Predicated region
      $region21: #{double_conv.2} parent=19 // pred_check
        %p225 = pneg %p75
      $region22: #{double_conv.2} parent=19 // pred_check_branch
        %227 = sbr.rel (%p225) target = $region24
      $region23: #{double_conv.2} parent=19 // pred_region
        %s228 = smul.u32 %s20, 8
        %s229 = ssub.s32 %s228, 1
        %p230 = scmp.gt.s32.totalorder %s229, 0
        %s231 = scalar_select %p230, %s229, 0
        %p232 = scmp.lt.s32.totalorder %s19, 1
        %s233 = scalar_select %p232, %s19, 1
        %p234 = scmp.lt.s32.totalorder %s231, 15
        %s235 = scalar_select %p234, %s231, 15
        %s236 = smul.addr %s235, 2
        %s237 = smul.addr %s233, 32
        %s238 = sadd.s32 %s236, %s237
        %s239 = smul.addr %s238, 8
        %s240 = scalar_lea.vmem %s1, %s239
        %s241 = smul.u32 %s20, 8
        %s242 = ssub.s32 %s241, 1
        %p243 = scmp.gt.s32.totalorder %s242, 0
        %s244 = scalar_select %p243, %s242, 0
      $region24: #{double_conv.2} parent=19 // pred_fallthru
        _
      // Predicated region
      $region25: #{double_conv.2} parent=19 // pred_check
        %p245 = pneg %p103
      $region26: #{double_conv.2} parent=19 // pred_check_branch
        %247 = sbr.rel (%p245) target = $region28
      $region27: #{double_conv.2} parent=19 // pred_region
        %s248 = smul.u32 8, %s20
        %p249 = scmp.lt.s32.totalorder %s19, 1
        %s250 = scalar_select %p249, %s19, 1
        %p251 = scmp.lt.s32.totalorder %s248, 15
        %s252 = scalar_select %p251, %s248, 15
        %s253 = smul.addr %s252, 2
        %s254 = smul.addr %s250, 32
        %s255 = sadd.s32 %s253, %s254
        %s256 = smul.addr %s255, 8
        %s257 = scalar_lea.vmem %s2, %s256
        %s258 = smul.u32 8, %s20
      $region28: #{double_conv.2} parent=19 // pred_fallthru
        _
      // Predicated region
      $region29: #{double_conv.2} parent=19 // pred_check
        %p259 = pneg %p139
      $region30: #{double_conv.2} parent=19 // pred_check_branch
        %261 = sbr.rel (%p259) target = $region32
      $region31: #{double_conv.2} parent=19 // pred_region
        %s262 = sadd.s32 %s20, 1
        %s263 = smul.u32 %s262, 8
        %p264 = scmp.lt.s32.totalorder %s263, 15
        %s265 = scalar_select %p264, %s263, 15
        %p266 = scmp.lt.s32.totalorder %s19, 1
        %s267 = scalar_select %p266, %s19, 1
        %p268 = scmp.lt.s32.totalorder %s265, 15
        %s269 = scalar_select %p268, %s265, 15
        %s270 = smul.addr %s269, 2
        %s271 = smul.addr %s267, 32
        %s272 = sadd.s32 %s270, %s271
        %s273 = smul.addr %s272, 8
        %s274 = scalar_lea.vmem %s3, %s273
        %s275 = sadd.s32 %s20, 1
        %s276 = smul.u32 %s275, 8
        %p277 = scmp.lt.s32.totalorder %s276, 15
        %s278 = scalar_select %p277, %s276, 15
      $region32: #{double_conv.2} parent=19 // pred_fallthru
        _
    $region20: #{double_conv.2} parent=5 // pred_fallthru
      _
    %p279 = scmp.le.s32.totalorder 1, %s12
    %p280 = scmp.lt.s32.totalorder %s12, 5
    %p281 = pnand %p279, %p280
    %p282 = pneg %p281
    // Predicated region
    $region33: #{double_conv.2} parent=5 // pred_check
      _
    $region34: #{double_conv.2} parent=5 // pred_check_branch
      %284 = sbr.rel (%p281) target = $region36
    $region35: #{double_conv.2} parent=5 // pred_region
      %s285 = ssub.s32 %s12, 1
      %p286 = pneg %p45
      %p287 = pneg %p42
      %s288 = smul.u32 %s22, 8
      %s289 = ssub.s32 %s288, 1
      %p290 = scmp.gt.s32.totalorder %s289, 0
      %s291 = scalar_select %p290, %s289, 0
      %p292 = scmp.lt.s32.totalorder %s21, 1
      %s293 = scalar_select %p292, %s21, 1
      %p294 = scmp.lt.s32.totalorder %s291, 15
      %s295 = scalar_select %p294, %s291, 15
      %s296 = smul.addr %s295, 2
      %s297 = smul.addr %s293, 32
      %s298 = sadd.s32 %s296, %s297
      %s299 = smul.addr %s298, 8
      %s300 = scalar_lea.vmem %s1, %s299
      %p301 = pneg %p81
      %p302 = pneg %p78
      %s303 = smul.u32 8, %s22
      %p304 = scmp.lt.s32.totalorder %s21, 1
      %s305 = scalar_select %p304, %s21, 1
      %p306 = scmp.lt.s32.totalorder %s303, 15
      %s307 = scalar_select %p306, %s303, 15
      %s308 = smul.addr %s307, 2
      %s309 = smul.addr %s305, 32
      %s310 = sadd.s32 %s308, %s309
      %s311 = smul.addr %s310, 8
      %s312 = scalar_lea.vmem %s2, %s311
      %p313 = pneg %p109
      %p314 = pneg %p106
      %s315 = sadd.s32 %s22, 1
      %s316 = smul.u32 %s315, 8
      %p317 = scmp.lt.s32.totalorder %s316, 15
      %s318 = scalar_select %p317, %s316, 15
      %p319 = scmp.lt.s32.totalorder %s21, 1
      %s320 = scalar_select %p319, %s21, 1
      %p321 = scmp.lt.s32.totalorder %s318, 15
      %s322 = scalar_select %p321, %s318, 15
      %s323 = smul.addr %s322, 2
      %s324 = smul.addr %s320, 32
      %s325 = sadd.s32 %s323, %s324
      %s326 = smul.addr %s325, 8
      %s327 = scalar_lea.vmem %s3, %s326
      %p328 = pneg %p145
      %p329 = pneg %p142
      %p330 = pneg %p173
      %p331 = pneg %p170
      %s332 = smul.u32 8, %s22
      %p333 = scmp.lt.s32.totalorder %s21, 1
      %s334 = scalar_select %p333, %s21, 1
      %p335 = scmp.lt.s32.totalorder %s332, 15
      %s336 = scalar_select %p335, %s332, 15
      %s337 = smul.addr %s336, 2
      %s338 = smul.addr %s334, 32
      %s339 = sadd.s32 %s337, %s338
      %s340 = smul.addr %s339, 8
      %s341 = scalar_lea.vmem %s4, %s340
      %p342 = pneg %p203
      %p343 = pneg %p200
      %s344 = smul.u32 %s21, 2
      %s345 = sadd.s32 %s344, %s22
      %p346 = scmp.lt.s32.totalorder %s345, 3
      %s347 = scalar_select %p346, %s345, 3
      %s348 = smul.addr %s347, 2
      %s349 = scalar_lea.vmem %s5, %s348
      %s350 = smul.u32 %s22, 8
      %s351 = ssub.s32 %s350, 1
      %p352 = scmp.gt.s32.totalorder %s351, 0
      %s353 = scalar_select %p352, %s351, 0
      %p354 = scmp.lt.s32.totalorder %s21, 1
      %s355 = scalar_select %p354, %s21, 1
      %p356 = scmp.lt.s32.totalorder %s353, 15
      %s357 = scalar_select %p356, %s353, 15
      %s358 = smul.addr %s357, 2
      %s359 = smul.addr %s355, 32
      %s360 = sadd.s32 %s358, %s359
      %s361 = smul.addr %s360, 8
      %s362 = scalar_lea.vmem %s1, %s361
      %s363 = smul.u32 %s22, 8
      %s364 = ssub.s32 %s363, 1
      %p365 = scmp.gt.s32.totalorder %s364, 0
      %s366 = scalar_select %p365, %s364, 0
      %s367 = smul.u32 8, %s22
      %p368 = scmp.lt.s32.totalorder %s21, 1
      %s369 = scalar_select %p368, %s21, 1
      %p370 = scmp.lt.s32.totalorder %s367, 15
      %s371 = scalar_select %p370, %s367, 15
      %s372 = smul.addr %s371, 2
      %s373 = smul.addr %s369, 32
      %s374 = sadd.s32 %s372, %s373
      %s375 = smul.addr %s374, 8
      %s376 = scalar_lea.vmem %s2, %s375
      %s377 = smul.u32 8, %s22
      %s378 = sadd.s32 %s22, 1
      %s379 = smul.u32 %s378, 8
      %p380 = scmp.lt.s32.totalorder %s379, 15
      %s381 = scalar_select %p380, %s379, 15
      %p382 = scmp.lt.s32.totalorder %s21, 1
      %s383 = scalar_select %p382, %s21, 1
      %p384 = scmp.lt.s32.totalorder %s381, 15
      %s385 = scalar_select %p384, %s381, 15
      %s386 = smul.addr %s385, 2
      %s387 = smul.addr %s383, 32
      %s388 = sadd.s32 %s386, %s387
      %s389 = smul.addr %s388, 8
      %s390 = scalar_lea.vmem %s3, %s389
      %s391 = sadd.s32 %s22, 1
      %s392 = smul.u32 %s391, 8
      %p393 = scmp.lt.s32.totalorder %s392, 15
      %s394 = scalar_select %p393, %s392, 15
      %s395 = smul.u32 8, %s22
      %p396 = scmp.lt.s32.totalorder %s21, 1
      %s397 = scalar_select %p396, %s21, 1
      %p398 = scmp.lt.s32.totalorder %s395, 15
      %s399 = scalar_select %p398, %s395, 15
      %s400 = smul.addr %s399, 2
      %s401 = smul.addr %s397, 32
      %s402 = sadd.s32 %s400, %s401
      %s403 = smul.addr %s402, 8
      %s404 = scalar_lea.vmem %s4, %s403
      %s405 = smul.u32 8, %s22
      %s406 = smul.u32 %s21, 2
      %s407 = sadd.s32 %s406, %s22
      %p408 = scmp.lt.s32.totalorder %s407, 3
      %s409 = scalar_select %p408, %s407, 3
      %s410 = smul.addr %s409, 2
      %s411 = scalar_lea.vmem %s5, %s410
      %s412 = smul.u32 %s21, 2
      %s413 = sadd.s32 %s412, %s22
      %v414 = vld [vmem:[%s362] sm:$0xff]
      %v415 = vld [vmem:[%s362 + $0x8] sm:$0xff]
      %v416 = vld [vmem:[%s376] sm:$0xff]
      %v417 = vld [vmem:[%s376 + $0x8] sm:$0xff]
      %v418 = vld [vmem:[%s376 + $0x10] sm:$0xff]
      %v419 = vld [vmem:[%s376 + $0x18] sm:$0xff]
      %v420 = vld [vmem:[%s376 + $0x20] sm:$0xff]
      %v421 = vld [vmem:[%s376 + $0x28] sm:$0xff]
      %v422 = vld [vmem:[%s376 + $0x30] sm:$0xff]
      %v423 = vld [vmem:[%s376 + $0x38] sm:$0xff]
      %v424 = vld [vmem:[%s376 + $0x40] sm:$0xff]
      %v425 = vld [vmem:[%s376 + $0x48] sm:$0xff]
      %v426 = vld [vmem:[%s376 + $0x50] sm:$0xff]
      %v427 = vld [vmem:[%s376 + $0x58] sm:$0xff]
      %v428 = vld [vmem:[%s376 + $0x60] sm:$0xff]
      %v429 = vld [vmem:[%s376 + $0x68] sm:$0xff]
      %v430 = vld [vmem:[%s376 + $0x70] sm:$0xff]
      %v431 = vld [vmem:[%s376 + $0x78] sm:$0xff]
      %v432 = vld [vmem:[%s390] sm:$0xff]
      %v433 = vld [vmem:[%s390 + $0x8] sm:$0xff]
      %p434 = scmp.gt.s32.totalorder %s22, 0
      %s435 = scalar_select %p434, 1, 0
      %v436 = vstv %s435
      %vm437 = vcmp.eq.s32.totalorder %v436, 1
      %v438 = vsel %vm437, %v414, 0.0
      %v439 = vsel %vm437, %v415, 0.0
      %p440 = scmp.lt.s32.totalorder %s22, 1
      %s441 = scalar_select %p440, 1, 0
      %v442 = vstv %s441
      %vm443 = vcmp.eq.s32.totalorder %v442, 1
      %v444 = vsel %vm443, %v432, 0.0
      %v445 = vsel %vm443, %v433, 0.0
      %vm466 = vcmask 1040384
      %v467 = vrot.slane %v438, 7
      %v468 = vrot.slane %v439, 7
      %v469 = vsel %vm466, %v467, %v468
      %v470 = vrot.slane %v416, 7
      %v471 = vrot.slane %v417, 7
      %v472 = vsel %vm466, %v470, %v471
      %v473 = vrot.slane %v418, 7
      %v474 = vrot.slane %v419, 7
      %v475 = vsel %vm466, %v473, %v474
      %v476 = vrot.slane %v420, 7
      %v477 = vrot.slane %v421, 7
      %v478 = vsel %vm466, %v476, %v477
      %v479 = vrot.slane %v422, 7
      %v480 = vrot.slane %v423, 7
      %v481 = vsel %vm466, %v479, %v480
      %v482 = vrot.slane %v424, 7
      %v483 = vrot.slane %v425, 7
      %v484 = vsel %vm466, %v482, %v483
      %v485 = vrot.slane %v426, 7
      %v486 = vrot.slane %v427, 7
      %v487 = vsel %vm466, %v485, %v486
      %v488 = vrot.slane %v428, 7
      %v489 = vrot.slane %v429, 7
      %v490 = vsel %vm466, %v488, %v489
      %v491 = vrot.slane %v430, 7
      %v492 = vrot.slane %v431, 7
      %v493 = vsel %vm466, %v491, %v492
      %v494 = vrot.slane %v444, 7
      %v495 = vrot.slane %v445, 7
      %v496 = vsel %vm466, %v494, %v495
      %v517 = vsel %vm466, 0.0, %v467
      %v518 = vsel %vm466, 0.0, %v470
      %v519 = vsel %vm466, 0.0, %v473
      %v520 = vsel %vm466, 0.0, %v476
      %v521 = vsel %vm466, 0.0, %v479
      %v522 = vsel %vm466, 0.0, %v482
      %v523 = vsel %vm466, 0.0, %v485
      %v524 = vsel %vm466, 0.0, %v488
      %v525 = vsel %vm466, 0.0, %v491
      %v526 = vsel %vm466, 0.0, %v494
      %v527 = vsel %vm466, %v468, 0.0
      %v528 = vsel %vm466, %v471, 0.0
      %v529 = vsel %vm466, %v474, 0.0
      %v530 = vsel %vm466, %v477, 0.0
      %v531 = vsel %vm466, %v480, 0.0
      %v532 = vsel %vm466, %v483, 0.0
      %v533 = vsel %vm466, %v486, 0.0
      %v534 = vsel %vm466, %v489, 0.0
      %v535 = vsel %vm466, %v492, 0.0
      %v536 = vsel %vm466, %v495, 0.0
      %v537 = vld [vmem:[%s0] sm:$0xf]
      %vm554 = vcmask 1046528
      %v555 = vrot.slane %v517, 1
      %v556 = vrot.slane %v469, 1
      %v557 = vsel %vm554, %v555, %v556
      %v558 = vrot.slane %v527, 1
      %v559 = vsel %vm554, %v556, %v558
      %v560 = vrot.slane %v518, 1
      %v561 = vrot.slane %v472, 1
      %v562 = vsel %vm554, %v560, %v561
      %v563 = vrot.slane %v528, 1
      %v564 = vsel %vm554, %v561, %v563
      %v565 = vrot.slane %v519, 1
      %v566 = vrot.slane %v475, 1
      %v567 = vsel %vm554, %v565, %v566
      %v568 = vrot.slane %v529, 1
      %v569 = vsel %vm554, %v566, %v568
      %v570 = vrot.slane %v520, 1
      %v571 = vrot.slane %v478, 1
      %v572 = vsel %vm554, %v570, %v571
      %v573 = vrot.slane %v530, 1
      %v574 = vsel %vm554, %v571, %v573
      %v575 = vrot.slane %v521, 1
      %v576 = vrot.slane %v481, 1
      %v577 = vsel %vm554, %v575, %v576
      %v578 = vrot.slane %v531, 1
      %v579 = vsel %vm554, %v576, %v578
      %v580 = vrot.slane %v522, 1
      %v581 = vrot.slane %v484, 1
      %v582 = vsel %vm554, %v580, %v581
      %v583 = vrot.slane %v532, 1
      %v584 = vsel %vm554, %v581, %v583
      %v585 = vrot.slane %v523, 1
      %v586 = vrot.slane %v487, 1
      %v587 = vsel %vm554, %v585, %v586
      %v588 = vrot.slane %v533, 1
      %v589 = vsel %vm554, %v586, %v588
      %v590 = vrot.slane %v524, 1
      %v591 = vrot.slane %v490, 1
      %v592 = vsel %vm554, %v590, %v591
      %v593 = vrot.slane %v534, 1
      %v594 = vsel %vm554, %v591, %v593
      %s595 = scalar_lea.vmem %s0, 4
      %v596 = vld [vmem:[%s595] sm:$0xf]
      %vm597 = vcmask 31744
      %v598 = vsel %vm597, %v557, 0
      %v600 = vsel %vm597, %v559, 0
      %v602 = vsel %vm597, %v562, 0
      %v604 = vsel %vm597, %v564, 0
      %v606 = vsel %vm597, %v567, 0
      %v608 = vsel %vm597, %v569, 0
      %v610 = vsel %vm597, %v572, 0
      %v612 = vsel %vm597, %v574, 0
      %v614 = vsel %vm597, %v577, 0
      %v616 = vsel %vm597, %v579, 0
      %v618 = vsel %vm597, %v582, 0
      %v620 = vsel %vm597, %v584, 0
      %v622 = vsel %vm597, %v587, 0
      %v624 = vsel %vm597, %v589, 0
      %v626 = vsel %vm597, %v592, 0
      %v628 = vsel %vm597, %v594, 0
      %vm630 = vcmask 1043456
      %v632 = vsel %vm630, %v596, 0
      %634 = vmatpush.msra.mxu0 0.0
      %635 = vmatpush.msra.mxu0 0.0
      %636 = vmatpush.msra.mxu0 0.0
      %637 = vmatpush.msra.mxu0 0.0
      %638 = vmatpush.msra.mxu0 0.0
      %639 = vmatpush.msra.mxu0 0.0
      %640 = vmatpush.msra.mxu0 0.0
      %641 = vmatpush.msra.mxu0 0.0
      %642 = vmatpush.msra.mxu0 0.0
      %643 = vmatpush.msra.mxu0 0.0
      %644 = vmatpush.msra.mxu0 0.0
      %645 = vmatpush.msra.mxu0 0.0
      %646 = vmatpush.msra.mxu0 0.0
      %647 = vmatpush.msra.mxu0 0.0
      %648 = vmatpush.msra.mxu0 0.0
      %649 = vmatpush.msra.mxu0 %v632
      %650 = vmatmul.f32.gmra.mxu0 %v598
      %v651 = vpop.f32.mrf.mxu0
      %v652 = vadd.f32 0.0, %v651
      %653 = vmatmul.f32.gmra.mxu0 %v600
      %v654 = vpop.f32.mrf.mxu0
      %v655 = vadd.f32 0.0, %v654
      %656 = vmatmul.f32.gmra.mxu0 %v602
      %v657 = vpop.f32.mrf.mxu0
      %v658 = vadd.f32 0.0, %v657
      %659 = vmatmul.f32.gmra.mxu0 %v604
      %v660 = vpop.f32.mrf.mxu0
      %v661 = vadd.f32 0.0, %v660
      %662 = vmatmul.f32.gmra.mxu0 %v606
      %v663 = vpop.f32.mrf.mxu0
      %v664 = vadd.f32 0.0, %v663
      %665 = vmatmul.f32.gmra.mxu0 %v608
      %v666 = vpop.f32.mrf.mxu0
      %v667 = vadd.f32 0.0, %v666
      %668 = vmatmul.f32.gmra.mxu0 %v610
      %v669 = vpop.f32.mrf.mxu0
      %v670 = vadd.f32 0.0, %v669
      %671 = vmatmul.f32.gmra.mxu0 %v612
      %v672 = vpop.f32.mrf.mxu0
      %v673 = vadd.f32 0.0, %v672
      %674 = vmatmul.f32.gmra.mxu0 %v614
      %v675 = vpop.f32.mrf.mxu0
      %v676 = vadd.f32 0.0, %v675
      %677 = vmatmul.f32.gmra.mxu0 %v616
      %v678 = vpop.f32.mrf.mxu0
      %v679 = vadd.f32 0.0, %v678
      %680 = vmatmul.f32.gmra.mxu0 %v618
      %v681 = vpop.f32.mrf.mxu0
      %v682 = vadd.f32 0.0, %v681
      %683 = vmatmul.f32.gmra.mxu0 %v620
      %v684 = vpop.f32.mrf.mxu0
      %v685 = vadd.f32 0.0, %v684
      %686 = vmatmul.f32.gmra.mxu0 %v622
      %v687 = vpop.f32.mrf.mxu0
      %v688 = vadd.f32 0.0, %v687
      %689 = vmatmul.f32.gmra.mxu0 %v624
      %v690 = vpop.f32.mrf.mxu0
      %v691 = vadd.f32 0.0, %v690
      %692 = vmatmul.f32.gmra.mxu0 %v626
      %v693 = vpop.f32.mrf.mxu0
      %v694 = vadd.f32 0.0, %v693
      %695 = vmatmul.f32.gmra.mxu0 %v628
      %v696 = vpop.f32.mrf.mxu0
      %v697 = vadd.f32 0.0, %v696
      %698 = vdwg.mxu0
      %v699 = vsel %vm597, %v517, 0
      %v701 = vsel %vm597, %v469, 0
      %v703 = vsel %vm597, %v518, 0
      %v705 = vsel %vm597, %v472, 0
      %v707 = vsel %vm597, %v519, 0
      %v709 = vsel %vm597, %v475, 0
      %v711 = vsel %vm597, %v520, 0
      %v713 = vsel %vm597, %v478, 0
      %v715 = vsel %vm597, %v521, 0
      %v717 = vsel %vm597, %v481, 0
      %v719 = vsel %vm597, %v522, 0
      %v721 = vsel %vm597, %v484, 0
      %v723 = vsel %vm597, %v523, 0
      %v725 = vsel %vm597, %v487, 0
      %v727 = vsel %vm597, %v524, 0
      %v729 = vsel %vm597, %v490, 0
      %v732 = vsel %vm630, %v537, 0
      %734 = vmatpush.msra.mxu0 0.0
      %735 = vmatpush.msra.mxu0 0.0
      %736 = vmatpush.msra.mxu0 0.0
      %737 = vmatpush.msra.mxu0 0.0
      %738 = vmatpush.msra.mxu0 0.0
      %739 = vmatpush.msra.mxu0 0.0
      %740 = vmatpush.msra.mxu0 0.0
      %741 = vmatpush.msra.mxu0 0.0
      %742 = vmatpush.msra.mxu0 0.0
      %743 = vmatpush.msra.mxu0 0.0
      %744 = vmatpush.msra.mxu0 0.0
      %745 = vmatpush.msra.mxu0 0.0
      %746 = vmatpush.msra.mxu0 0.0
      %747 = vmatpush.msra.mxu0 0.0
      %748 = vmatpush.msra.mxu0 0.0
      %749 = vmatpush.msra.mxu0 %v732
      %750 = vmatmul.f32.gmra.mxu0 %v699
      %v751 = vpop.f32.mrf.mxu0
      %v752 = vadd.f32 %v652, %v751
      %753 = vmatmul.f32.gmra.mxu0 %v701
      %v754 = vpop.f32.mrf.mxu0
      %v755 = vadd.f32 %v655, %v754
      %756 = vmatmul.f32.gmra.mxu0 %v703
      %v757 = vpop.f32.mrf.mxu0
      %v758 = vadd.f32 %v658, %v757
      %759 = vmatmul.f32.gmra.mxu0 %v705
      %v760 = vpop.f32.mrf.mxu0
      %v761 = vadd.f32 %v661, %v760
      %762 = vmatmul.f32.gmra.mxu0 %v707
      %v763 = vpop.f32.mrf.mxu0
      %v764 = vadd.f32 %v664, %v763
      %765 = vmatmul.f32.gmra.mxu0 %v709
      %v766 = vpop.f32.mrf.mxu0
      %v767 = vadd.f32 %v667, %v766
      %768 = vmatmul.f32.gmra.mxu0 %v711
      %v769 = vpop.f32.mrf.mxu0
      %v770 = vadd.f32 %v670, %v769
      %771 = vmatmul.f32.gmra.mxu0 %v713
      %v772 = vpop.f32.mrf.mxu0
      %v773 = vadd.f32 %v673, %v772
      %774 = vmatmul.f32.gmra.mxu0 %v715
      %v775 = vpop.f32.mrf.mxu0
      %v776 = vadd.f32 %v676, %v775
      %777 = vmatmul.f32.gmra.mxu0 %v717
      %v778 = vpop.f32.mrf.mxu0
      %v779 = vadd.f32 %v679, %v778
      %780 = vmatmul.f32.gmra.mxu0 %v719
      %v781 = vpop.f32.mrf.mxu0
      %v782 = vadd.f32 %v682, %v781
      %783 = vmatmul.f32.gmra.mxu0 %v721
      %v784 = vpop.f32.mrf.mxu0
      %v785 = vadd.f32 %v685, %v784
      %786 = vmatmul.f32.gmra.mxu0 %v723
      %v787 = vpop.f32.mrf.mxu0
      %v788 = vadd.f32 %v688, %v787
      %789 = vmatmul.f32.gmra.mxu0 %v725
      %v790 = vpop.f32.mrf.mxu0
      %v791 = vadd.f32 %v691, %v790
      %792 = vmatmul.f32.gmra.mxu0 %v727
      %v793 = vpop.f32.mrf.mxu0
      %v794 = vadd.f32 %v694, %v793
      %795 = vmatmul.f32.gmra.mxu0 %v729
      %v796 = vpop.f32.mrf.mxu0
      %v797 = vadd.f32 %v697, %v796
      %798 = vdwg.mxu0
      %vm799 = vcmask 1045504
      %v800 = vrot.slane %v517, 2
      %v801 = vrot.slane %v469, 2
      %v802 = vsel %vm799, %v800, %v801
      %v803 = vrot.slane %v527, 2
      %v804 = vsel %vm799, %v801, %v803
      %v805 = vrot.slane %v518, 2
      %v806 = vrot.slane %v472, 2
      %v807 = vsel %vm799, %v805, %v806
      %v808 = vrot.slane %v528, 2
      %v809 = vsel %vm799, %v806, %v808
      %v810 = vrot.slane %v519, 2
      %v811 = vrot.slane %v475, 2
      %v812 = vsel %vm799, %v810, %v811
      %v813 = vrot.slane %v529, 2
      %v814 = vsel %vm799, %v811, %v813
      %v815 = vrot.slane %v520, 2
      %v816 = vrot.slane %v478, 2
      %v817 = vsel %vm799, %v815, %v816
      %v818 = vrot.slane %v530, 2
      %v819 = vsel %vm799, %v816, %v818
      %v820 = vrot.slane %v521, 2
      %v821 = vrot.slane %v481, 2
      %v822 = vsel %vm799, %v820, %v821
      %v823 = vrot.slane %v531, 2
      %v824 = vsel %vm799, %v821, %v823
      %v825 = vrot.slane %v522, 2
      %v826 = vrot.slane %v484, 2
      %v827 = vsel %vm799, %v825, %v826
      %v828 = vrot.slane %v532, 2
      %v829 = vsel %vm799, %v826, %v828
      %v830 = vrot.slane %v523, 2
      %v831 = vrot.slane %v487, 2
      %v832 = vsel %vm799, %v830, %v831
      %v833 = vrot.slane %v533, 2
      %v834 = vsel %vm799, %v831, %v833
      %v835 = vrot.slane %v524, 2
      %v836 = vrot.slane %v490, 2
      %v837 = vsel %vm799, %v835, %v836
      %v838 = vrot.slane %v534, 2
      %v839 = vsel %vm799, %v836, %v838
      %s840 = scalar_lea.vmem %s0, 8
      %v841 = vld [vmem:[%s840] sm:$0xf]
      %v842 = vsel %vm597, %v802, 0
      %v844 = vsel %vm597, %v804, 0
      %v846 = vsel %vm597, %v807, 0
      %v848 = vsel %vm597, %v809, 0
      %v850 = vsel %vm597, %v812, 0
      %v852 = vsel %vm597, %v814, 0
      %v854 = vsel %vm597, %v817, 0
      %v856 = vsel %vm597, %v819, 0
      %v858 = vsel %vm597, %v822, 0
      %v860 = vsel %vm597, %v824, 0
      %v862 = vsel %vm597, %v827, 0
      %v864 = vsel %vm597, %v829, 0
      %v866 = vsel %vm597, %v832, 0
      %v868 = vsel %vm597, %v834, 0
      %v870 = vsel %vm597, %v837, 0
      %v872 = vsel %vm597, %v839, 0
      %v875 = vsel %vm630, %v841, 0
      %877 = vmatpush.msra.mxu0 0.0
      %878 = vmatpush.msra.mxu0 0.0
      %879 = vmatpush.msra.mxu0 0.0
      %880 = vmatpush.msra.mxu0 0.0
      %881 = vmatpush.msra.mxu0 0.0
      %882 = vmatpush.msra.mxu0 0.0
      %883 = vmatpush.msra.mxu0 0.0
      %884 = vmatpush.msra.mxu0 0.0
      %885 = vmatpush.msra.mxu0 0.0
      %886 = vmatpush.msra.mxu0 0.0
      %887 = vmatpush.msra.mxu0 0.0
      %888 = vmatpush.msra.mxu0 0.0
      %889 = vmatpush.msra.mxu0 0.0
      %890 = vmatpush.msra.mxu0 0.0
      %891 = vmatpush.msra.mxu0 0.0
      %892 = vmatpush.msra.mxu0 %v875
      %893 = vmatmul.f32.gmra.mxu0 %v842
      %v894 = vpop.f32.mrf.mxu0
      %v895 = vadd.f32 0.0, %v894
      %896 = vmatmul.f32.gmra.mxu0 %v844
      %v897 = vpop.f32.mrf.mxu0
      %v898 = vadd.f32 0.0, %v897
      %899 = vmatmul.f32.gmra.mxu0 %v846
      %v900 = vpop.f32.mrf.mxu0
      %v901 = vadd.f32 0.0, %v900
      %902 = vmatmul.f32.gmra.mxu0 %v848
      %v903 = vpop.f32.mrf.mxu0
      %v904 = vadd.f32 0.0, %v903
      %905 = vmatmul.f32.gmra.mxu0 %v850
      %v906 = vpop.f32.mrf.mxu0
      %v907 = vadd.f32 0.0, %v906
      %908 = vmatmul.f32.gmra.mxu0 %v852
      %v909 = vpop.f32.mrf.mxu0
      %v910 = vadd.f32 0.0, %v909
      %911 = vmatmul.f32.gmra.mxu0 %v854
      %v912 = vpop.f32.mrf.mxu0
      %v913 = vadd.f32 0.0, %v912
      %914 = vmatmul.f32.gmra.mxu0 %v856
      %v915 = vpop.f32.mrf.mxu0
      %v916 = vadd.f32 0.0, %v915
      %917 = vmatmul.f32.gmra.mxu0 %v858
      %v918 = vpop.f32.mrf.mxu0
      %v919 = vadd.f32 0.0, %v918
      %920 = vmatmul.f32.gmra.mxu0 %v860
      %v921 = vpop.f32.mrf.mxu0
      %v922 = vadd.f32 0.0, %v921
      %923 = vmatmul.f32.gmra.mxu0 %v862
      %v924 = vpop.f32.mrf.mxu0
      %v925 = vadd.f32 0.0, %v924
      %926 = vmatmul.f32.gmra.mxu0 %v864
      %v927 = vpop.f32.mrf.mxu0
      %v928 = vadd.f32 0.0, %v927
      %929 = vmatmul.f32.gmra.mxu0 %v866
      %v930 = vpop.f32.mrf.mxu0
      %v931 = vadd.f32 0.0, %v930
      %932 = vmatmul.f32.gmra.mxu0 %v868
      %v933 = vpop.f32.mrf.mxu0
      %v934 = vadd.f32 0.0, %v933
      %935 = vmatmul.f32.gmra.mxu0 %v870
      %v936 = vpop.f32.mrf.mxu0
      %v937 = vadd.f32 0.0, %v936
      %938 = vmatmul.f32.gmra.mxu0 %v872
      %v939 = vpop.f32.mrf.mxu0
      %v940 = vadd.f32 0.0, %v939
      %941 = vdwg.mxu0
      %v942 = vadd.f32 %v752, %v895
      %v943 = vadd.f32 %v755, %v898
      %v944 = vadd.f32 %v758, %v901
      %v945 = vadd.f32 %v761, %v904
      %v946 = vadd.f32 %v764, %v907
      %v947 = vadd.f32 %v767, %v910
      %v948 = vadd.f32 %v770, %v913
      %v949 = vadd.f32 %v773, %v916
      %v950 = vadd.f32 %v776, %v919
      %v951 = vadd.f32 %v779, %v922
      %v952 = vadd.f32 %v782, %v925
      %v953 = vadd.f32 %v785, %v928
      %v954 = vadd.f32 %v788, %v931
      %v955 = vadd.f32 %v791, %v934
      %v956 = vadd.f32 %v794, %v937
      %v957 = vadd.f32 %v797, %v940
      %s958 = scalar_lea.vmem %s0, 12
      %v959 = vld [vmem:[%s958] sm:$0xf]
      %v961 = vsel %vm597, %v525, 0
      %v963 = vsel %vm597, %v493, 0
      %v966 = vsel %vm630, %v959, 0
      %968 = vmatpush.msra.mxu0 0.0
      %969 = vmatpush.msra.mxu0 0.0
      %970 = vmatpush.msra.mxu0 0.0
      %971 = vmatpush.msra.mxu0 0.0
      %972 = vmatpush.msra.mxu0 0.0
      %973 = vmatpush.msra.mxu0 0.0
      %974 = vmatpush.msra.mxu0 0.0
      %975 = vmatpush.msra.mxu0 0.0
      %976 = vmatpush.msra.mxu0 0.0
      %977 = vmatpush.msra.mxu0 0.0
      %978 = vmatpush.msra.mxu0 0.0
      %979 = vmatpush.msra.mxu0 0.0
      %980 = vmatpush.msra.mxu0 0.0
      %981 = vmatpush.msra.mxu0 0.0
      %982 = vmatpush.msra.mxu0 0.0
      %983 = vmatpush.msra.mxu0 %v966
      %984 = vmatmul.f32.gmra.mxu0 %v703
      %v985 = vpop.f32.mrf.mxu0
      %v986 = vadd.f32 0.0, %v985
      %987 = vmatmul.f32.gmra.mxu0 %v705
      %v988 = vpop.f32.mrf.mxu0
      %v989 = vadd.f32 0.0, %v988
      %990 = vmatmul.f32.gmra.mxu0 %v707
      %v991 = vpop.f32.mrf.mxu0
      %v992 = vadd.f32 0.0, %v991
      %993 = vmatmul.f32.gmra.mxu0 %v709
      %v994 = vpop.f32.mrf.mxu0
      %v995 = vadd.f32 0.0, %v994
      %996 = vmatmul.f32.gmra.mxu0 %v711
      %v997 = vpop.f32.mrf.mxu0
      %v998 = vadd.f32 0.0, %v997
      %999 = vmatmul.f32.gmra.mxu0 %v713
      %v1000 = vpop.f32.mrf.mxu0
      %v1001 = vadd.f32 0.0, %v1000
      %1002 = vmatmul.f32.gmra.mxu0 %v715
      %v1003 = vpop.f32.mrf.mxu0
      %v1004 = vadd.f32 0.0, %v1003
      %1005 = vmatmul.f32.gmra.mxu0 %v717
      %v1006 = vpop.f32.mrf.mxu0
      %v1007 = vadd.f32 0.0, %v1006
      %1008 = vmatmul.f32.gmra.mxu0 %v719
      %v1009 = vpop.f32.mrf.mxu0
      %v1010 = vadd.f32 0.0, %v1009
      %1011 = vmatmul.f32.gmra.mxu0 %v721
      %v1012 = vpop.f32.mrf.mxu0
      %v1013 = vadd.f32 0.0, %v1012
      %1014 = vmatmul.f32.gmra.mxu0 %v723
      %v1015 = vpop.f32.mrf.mxu0
      %v1016 = vadd.f32 0.0, %v1015
      %1017 = vmatmul.f32.gmra.mxu0 %v725
      %v1018 = vpop.f32.mrf.mxu0
      %v1019 = vadd.f32 0.0, %v1018
      %1020 = vmatmul.f32.gmra.mxu0 %v727
      %v1021 = vpop.f32.mrf.mxu0
      %v1022 = vadd.f32 0.0, %v1021
      %1023 = vmatmul.f32.gmra.mxu0 %v729
      %v1024 = vpop.f32.mrf.mxu0
      %v1025 = vadd.f32 0.0, %v1024
      %1026 = vmatmul.f32.gmra.mxu0 %v961
      %v1027 = vpop.f32.mrf.mxu0
      %v1028 = vadd.f32 0.0, %v1027
      %1029 = vmatmul.f32.gmra.mxu0 %v963
      %v1030 = vpop.f32.mrf.mxu0
      %v1031 = vadd.f32 0.0, %v1030
      %1032 = vdwg.mxu0
      %v1033 = vadd.f32 %v942, %v986
      %v1034 = vadd.f32 %v943, %v989
      %v1035 = vadd.f32 %v944, %v992
      %v1036 = vadd.f32 %v945, %v995
      %v1037 = vadd.f32 %v946, %v998
      %v1038 = vadd.f32 %v947, %v1001
      %v1039 = vadd.f32 %v948, %v1004
      %v1040 = vadd.f32 %v949, %v1007
      %v1041 = vadd.f32 %v950, %v1010
      %v1042 = vadd.f32 %v951, %v1013
      %v1043 = vadd.f32 %v952, %v1016
      %v1044 = vadd.f32 %v953, %v1019
      %v1045 = vadd.f32 %v954, %v1022
      %v1046 = vadd.f32 %v955, %v1025
      %v1047 = vadd.f32 %v956, %v1028
      %v1048 = vadd.f32 %v957, %v1031
      %v1050 = vrot.slane %v525, 1
      %v1051 = vrot.slane %v493, 1
      %v1052 = vsel %vm554, %v1050, %v1051
      %v1053 = vrot.slane %v535, 1
      %v1054 = vsel %vm554, %v1051, %v1053
      %s1055 = scalar_lea.vmem %s0, 16
      %v1056 = vld [vmem:[%s1055] sm:$0xf]
      %v1057 = vsel %vm597, %v1052, 0
      %v1059 = vsel %vm597, %v1054, 0
      %v1062 = vsel %vm630, %v1056, 0
      %1064 = vmatpush.msra.mxu0 0.0
      %1065 = vmatpush.msra.mxu0 0.0
      %1066 = vmatpush.msra.mxu0 0.0
      %1067 = vmatpush.msra.mxu0 0.0
      %1068 = vmatpush.msra.mxu0 0.0
      %1069 = vmatpush.msra.mxu0 0.0
      %1070 = vmatpush.msra.mxu0 0.0
      %1071 = vmatpush.msra.mxu0 0.0
      %1072 = vmatpush.msra.mxu0 0.0
      %1073 = vmatpush.msra.mxu0 0.0
      %1074 = vmatpush.msra.mxu0 0.0
      %1075 = vmatpush.msra.mxu0 0.0
      %1076 = vmatpush.msra.mxu0 0.0
      %1077 = vmatpush.msra.mxu0 0.0
      %1078 = vmatpush.msra.mxu0 0.0
      %1079 = vmatpush.msra.mxu0 %v1062
      %1080 = vmatmul.f32.gmra.mxu0 %v602
      %v1081 = vpop.f32.mrf.mxu0
      %v1082 = vadd.f32 0.0, %v1081
      %1083 = vmatmul.f32.gmra.mxu0 %v604
      %v1084 = vpop.f32.mrf.mxu0
      %v1085 = vadd.f32 0.0, %v1084
      %1086 = vmatmul.f32.gmra.mxu0 %v606
      %v1087 = vpop.f32.mrf.mxu0
      %v1088 = vadd.f32 0.0, %v1087
      %1089 = vmatmul.f32.gmra.mxu0 %v608
      %v1090 = vpop.f32.mrf.mxu0
      %v1091 = vadd.f32 0.0, %v1090
      %1092 = vmatmul.f32.gmra.mxu0 %v610
      %v1093 = vpop.f32.mrf.mxu0
      %v1094 = vadd.f32 0.0, %v1093
      %1095 = vmatmul.f32.gmra.mxu0 %v612
      %v1096 = vpop.f32.mrf.mxu0
      %v1097 = vadd.f32 0.0, %v1096
      %1098 = vmatmul.f32.gmra.mxu0 %v614
      %v1099 = vpop.f32.mrf.mxu0
      %v1100 = vadd.f32 0.0, %v1099
      %1101 = vmatmul.f32.gmra.mxu0 %v616
      %v1102 = vpop.f32.mrf.mxu0
      %v1103 = vadd.f32 0.0, %v1102
      %1104 = vmatmul.f32.gmra.mxu0 %v618
      %v1105 = vpop.f32.mrf.mxu0
      %v1106 = vadd.f32 0.0, %v1105
      %1107 = vmatmul.f32.gmra.mxu0 %v620
      %v1108 = vpop.f32.mrf.mxu0
      %v1109 = vadd.f32 0.0, %v1108
      %1110 = vmatmul.f32.gmra.mxu0 %v622
      %v1111 = vpop.f32.mrf.mxu0
      %v1112 = vadd.f32 0.0, %v1111
      %1113 = vmatmul.f32.gmra.mxu0 %v624
      %v1114 = vpop.f32.mrf.mxu0
      %v1115 = vadd.f32 0.0, %v1114
      %1116 = vmatmul.f32.gmra.mxu0 %v626
      %v1117 = vpop.f32.mrf.mxu0
      %v1118 = vadd.f32 0.0, %v1117
      %1119 = vmatmul.f32.gmra.mxu0 %v628
      %v1120 = vpop.f32.mrf.mxu0
      %v1121 = vadd.f32 0.0, %v1120
      %1122 = vmatmul.f32.gmra.mxu0 %v1057
      %v1123 = vpop.f32.mrf.mxu0
      %v1124 = vadd.f32 0.0, %v1123
      %1125 = vmatmul.f32.gmra.mxu0 %v1059
      %v1126 = vpop.f32.mrf.mxu0
      %v1127 = vadd.f32 0.0, %v1126
      %1128 = vdwg.mxu0
      %v1129 = vadd.f32 %v1033, %v1082
      %v1130 = vadd.f32 %v1034, %v1085
      %v1131 = vadd.f32 %v1035, %v1088
      %v1132 = vadd.f32 %v1036, %v1091
      %v1133 = vadd.f32 %v1037, %v1094
      %v1134 = vadd.f32 %v1038, %v1097
      %v1135 = vadd.f32 %v1039, %v1100
      %v1136 = vadd.f32 %v1040, %v1103
      %v1137 = vadd.f32 %v1041, %v1106
      %v1138 = vadd.f32 %v1042, %v1109
      %v1139 = vadd.f32 %v1043, %v1112
      %v1140 = vadd.f32 %v1044, %v1115
      %v1141 = vadd.f32 %v1045, %v1118
      %v1142 = vadd.f32 %v1046, %v1121
      %v1143 = vadd.f32 %v1047, %v1124
      %v1144 = vadd.f32 %v1048, %v1127
      %v1145 = vrot.slane %v525, 2
      %v1146 = vrot.slane %v493, 2
      %v1147 = vsel %vm799, %v1145, %v1146
      %v1148 = vrot.slane %v535, 2
      %v1149 = vsel %vm799, %v1146, %v1148
      %s1150 = scalar_lea.vmem %s0, 20
      %v1151 = vld [vmem:[%s1150] sm:$0xf]
      %v1152 = vsel %vm597, %v1147, 0
      %v1154 = vsel %vm597, %v1149, 0
      %v1157 = vsel %vm630, %v1151, 0
      %1159 = vmatpush.msra.mxu0 0.0
      %1160 = vmatpush.msra.mxu0 0.0
      %1161 = vmatpush.msra.mxu0 0.0
      %1162 = vmatpush.msra.mxu0 0.0
      %1163 = vmatpush.msra.mxu0 0.0
      %1164 = vmatpush.msra.mxu0 0.0
      %1165 = vmatpush.msra.mxu0 0.0
      %1166 = vmatpush.msra.mxu0 0.0
      %1167 = vmatpush.msra.mxu0 0.0
      %1168 = vmatpush.msra.mxu0 0.0
      %1169 = vmatpush.msra.mxu0 0.0
      %1170 = vmatpush.msra.mxu0 0.0
      %1171 = vmatpush.msra.mxu0 0.0
      %1172 = vmatpush.msra.mxu0 0.0
      %1173 = vmatpush.msra.mxu0 0.0
      %1174 = vmatpush.msra.mxu0 %v1157
      %1175 = vmatmul.f32.gmra.mxu0 %v846
      %v1176 = vpop.f32.mrf.mxu0
      %v1177 = vadd.f32 0.0, %v1176
      %1178 = vmatmul.f32.gmra.mxu0 %v848
      %v1179 = vpop.f32.mrf.mxu0
      %v1180 = vadd.f32 0.0, %v1179
      %1181 = vmatmul.f32.gmra.mxu0 %v850
      %v1182 = vpop.f32.mrf.mxu0
      %v1183 = vadd.f32 0.0, %v1182
      %1184 = vmatmul.f32.gmra.mxu0 %v852
      %v1185 = vpop.f32.mrf.mxu0
      %v1186 = vadd.f32 0.0, %v1185
      %1187 = vmatmul.f32.gmra.mxu0 %v854
      %v1188 = vpop.f32.mrf.mxu0
      %v1189 = vadd.f32 0.0, %v1188
      %1190 = vmatmul.f32.gmra.mxu0 %v856
      %v1191 = vpop.f32.mrf.mxu0
      %v1192 = vadd.f32 0.0, %v1191
      %1193 = vmatmul.f32.gmra.mxu0 %v858
      %v1194 = vpop.f32.mrf.mxu0
      %v1195 = vadd.f32 0.0, %v1194
      %1196 = vmatmul.f32.gmra.mxu0 %v860
      %v1197 = vpop.f32.mrf.mxu0
      %v1198 = vadd.f32 0.0, %v1197
      %1199 = vmatmul.f32.gmra.mxu0 %v862
      %v1200 = vpop.f32.mrf.mxu0
      %v1201 = vadd.f32 0.0, %v1200
      %1202 = vmatmul.f32.gmra.mxu0 %v864
      %v1203 = vpop.f32.mrf.mxu0
      %v1204 = vadd.f32 0.0, %v1203
      %1205 = vmatmul.f32.gmra.mxu0 %v866
      %v1206 = vpop.f32.mrf.mxu0
      %v1207 = vadd.f32 0.0, %v1206
      %1208 = vmatmul.f32.gmra.mxu0 %v868
      %v1209 = vpop.f32.mrf.mxu0
      %v1210 = vadd.f32 0.0, %v1209
      %1211 = vmatmul.f32.gmra.mxu0 %v870
      %v1212 = vpop.f32.mrf.mxu0
      %v1213 = vadd.f32 0.0, %v1212
      %1214 = vmatmul.f32.gmra.mxu0 %v872
      %v1215 = vpop.f32.mrf.mxu0
      %v1216 = vadd.f32 0.0, %v1215
      %1217 = vmatmul.f32.gmra.mxu0 %v1152
      %v1218 = vpop.f32.mrf.mxu0
      %v1219 = vadd.f32 0.0, %v1218
      %1220 = vmatmul.f32.gmra.mxu0 %v1154
      %v1221 = vpop.f32.mrf.mxu0
      %v1222 = vadd.f32 0.0, %v1221
      %1223 = vdwg.mxu0
      %v1224 = vadd.f32 %v1129, %v1177
      %v1225 = vadd.f32 %v1130, %v1180
      %v1226 = vadd.f32 %v1131, %v1183
      %v1227 = vadd.f32 %v1132, %v1186
      %v1228 = vadd.f32 %v1133, %v1189
      %v1229 = vadd.f32 %v1134, %v1192
      %v1230 = vadd.f32 %v1135, %v1195
      %v1231 = vadd.f32 %v1136, %v1198
      %v1232 = vadd.f32 %v1137, %v1201
      %v1233 = vadd.f32 %v1138, %v1204
      %v1234 = vadd.f32 %v1139, %v1207
      %v1235 = vadd.f32 %v1140, %v1210
      %v1236 = vadd.f32 %v1141, %v1213
      %v1237 = vadd.f32 %v1142, %v1216
      %v1238 = vadd.f32 %v1143, %v1219
      %v1239 = vadd.f32 %v1144, %v1222
      %s1240 = scalar_lea.vmem %s0, 24
      %v1241 = vld [vmem:[%s1240] sm:$0xf]
      %v1243 = vsel %vm597, %v526, 0
      %v1245 = vsel %vm597, %v496, 0
      %v1248 = vsel %vm630, %v1241, 0
      %1250 = vmatpush.msra.mxu0 0.0
      %1251 = vmatpush.msra.mxu0 0.0
      %1252 = vmatpush.msra.mxu0 0.0
      %1253 = vmatpush.msra.mxu0 0.0
      %1254 = vmatpush.msra.mxu0 0.0
      %1255 = vmatpush.msra.mxu0 0.0
      %1256 = vmatpush.msra.mxu0 0.0
      %1257 = vmatpush.msra.mxu0 0.0
      %1258 = vmatpush.msra.mxu0 0.0
      %1259 = vmatpush.msra.mxu0 0.0
      %1260 = vmatpush.msra.mxu0 0.0
      %1261 = vmatpush.msra.mxu0 0.0
      %1262 = vmatpush.msra.mxu0 0.0
      %1263 = vmatpush.msra.mxu0 0.0
      %1264 = vmatpush.msra.mxu0 0.0
      %1265 = vmatpush.msra.mxu0 %v1248
      %1266 = vmatmul.f32.gmra.mxu0 %v707
      %v1267 = vpop.f32.mrf.mxu0
      %v1268 = vadd.f32 0.0, %v1267
      %1269 = vmatmul.f32.gmra.mxu0 %v709
      %v1270 = vpop.f32.mrf.mxu0
      %v1271 = vadd.f32 0.0, %v1270
      %1272 = vmatmul.f32.gmra.mxu0 %v711
      %v1273 = vpop.f32.mrf.mxu0
      %v1274 = vadd.f32 0.0, %v1273
      %1275 = vmatmul.f32.gmra.mxu0 %v713
      %v1276 = vpop.f32.mrf.mxu0
      %v1277 = vadd.f32 0.0, %v1276
      %1278 = vmatmul.f32.gmra.mxu0 %v715
      %v1279 = vpop.f32.mrf.mxu0
      %v1280 = vadd.f32 0.0, %v1279
      %1281 = vmatmul.f32.gmra.mxu0 %v717
      %v1282 = vpop.f32.mrf.mxu0
      %v1283 = vadd.f32 0.0, %v1282
      %1284 = vmatmul.f32.gmra.mxu0 %v719
      %v1285 = vpop.f32.mrf.mxu0
      %v1286 = vadd.f32 0.0, %v1285
      %1287 = vmatmul.f32.gmra.mxu0 %v721
      %v1288 = vpop.f32.mrf.mxu0
      %v1289 = vadd.f32 0.0, %v1288
      %1290 = vmatmul.f32.gmra.mxu0 %v723
      %v1291 = vpop.f32.mrf.mxu0
      %v1292 = vadd.f32 0.0, %v1291
      %1293 = vmatmul.f32.gmra.mxu0 %v725
      %v1294 = vpop.f32.mrf.mxu0
      %v1295 = vadd.f32 0.0, %v1294
      %1296 = vmatmul.f32.gmra.mxu0 %v727
      %v1297 = vpop.f32.mrf.mxu0
      %v1298 = vadd.f32 0.0, %v1297
      %1299 = vmatmul.f32.gmra.mxu0 %v729
      %v1300 = vpop.f32.mrf.mxu0
      %v1301 = vadd.f32 0.0, %v1300
      %1302 = vmatmul.f32.gmra.mxu0 %v961
      %v1303 = vpop.f32.mrf.mxu0
      %v1304 = vadd.f32 0.0, %v1303
      %1305 = vmatmul.f32.gmra.mxu0 %v963
      %v1306 = vpop.f32.mrf.mxu0
      %v1307 = vadd.f32 0.0, %v1306
      %1308 = vmatmul.f32.gmra.mxu0 %v1243
      %v1309 = vpop.f32.mrf.mxu0
      %v1310 = vadd.f32 0.0, %v1309
      %1311 = vmatmul.f32.gmra.mxu0 %v1245
      %v1312 = vpop.f32.mrf.mxu0
      %v1313 = vadd.f32 0.0, %v1312
      %1314 = vdwg.mxu0
      %v1315 = vadd.f32 %v1224, %v1268
      %v1316 = vadd.f32 %v1225, %v1271
      %v1317 = vadd.f32 %v1226, %v1274
      %v1318 = vadd.f32 %v1227, %v1277
      %v1319 = vadd.f32 %v1228, %v1280
      %v1320 = vadd.f32 %v1229, %v1283
      %v1321 = vadd.f32 %v1230, %v1286
      %v1322 = vadd.f32 %v1231, %v1289
      %v1323 = vadd.f32 %v1232, %v1292
      %v1324 = vadd.f32 %v1233, %v1295
      %v1325 = vadd.f32 %v1234, %v1298
      %v1326 = vadd.f32 %v1235, %v1301
      %v1327 = vadd.f32 %v1236, %v1304
      %v1328 = vadd.f32 %v1237, %v1307
      %v1329 = vadd.f32 %v1238, %v1310
      %v1330 = vadd.f32 %v1239, %v1313
      %v1332 = vrot.slane %v526, 1
      %v1333 = vrot.slane %v496, 1
      %v1334 = vsel %vm554, %v1332, %v1333
      %v1335 = vrot.slane %v536, 1
      %v1336 = vsel %vm554, %v1333, %v1335
      %s1337 = scalar_lea.vmem %s0, 28
      %v1338 = vld [vmem:[%s1337] sm:$0xf]
      %v1339 = vsel %vm597, %v1334, 0
      %v1341 = vsel %vm597, %v1336, 0
      %v1344 = vsel %vm630, %v1338, 0
      %1346 = vmatpush.msra.mxu0 0.0
      %1347 = vmatpush.msra.mxu0 0.0
      %1348 = vmatpush.msra.mxu0 0.0
      %1349 = vmatpush.msra.mxu0 0.0
      %1350 = vmatpush.msra.mxu0 0.0
      %1351 = vmatpush.msra.mxu0 0.0
      %1352 = vmatpush.msra.mxu0 0.0
      %1353 = vmatpush.msra.mxu0 0.0
      %1354 = vmatpush.msra.mxu0 0.0
      %1355 = vmatpush.msra.mxu0 0.0
      %1356 = vmatpush.msra.mxu0 0.0
      %1357 = vmatpush.msra.mxu0 0.0
      %1358 = vmatpush.msra.mxu0 0.0
      %1359 = vmatpush.msra.mxu0 0.0
      %1360 = vmatpush.msra.mxu0 0.0
      %1361 = vmatpush.msra.mxu0 %v1344
      %1362 = vmatmul.f32.gmra.mxu0 %v606
      %v1363 = vpop.f32.mrf.mxu0
      %v1364 = vadd.f32 0.0, %v1363
      %1365 = vmatmul.f32.gmra.mxu0 %v608
      %v1366 = vpop.f32.mrf.mxu0
      %v1367 = vadd.f32 0.0, %v1366
      %1368 = vmatmul.f32.gmra.mxu0 %v610
      %v1369 = vpop.f32.mrf.mxu0
      %v1370 = vadd.f32 0.0, %v1369
      %1371 = vmatmul.f32.gmra.mxu0 %v612
      %v1372 = vpop.f32.mrf.mxu0
      %v1373 = vadd.f32 0.0, %v1372
      %1374 = vmatmul.f32.gmra.mxu0 %v614
      %v1375 = vpop.f32.mrf.mxu0
      %v1376 = vadd.f32 0.0, %v1375
      %1377 = vmatmul.f32.gmra.mxu0 %v616
      %v1378 = vpop.f32.mrf.mxu0
      %v1379 = vadd.f32 0.0, %v1378
      %1380 = vmatmul.f32.gmra.mxu0 %v618
      %v1381 = vpop.f32.mrf.mxu0
      %v1382 = vadd.f32 0.0, %v1381
      %1383 = vmatmul.f32.gmra.mxu0 %v620
      %v1384 = vpop.f32.mrf.mxu0
      %v1385 = vadd.f32 0.0, %v1384
      %1386 = vmatmul.f32.gmra.mxu0 %v622
      %v1387 = vpop.f32.mrf.mxu0
      %v1388 = vadd.f32 0.0, %v1387
      %1389 = vmatmul.f32.gmra.mxu0 %v624
      %v1390 = vpop.f32.mrf.mxu0
      %v1391 = vadd.f32 0.0, %v1390
      %1392 = vmatmul.f32.gmra.mxu0 %v626
      %v1393 = vpop.f32.mrf.mxu0
      %v1394 = vadd.f32 0.0, %v1393
      %1395 = vmatmul.f32.gmra.mxu0 %v628
      %v1396 = vpop.f32.mrf.mxu0
      %v1397 = vadd.f32 0.0, %v1396
      %1398 = vmatmul.f32.gmra.mxu0 %v1057
      %v1399 = vpop.f32.mrf.mxu0
      %v1400 = vadd.f32 0.0, %v1399
      %1401 = vmatmul.f32.gmra.mxu0 %v1059
      %v1402 = vpop.f32.mrf.mxu0
      %v1403 = vadd.f32 0.0, %v1402
      %1404 = vmatmul.f32.gmra.mxu0 %v1339
      %v1405 = vpop.f32.mrf.mxu0
      %v1406 = vadd.f32 0.0, %v1405
      %1407 = vmatmul.f32.gmra.mxu0 %v1341
      %v1408 = vpop.f32.mrf.mxu0
      %v1409 = vadd.f32 0.0, %v1408
      %1410 = vdwg.mxu0
      %v1411 = vadd.f32 %v1315, %v1364
      %v1412 = vadd.f32 %v1316, %v1367
      %v1413 = vadd.f32 %v1317, %v1370
      %v1414 = vadd.f32 %v1318, %v1373
      %v1415 = vadd.f32 %v1319, %v1376
      %v1416 = vadd.f32 %v1320, %v1379
      %v1417 = vadd.f32 %v1321, %v1382
      %v1418 = vadd.f32 %v1322, %v1385
      %v1419 = vadd.f32 %v1323, %v1388
      %v1420 = vadd.f32 %v1324, %v1391
      %v1421 = vadd.f32 %v1325, %v1394
      %v1422 = vadd.f32 %v1326, %v1397
      %v1423 = vadd.f32 %v1327, %v1400
      %v1424 = vadd.f32 %v1328, %v1403
      %v1425 = vadd.f32 %v1329, %v1406
      %v1426 = vadd.f32 %v1330, %v1409
      %v1427 = vrot.slane %v526, 2
      %v1428 = vrot.slane %v496, 2
      %v1429 = vsel %vm799, %v1427, %v1428
      %v1430 = vrot.slane %v536, 2
      %v1431 = vsel %vm799, %v1428, %v1430
      %s1432 = scalar_lea.vmem %s0, 32
      %v1433 = vld [vmem:[%s1432] sm:$0xf]
      %v1434 = vsel %vm597, %v1429, 0
      %v1436 = vsel %vm597, %v1431, 0
      %v1439 = vsel %vm630, %v1433, 0
      %1441 = vmatpush.msra.mxu0 0.0
      %1442 = vmatpush.msra.mxu0 0.0
      %1443 = vmatpush.msra.mxu0 0.0
      %1444 = vmatpush.msra.mxu0 0.0
      %1445 = vmatpush.msra.mxu0 0.0
      %1446 = vmatpush.msra.mxu0 0.0
      %1447 = vmatpush.msra.mxu0 0.0
      %1448 = vmatpush.msra.mxu0 0.0
      %1449 = vmatpush.msra.mxu0 0.0
      %1450 = vmatpush.msra.mxu0 0.0
      %1451 = vmatpush.msra.mxu0 0.0
      %1452 = vmatpush.msra.mxu0 0.0
      %1453 = vmatpush.msra.mxu0 0.0
      %1454 = vmatpush.msra.mxu0 0.0
      %1455 = vmatpush.msra.mxu0 0.0
      %1456 = vmatpush.msra.mxu0 %v1439
      %1457 = vmatmul.f32.gmra.mxu0 %v850
      %v1458 = vpop.f32.mrf.mxu0
      %v1459 = vadd.f32 0.0, %v1458
      %1460 = vmatmul.f32.gmra.mxu0 %v852
      %v1461 = vpop.f32.mrf.mxu0
      %v1462 = vadd.f32 0.0, %v1461
      %1463 = vmatmul.f32.gmra.mxu0 %v854
      %v1464 = vpop.f32.mrf.mxu0
      %v1465 = vadd.f32 0.0, %v1464
      %1466 = vmatmul.f32.gmra.mxu0 %v856
      %v1467 = vpop.f32.mrf.mxu0
      %v1468 = vadd.f32 0.0, %v1467
      %1469 = vmatmul.f32.gmra.mxu0 %v858
      %v1470 = vpop.f32.mrf.mxu0
      %v1471 = vadd.f32 0.0, %v1470
      %1472 = vmatmul.f32.gmra.mxu0 %v860
      %v1473 = vpop.f32.mrf.mxu0
      %v1474 = vadd.f32 0.0, %v1473
      %1475 = vmatmul.f32.gmra.mxu0 %v862
      %v1476 = vpop.f32.mrf.mxu0
      %v1477 = vadd.f32 0.0, %v1476
      %1478 = vmatmul.f32.gmra.mxu0 %v864
      %v1479 = vpop.f32.mrf.mxu0
      %v1480 = vadd.f32 0.0, %v1479
      %1481 = vmatmul.f32.gmra.mxu0 %v866
      %v1482 = vpop.f32.mrf.mxu0
      %v1483 = vadd.f32 0.0, %v1482
      %1484 = vmatmul.f32.gmra.mxu0 %v868
      %v1485 = vpop.f32.mrf.mxu0
      %v1486 = vadd.f32 0.0, %v1485
      %1487 = vmatmul.f32.gmra.mxu0 %v870
      %v1488 = vpop.f32.mrf.mxu0
      %v1489 = vadd.f32 0.0, %v1488
      %1490 = vmatmul.f32.gmra.mxu0 %v872
      %v1491 = vpop.f32.mrf.mxu0
      %v1492 = vadd.f32 0.0, %v1491
      %1493 = vmatmul.f32.gmra.mxu0 %v1152
      %v1494 = vpop.f32.mrf.mxu0
      %v1495 = vadd.f32 0.0, %v1494
      %1496 = vmatmul.f32.gmra.mxu0 %v1154
      %v1497 = vpop.f32.mrf.mxu0
      %v1498 = vadd.f32 0.0, %v1497
      %1499 = vmatmul.f32.gmra.mxu0 %v1434
      %v1500 = vpop.f32.mrf.mxu0
      %v1501 = vadd.f32 0.0, %v1500
      %1502 = vmatmul.f32.gmra.mxu0 %v1436
      %v1503 = vpop.f32.mrf.mxu0
      %v1504 = vadd.f32 0.0, %v1503
      %1505 = vdwg.mxu0
      %v1506 = vadd.f32 %v1411, %v1459
      %v1507 = vadd.f32 %v1412, %v1462
      %v1508 = vadd.f32 %v1413, %v1465
      %v1509 = vadd.f32 %v1414, %v1468
      %v1510 = vadd.f32 %v1415, %v1471
      %v1511 = vadd.f32 %v1416, %v1474
      %v1512 = vadd.f32 %v1417, %v1477
      %v1513 = vadd.f32 %v1418, %v1480
      %v1514 = vadd.f32 %v1419, %v1483
      %v1515 = vadd.f32 %v1420, %v1486
      %v1516 = vadd.f32 %v1421, %v1489
      %v1517 = vadd.f32 %v1422, %v1492
      %v1518 = vadd.f32 %v1423, %v1495
      %v1519 = vadd.f32 %v1424, %v1498
      %v1520 = vadd.f32 %v1425, %v1501
      %v1521 = vadd.f32 %v1426, %v1504
      %vm1522 = vcmask 64512
      %1523 = vst.msk [vmem:[%s404] sm:$0xff] %vm1522, %v1506
      %1524 = vst.msk [vmem:[%s404 + $0x8] sm:$0xff] %vm1522, %v1507
      %1525 = vst.msk [vmem:[%s404 + $0x10] sm:$0xff] %vm1522, %v1508
      %1526 = vst.msk [vmem:[%s404 + $0x18] sm:$0xff] %vm1522, %v1509
      %1527 = vst.msk [vmem:[%s404 + $0x20] sm:$0xff] %vm1522, %v1510
      %1528 = vst.msk [vmem:[%s404 + $0x28] sm:$0xff] %vm1522, %v1511
      %1529 = vst.msk [vmem:[%s404 + $0x30] sm:$0xff] %vm1522, %v1512
      %1530 = vst.msk [vmem:[%s404 + $0x38] sm:$0xff] %vm1522, %v1513
      %1531 = vst.msk [vmem:[%s404 + $0x40] sm:$0xff] %vm1522, %v1514
      %1532 = vst.msk [vmem:[%s404 + $0x48] sm:$0xff] %vm1522, %v1515
      %1533 = vst.msk [vmem:[%s404 + $0x50] sm:$0xff] %vm1522, %v1516
      %1534 = vst.msk [vmem:[%s404 + $0x58] sm:$0xff] %vm1522, %v1517
      %1535 = vst.msk [vmem:[%s404 + $0x60] sm:$0xff] %vm1522, %v1518
      %1536 = vst.msk [vmem:[%s404 + $0x68] sm:$0xff] %vm1522, %v1519
      %1537 = vst.msk [vmem:[%s404 + $0x70] sm:$0xff] %vm1522, %v1520
      %1538 = vst.msk [vmem:[%s404 + $0x78] sm:$0xff] %vm1522, %v1521
      %v1539 = vsel %vm1522, %v1506, 0.0
      %v1540 = vsel %vm1522, %v1507, 0.0
      %v1541 = vadd.f32 %v1539, %v1540
      %v1542 = vsel %vm1522, %v1508, 0.0
      %v1543 = vadd.f32 %v1541, %v1542
      %v1544 = vsel %vm1522, %v1509, 0.0
      %v1545 = vadd.f32 %v1543, %v1544
      %v1546 = vsel %vm1522, %v1510, 0.0
      %v1547 = vadd.f32 %v1545, %v1546
      %v1548 = vsel %vm1522, %v1511, 0.0
      %v1549 = vadd.f32 %v1547, %v1548
      %v1550 = vsel %vm1522, %v1512, 0.0
      %v1551 = vadd.f32 %v1549, %v1550
      %v1552 = vsel %vm1522, %v1513, 0.0
      %v1553 = vadd.f32 %v1551, %v1552
      %v1554 = vsel %vm1522, %v1514, 0.0
      %v1555 = vadd.f32 %v1553, %v1554
      %v1556 = vsel %vm1522, %v1515, 0.0
      %v1557 = vadd.f32 %v1555, %v1556
      %v1558 = vsel %vm1522, %v1516, 0.0
      %v1559 = vadd.f32 %v1557, %v1558
      %v1560 = vsel %vm1522, %v1517, 0.0
      %v1561 = vadd.f32 %v1559, %v1560
      %v1562 = vsel %vm1522, %v1518, 0.0
      %v1563 = vadd.f32 %v1561, %v1562
      %v1564 = vsel %vm1522, %v1519, 0.0
      %v1565 = vadd.f32 %v1563, %v1564
      %v1566 = vsel %vm1522, %v1520, 0.0
      %v1567 = vadd.f32 %v1565, %v1566
      %v1568 = vsel %vm1522, %v1521, 0.0
      %v1569 = vadd.f32 %v1567, %v1568
      %v1570 = vrot.slane %v1569, 4
      %v1571 = vadd.f32 %v1569, %v1570
      %v1572 = vrot.slane %v1571, 2
      %v1573 = vadd.f32 %v1571, %v1572
      %v1574 = vrot.slane %v1573, 1
      %v1575 = vadd.f32 %v1573, %v1574
      %v1576 = vmul.f32 %v1575, 0.0078125
      %v1577 = vsub.f32 %v1506, %v1576
      %v1578 = vsub.f32 %v1507, %v1576
      %v1579 = vsub.f32 %v1508, %v1576
      %v1580 = vsub.f32 %v1509, %v1576
      %v1581 = vsub.f32 %v1510, %v1576
      %v1582 = vsub.f32 %v1511, %v1576
      %v1583 = vsub.f32 %v1512, %v1576
      %v1584 = vsub.f32 %v1513, %v1576
      %v1585 = vsub.f32 %v1514, %v1576
      %v1586 = vsub.f32 %v1515, %v1576
      %v1587 = vsub.f32 %v1516, %v1576
      %v1588 = vsub.f32 %v1517, %v1576
      %v1589 = vsub.f32 %v1518, %v1576
      %v1590 = vsub.f32 %v1519, %v1576
      %v1591 = vsub.f32 %v1520, %v1576
      %v1592 = vsub.f32 %v1521, %v1576
      %vm1593 = vcmask 57344
      %1594 = vst.msk [vmem:[%s411] sm:$0x1] %vm1593, %v1575
      %v1595 = vmul.f32 %v1577, %v1577
      %v1596 = vmul.f32 %v1578, %v1578
      %v1597 = vmul.f32 %v1579, %v1579
      %v1598 = vmul.f32 %v1580, %v1580
      %v1599 = vmul.f32 %v1581, %v1581
      %v1600 = vmul.f32 %v1582, %v1582
      %v1601 = vmul.f32 %v1583, %v1583
      %v1602 = vmul.f32 %v1584, %v1584
      %v1603 = vmul.f32 %v1585, %v1585
      %v1604 = vmul.f32 %v1586, %v1586
      %v1605 = vmul.f32 %v1587, %v1587
      %v1606 = vmul.f32 %v1588, %v1588
      %v1607 = vmul.f32 %v1589, %v1589
      %v1608 = vmul.f32 %v1590, %v1590
      %v1609 = vmul.f32 %v1591, %v1591
      %v1610 = vmul.f32 %v1592, %v1592
      %v1611 = vsel %vm1522, %v1595, 0.0
      %v1612 = vsel %vm1522, %v1596, 0.0
      %v1613 = vadd.f32 %v1611, %v1612
      %v1614 = vsel %vm1522, %v1597, 0.0
      %v1615 = vadd.f32 %v1613, %v1614
      %v1616 = vsel %vm1522, %v1598, 0.0
      %v1617 = vadd.f32 %v1615, %v1616
      %v1618 = vsel %vm1522, %v1599, 0.0
      %v1619 = vadd.f32 %v1617, %v1618
      %v1620 = vsel %vm1522, %v1600, 0.0
      %v1621 = vadd.f32 %v1619, %v1620
      %v1622 = vsel %vm1522, %v1601, 0.0
      %v1623 = vadd.f32 %v1621, %v1622
      %v1624 = vsel %vm1522, %v1602, 0.0
      %v1625 = vadd.f32 %v1623, %v1624
      %v1626 = vsel %vm1522, %v1603, 0.0
      %v1627 = vadd.f32 %v1625, %v1626
      %v1628 = vsel %vm1522, %v1604, 0.0
      %v1629 = vadd.f32 %v1627, %v1628
      %v1630 = vsel %vm1522, %v1605, 0.0
      %v1631 = vadd.f32 %v1629, %v1630
      %v1632 = vsel %vm1522, %v1606, 0.0
      %v1633 = vadd.f32 %v1631, %v1632
      %v1634 = vsel %vm1522, %v1607, 0.0
      %v1635 = vadd.f32 %v1633, %v1634
      %v1636 = vsel %vm1522, %v1608, 0.0
      %v1637 = vadd.f32 %v1635, %v1636
      %v1638 = vsel %vm1522, %v1609, 0.0
      %v1639 = vadd.f32 %v1637, %v1638
      %v1640 = vsel %vm1522, %v1610, 0.0
      %v1641 = vadd.f32 %v1639, %v1640
      %v1642 = vrot.slane %v1641, 4
      %v1643 = vadd.f32 %v1641, %v1642
      %v1644 = vrot.slane %v1643, 2
      %v1645 = vadd.f32 %v1643, %v1644
      %v1646 = vrot.slane %v1645, 1
      %v1647 = vadd.f32 %v1645, %v1646
      %1648 = vst.msk [vmem:[%s411 + $0x1] sm:$0x1] %vm1593, %v1647
      %s1649 = smul.u32 8, %s22
      %p1650 = scmp.lt.s32.totalorder %s21, 1
      %s1651 = scalar_select %p1650, %s21, 1
      %p1652 = scmp.lt.s32.totalorder %s1649, 15
      %s1653 = scalar_select %p1652, %s1649, 15
      %s1654 = smul.addr %s1653, 2
      %s1655 = smul.addr %s1651, 32
      %s1656 = sadd.s32 %s1654, %s1655
      %s1657 = smul.addr %s1656, 8
      %s1658 = scalar_lea.vmem %s4, %s1657
      %s1659 = smul.u32 %s21, 2
      %s1660 = sadd.s32 %s1659, %s22
      %p1661 = scmp.lt.s32.totalorder %s1660, 3
      %s1662 = scalar_select %p1661, %s1660, 3
      %s1663 = smul.addr %s1662, 2
      %s1664 = scalar_lea.vmem %s5, %s1663
      // Predicated region
      $region37: #{double_conv.2} parent=35 // pred_check
        %p1665 = pneg %p170
      $region38: #{double_conv.2} parent=35 // pred_check_branch
        %1667 = sbr.rel (%p1665) target = $region40
      $region39: #{double_conv.2} parent=35 // pred_region
        %s1668 = smul.u32 8, %s22
      $region40: #{double_conv.2} parent=35 // pred_fallthru
        _
      // Predicated region
      $region41: #{double_conv.2} parent=35 // pred_check
        %p1669 = pneg %p200
      $region42: #{double_conv.2} parent=35 // pred_check_branch
        %1671 = sbr.rel (%p1669) target = $region44
      $region43: #{double_conv.2} parent=35 // pred_region
        %s1672 = smul.u32 %s21, 2
        %s1673 = sadd.s32 %s1672, %s22
      $region44: #{double_conv.2} parent=35 // pred_fallthru
        _
    $region36: #{double_conv.2} parent=5 // pred_fallthru
      _
    %p1674 = scmp.le.s32.totalorder 2, %s12
    // Predicated region
    $region45: #{double_conv.2} parent=5 // pred_check
      %p1675 = pneg %p1674
    $region46: #{double_conv.2} parent=5 // pred_check_branch
      %1677 = sbr.rel (%p1675) target = $region48
    $region47: #{double_conv.2} parent=5 // pred_region
      %s1678 = ssub.s32 %s12, 2
      // Predicated region
      $region49: #{double_conv.2} parent=47 // pred_check
        %p1679 = pneg %p176
      $region50: #{double_conv.2} parent=47 // pred_check_branch
        %1681 = sbr.rel (%p1679) target = $region52
      $region51: #{double_conv.2} parent=47 // pred_region
        %s1682 = smul.u32 8, %s24
        %p1683 = scmp.lt.s32.totalorder %s23, 1
        %s1684 = scalar_select %p1683, %s23, 1
        %p1685 = scmp.lt.s32.totalorder %s1682, 15
        %s1686 = scalar_select %p1685, %s1682, 15
        %s1687 = smul.addr %s1686, 2
        %s1688 = smul.addr %s1684, 32
        %s1689 = sadd.s32 %s1687, %s1688
        %s1690 = smul.addr %s1689, 8
        %s1691 = scalar_lea.vmem %s4, %s1690
      $region52: #{double_conv.2} parent=47 // pred_fallthru
        _
      // Predicated region
      $region53: #{double_conv.2} parent=47 // pred_check
        %p1692 = pneg %p206
      $region54: #{double_conv.2} parent=47 // pred_check_branch
        %1694 = sbr.rel (%p1692) target = $region56
      $region55: #{double_conv.2} parent=47 // pred_region
        %s1695 = smul.u32 %s23, 2
        %s1696 = sadd.s32 %s1695, %s24
        %p1697 = scmp.lt.s32.totalorder %s1696, 3
        %s1698 = scalar_select %p1697, %s1696, 3
        %s1699 = smul.addr %s1698, 2
        %s1700 = scalar_lea.vmem %s5, %s1699
      $region56: #{double_conv.2} parent=47 // pred_fallthru
        _
    $region48: #{double_conv.2} parent=5 // pred_fallthru
      _
  $region6: #{double_conv.2} parent=0 // loop_footer
    %s16 = sadd.s32 1, %s12
  $region7: #{double_conv.2} parent=0 // loop_footer_branch
    %11 = sbr.rel target = $region3
  $region8: #{double_conv.2} parent=0 // loop_exit
    _

// kernel: double_conv.3
$region0: #{double_conv.3}
  #allocation0 [shape = 'u32[]', space=smem, size = 0x4, offset = 0x4, fixed_abs, tag = 'smem constant byte address 0x4 - core index']
  #allocation1 [shape = 'u32[72,128]{1,0:T(1,128)}', space=vmem, size = 0x9000, scoped, tag = 'internal scratch']
  %s0 = inlined_call_operand.vmem [shape: f32[2,8], index: 0, kind: input, shape index: {}]
  %s1 = inlined_call_operand.vmem [shape: f32[3,3,8,8], index: 1, kind: input, shape index: {}]
  %s2 = inlined_call_operand.vmem [shape: f32[2,16,16,8], index: 2, kind: input, shape index: {}, may-alias: {2,3,4}]
  %s3 = inlined_call_operand.vmem [shape: f32[2,16,16,8], index: 3, kind: input, shape index: {}, may-alias: {2,3,4}]
  %s4 = inlined_call_operand.vmem [shape: f32[2,16,16,8], index: 4, kind: input, shape index: {}, may-alias: {2,3,4}]
  %s5 = inlined_call_operand.vmem [shape: f32[2,16,16,8], index: 5, kind: output, shape index: {0}]
  %s6 = inlined_call_operand.vmem [shape: f32[4,2,8], index: 6, kind: output, shape index: {1}]
  %7 = xla_tuple %s5, %s6
  %s8 = sld [smem:[#allocation0]]
  $region61: #{double_conv.3} parent=0
    _
  %s10 = ssub.s32 1, %s8
  %s11 = scalar_select 0, %s10, %s8
  loop: start=0, step=1, limit=6
  $region2: #{double_conv.3} parent=0 // loop_pre_header
    _
  $region3: #{double_conv.3} parent=0 // loop_header
    %s13 = sphi 0, %s17
    %p14 = scmp.ge.s32.totalorder %s13, 6
    %s20 = sphi 0, %s32
    %s21 = sphi 0, %s28
    %s22 = sphi 0, %s20
    %s23 = sphi 0, %s21
    %s24 = sphi 0, %s22
    %s25 = sphi 0, %s23
    %s33 = sphi 0, %s33
    %s35 = sphi 0, %s33
    %s36 = sphi 0, %s35
    %s50 = sphi 0, %s36
    %s54 = sphi 0, %s54
    %s56 = sphi 0, %s54
    %s57 = sphi 0, %s56
    %s71 = sphi 0, %s57
    %s87 = sphi 0, %s89
    %s90 = sphi 0, %s87
    %s91 = sphi 0, %s90
    %s107 = sphi 0, %s91
    %s115 = sphi 0, %s117
    %s118 = sphi 0, %s115
    %s119 = sphi 0, %s118
    %s135 = sphi 0, %s119
    %s151 = sphi 0, %s153
    %s154 = sphi 0, %s151
    %s155 = sphi 0, %s154
    %s171 = sphi 0, %s155
    %s179 = sphi 0, %s181
    %s182 = sphi 0, %s179
    %s183 = sphi 0, %s182
    %s199 = sphi 0, %s183
    %s209 = sphi 0, %s211
    %s212 = sphi 0, %s209
    %s213 = sphi 0, %s212
    %s229 = sphi 0, %s213
  $region4: #{double_conv.3} parent=0 // loop_header_branch
    %16 = sbr.rel (%p14) target = $region8
  $region5: #{double_conv.3} parent=0 // loop_body
    %s18 = ssub.s32 %s13, 1
    %s19 = ssub.s32 %s13, 2
    %s26 = sadd.s32 1, %s21
    %p27 = scmp.ge.s32.totalorder %s26, 2
    %s28 = scalar_select %p27, 0, %s26
    %s29 = sadd.s32 1, %s20
    %s30 = scalar_select %p27, %s29, %s20
    %p31 = scmp.ge.s32.totalorder %s30, 2
    %s32 = scalar_select %p31, 0, %s30
    %s34 = sadd.s32 %s33, 1
    %p37 = scmp.eq.s32.totalorder %s13, 3
    %p38 = scmp.ne.s32.totalorder %s33, %s35
    %p39 = scmp.eq.s32.totalorder %s13, 0
    %p40 = por %p38, %p39
    %p41 = scmp.ne.s32.totalorder %s33, %s35
    %p42 = scmp.eq.s32.totalorder %s18, 3
    %p43 = por %p41, %p42
    %p44 = scmp.ne.s32.totalorder %s35, %s36
    %p45 = scmp.eq.s32.totalorder %s18, 0
    %p46 = por %p44, %p45
    %p47 = scmp.ne.s32.totalorder %s35, %s36
    %p48 = scmp.eq.s32.totalorder %s19, 3
    %p49 = por %p47, %p48
    %p51 = scmp.ne.s32.totalorder %s36, %s50
    %p52 = scmp.eq.s32.totalorder %s19, 0
    %p53 = por %p51, %p52
    %s55 = sadd.s32 %s54, 1
    %p58 = scmp.eq.s32.totalorder %s13, 3
    %p59 = scmp.ne.s32.totalorder %s54, %s56
    %p60 = scmp.eq.s32.totalorder %s13, 0
    %p61 = por %p59, %p60
    %p62 = scmp.ne.s32.totalorder %s54, %s56
    %p63 = scmp.eq.s32.totalorder %s18, 3
    %p64 = por %p62, %p63
    %p65 = scmp.ne.s32.totalorder %s56, %s57
    %p66 = scmp.eq.s32.totalorder %s18, 0
    %p67 = por %p65, %p66
    %p68 = scmp.ne.s32.totalorder %s56, %s57
    %p69 = scmp.eq.s32.totalorder %s19, 3
    %p70 = por %p68, %p69
    %p72 = scmp.ne.s32.totalorder %s57, %s71
    %p73 = scmp.eq.s32.totalorder %s19, 0
    %p74 = por %p72, %p73
    %s75 = smul.u32 %s21, 8
    %s76 = ssub.s32 %s75, 1
    %p77 = scmp.gt.s32.totalorder %s76, 0
    %s78 = scalar_select %p77, %s76, 0
    %s79 = smul.u32 %s28, 8
    %s80 = ssub.s32 %s79, 1
    %p81 = scmp.gt.s32.totalorder %s80, 0
    %s82 = scalar_select %p81, %s80, 0
    %s83 = ssub.s32 %s20, %s32
    %s84 = ssub.s32 %s78, %s82
    %s85 = sor.u32 %s83, %s84
    %p86 = scmp.eq.s32.totalorder %s85, 0
    %s88 = sadd.s32 %s87, 1
    %s89 = scalar_select %p86, %s87, %s88
    %p92 = pneg %p86
    %p93 = scmp.eq.s32.totalorder %s13, 3
    %p94 = por %p92, %p93
    %p95 = scmp.ne.s32.totalorder %s87, %s90
    %p96 = scmp.eq.s32.totalorder %s13, 0
    %p97 = por %p95, %p96
    %p98 = scmp.ne.s32.totalorder %s87, %s90
    %p99 = scmp.eq.s32.totalorder %s18, 3
    %p100 = por %p98, %p99
    %p101 = scmp.ne.s32.totalorder %s90, %s91
    %p102 = scmp.eq.s32.totalorder %s18, 0
    %p103 = por %p101, %p102
    %p104 = scmp.ne.s32.totalorder %s90, %s91
    %p105 = scmp.eq.s32.totalorder %s19, 3
    %p106 = por %p104, %p105
    %p108 = scmp.ne.s32.totalorder %s91, %s107
    %p109 = scmp.eq.s32.totalorder %s19, 0
    %p110 = por %p108, %p109
    %s111 = ssub.s32 %s20, %s32
    %s112 = ssub.s32 %s21, %s28
    %s113 = sor.u32 %s111, %s112
    %p114 = scmp.eq.s32.totalorder %s113, 0
    %s116 = sadd.s32 %s115, 1
    %s117 = scalar_select %p114, %s115, %s116
    %p120 = pneg %p114
    %p121 = scmp.eq.s32.totalorder %s13, 3
    %p122 = por %p120, %p121
    %p123 = scmp.ne.s32.totalorder %s115, %s118
    %p124 = scmp.eq.s32.totalorder %s13, 0
    %p125 = por %p123, %p124
    %p126 = scmp.ne.s32.totalorder %s115, %s118
    %p127 = scmp.eq.s32.totalorder %s18, 3
    %p128 = por %p126, %p127
    %p129 = scmp.ne.s32.totalorder %s118, %s119
    %p130 = scmp.eq.s32.totalorder %s18, 0
    %p131 = por %p129, %p130
    %p132 = scmp.ne.s32.totalorder %s118, %s119
    %p133 = scmp.eq.s32.totalorder %s19, 3
    %p134 = por %p132, %p133
    %p136 = scmp.ne.s32.totalorder %s119, %s135
    %p137 = scmp.eq.s32.totalorder %s19, 0
    %p138 = por %p136, %p137
    %s139 = sadd.s32 %s21, 1
    %s140 = smul.u32 %s139, 8
    %p141 = scmp.lt.s32.totalorder %s140, 15
    %s142 = scalar_select %p141, %s140, 15
    %s143 = sadd.s32 %s28, 1
    %s144 = smul.u32 %s143, 8
    %p145 = scmp.lt.s32.totalorder %s144, 15
    %s146 = scalar_select %p145, %s144, 15
    %s147 = ssub.s32 %s20, %s32
    %s148 = ssub.s32 %s142, %s146
    %s149 = sor.u32 %s147, %s148
    %p150 = scmp.eq.s32.totalorder %s149, 0
    %s152 = sadd.s32 %s151, 1
    %s153 = scalar_select %p150, %s151, %s152
    %p156 = pneg %p150
    %p157 = scmp.eq.s32.totalorder %s13, 3
    %p158 = por %p156, %p157
    %p159 = scmp.ne.s32.totalorder %s151, %s154
    %p160 = scmp.eq.s32.totalorder %s13, 0
    %p161 = por %p159, %p160
    %p162 = scmp.ne.s32.totalorder %s151, %s154
    %p163 = scmp.eq.s32.totalorder %s18, 3
    %p164 = por %p162, %p163
    %p165 = scmp.ne.s32.totalorder %s154, %s155
    %p166 = scmp.eq.s32.totalorder %s18, 0
    %p167 = por %p165, %p166
    %p168 = scmp.ne.s32.totalorder %s154, %s155
    %p169 = scmp.eq.s32.totalorder %s19, 3
    %p170 = por %p168, %p169
    %p172 = scmp.ne.s32.totalorder %s155, %s171
    %p173 = scmp.eq.s32.totalorder %s19, 0
    %p174 = por %p172, %p173
    %s175 = ssub.s32 %s20, %s32
    %s176 = ssub.s32 %s21, %s28
    %s177 = sor.u32 %s175, %s176
    %p178 = scmp.eq.s32.totalorder %s177, 0
    %s180 = sadd.s32 %s179, 1
    %s181 = scalar_select %p178, %s179, %s180
    %p184 = pneg %p178
    %p185 = scmp.eq.s32.totalorder %s13, 3
    %p186 = por %p184, %p185
    %p187 = scmp.ne.s32.totalorder %s179, %s182
    %p188 = scmp.eq.s32.totalorder %s13, 0
    %p189 = por %p187, %p188
    %p190 = scmp.ne.s32.totalorder %s179, %s182
    %p191 = scmp.eq.s32.totalorder %s18, 3
    %p192 = por %p190, %p191
    %p193 = scmp.ne.s32.totalorder %s182, %s183
    %p194 = scmp.eq.s32.totalorder %s18, 0
    %p195 = por %p193, %p194
    %p196 = scmp.ne.s32.totalorder %s182, %s183
    %p197 = scmp.eq.s32.totalorder %s19, 3
    %p198 = por %p196, %p197
    %p200 = scmp.ne.s32.totalorder %s183, %s199
    %p201 = scmp.eq.s32.totalorder %s19, 0
    %p202 = por %p200, %p201
    %s203 = smul.u32 %s20, 2
    %s204 = sadd.s32 %s203, %s21
    %s205 = smul.u32 %s32, 2
    %s206 = sadd.s32 %s205, %s28
    %s207 = ssub.s32 %s204, %s206
    %p208 = scmp.eq.s32.totalorder %s207, 0
    %s210 = sadd.s32 %s209, 1
    %s211 = scalar_select %p208, %s209, %s210
    %p214 = pneg %p208
    %p215 = scmp.eq.s32.totalorder %s13, 3
    %p216 = por %p214, %p215
    %p217 = scmp.ne.s32.totalorder %s209, %s212
    %p218 = scmp.eq.s32.totalorder %s13, 0
    %p219 = por %p217, %p218
    %p220 = scmp.ne.s32.totalorder %s209, %s212
    %p221 = scmp.eq.s32.totalorder %s18, 3
    %p222 = por %p220, %p221
    %p223 = scmp.ne.s32.totalorder %s212, %s213
    %p224 = scmp.eq.s32.totalorder %s18, 0
    %p225 = por %p223, %p224
    %p226 = scmp.ne.s32.totalorder %s212, %s213
    %p227 = scmp.eq.s32.totalorder %s19, 3
    %p228 = por %p226, %p227
    %p230 = scmp.ne.s32.totalorder %s213, %s229
    %p231 = scmp.eq.s32.totalorder %s19, 0
    %p232 = por %p230, %p231
    %p233 = scmp.le.s32.totalorder 1, %s13
    %p234 = scmp.lt.s32.totalorder %s13, 5
    %p235 = pnand %p233, %p234
    %p236 = pneg %p235
    // Predicated region
    $region9: #{double_conv.3} parent=5 // pred_check
      _
    $region10: #{double_conv.3} parent=5 // pred_check_branch
      %238 = sbr.rel (%p235) target = $region12
    $region11: #{double_conv.3} parent=5 // pred_region
      %s239 = ssub.s32 %s13, 1
      // Predicated region
      $region13: #{double_conv.3} parent=11 // pred_check
        %p240 = pneg %p46
      $region14: #{double_conv.3} parent=11 // pred_check_branch
        %242 = sbr.rel (%p240) target = $region16
      $region15: #{double_conv.3} parent=11 // pred_region
        _
      $region16: #{double_conv.3} parent=11 // pred_fallthru
        _
      // Predicated region
      $region17: #{double_conv.3} parent=11 // pred_check
        %p243 = pneg %p67
      $region18: #{double_conv.3} parent=11 // pred_check_branch
        %245 = sbr.rel (%p243) target = $region20
      $region19: #{double_conv.3} parent=11 // pred_region
        _
      $region20: #{double_conv.3} parent=11 // pred_fallthru
        _
    $region12: #{double_conv.3} parent=5 // pred_fallthru
      _
    %p246 = scmp.lt.s32.totalorder %s13, 4
    // Predicated region
    $region21: #{double_conv.3} parent=5 // pred_check
      %p247 = pneg %p246
    $region22: #{double_conv.3} parent=5 // pred_check_branch
      %249 = sbr.rel (%p247) target = $region24
    $region23: #{double_conv.3} parent=5 // pred_region
      // Predicated region
      $region25: #{double_conv.3} parent=23 // pred_check
        %p250 = pneg %p97
      $region26: #{double_conv.3} parent=23 // pred_check_branch
        %252 = sbr.rel (%p250) target = $region28
      $region27: #{double_conv.3} parent=23 // pred_region
        %s253 = smul.u32 %s21, 8
        %s254 = ssub.s32 %s253, 1
        %p255 = scmp.gt.s32.totalorder %s254, 0
        %s256 = scalar_select %p255, %s254, 0
        %p257 = scmp.lt.s32.totalorder %s20, 1
        %s258 = scalar_select %p257, %s20, 1
        %p259 = scmp.lt.s32.totalorder %s256, 15
        %s260 = scalar_select %p259, %s256, 15
        %s261 = smul.addr %s260, 2
        %s262 = smul.addr %s258, 32
        %s263 = sadd.s32 %s261, %s262
        %s264 = smul.addr %s263, 8
        %s265 = scalar_lea.vmem %s2, %s264
        %s266 = smul.u32 %s21, 8
        %s267 = ssub.s32 %s266, 1
        %p268 = scmp.gt.s32.totalorder %s267, 0
        %s269 = scalar_select %p268, %s267, 0
      $region28: #{double_conv.3} parent=23 // pred_fallthru
        _
      // Predicated region
      $region29: #{double_conv.3} parent=23 // pred_check
        %p270 = pneg %p125
      $region30: #{double_conv.3} parent=23 // pred_check_branch
        %272 = sbr.rel (%p270) target = $region32
      $region31: #{double_conv.3} parent=23 // pred_region
        %s273 = smul.u32 8, %s21
        %p274 = scmp.lt.s32.totalorder %s20, 1
        %s275 = scalar_select %p274, %s20, 1
        %p276 = scmp.lt.s32.totalorder %s273, 15
        %s277 = scalar_select %p276, %s273, 15
        %s278 = smul.addr %s277, 2
        %s279 = smul.addr %s275, 32
        %s280 = sadd.s32 %s278, %s279
        %s281 = smul.addr %s280, 8
        %s282 = scalar_lea.vmem %s3, %s281
        %s283 = smul.u32 8, %s21
      $region32: #{double_conv.3} parent=23 // pred_fallthru
        _
      // Predicated region
      $region33: #{double_conv.3} parent=23 // pred_check
        %p284 = pneg %p161
      $region34: #{double_conv.3} parent=23 // pred_check_branch
        %286 = sbr.rel (%p284) target = $region36
      $region35: #{double_conv.3} parent=23 // pred_region
        %s287 = sadd.s32 %s21, 1
        %s288 = smul.u32 %s287, 8
        %p289 = scmp.lt.s32.totalorder %s288, 15
        %s290 = scalar_select %p289, %s288, 15
        %p291 = scmp.lt.s32.totalorder %s20, 1
        %s292 = scalar_select %p291, %s20, 1
        %p293 = scmp.lt.s32.totalorder %s290, 15
        %s294 = scalar_select %p293, %s290, 15
        %s295 = smul.addr %s294, 2
        %s296 = smul.addr %s292, 32
        %s297 = sadd.s32 %s295, %s296
        %s298 = smul.addr %s297, 8
        %s299 = scalar_lea.vmem %s4, %s298
        %s300 = sadd.s32 %s21, 1
        %s301 = smul.u32 %s300, 8
        %p302 = scmp.lt.s32.totalorder %s301, 15
        %s303 = scalar_select %p302, %s301, 15
      $region36: #{double_conv.3} parent=23 // pred_fallthru
        _
    $region24: #{double_conv.3} parent=5 // pred_fallthru
      _
    %p304 = scmp.le.s32.totalorder 1, %s13
    %p305 = scmp.lt.s32.totalorder %s13, 5
    %p306 = pnand %p304, %p305
    %p307 = pneg %p306
    // Predicated region
    $region37: #{double_conv.3} parent=5 // pred_check
      _
    $region38: #{double_conv.3} parent=5 // pred_check_branch
      %309 = sbr.rel (%p306) target = $region40
    $region39: #{double_conv.3} parent=5 // pred_region
      %s310 = ssub.s32 %s13, 1
      %p311 = pneg %p46
      %p312 = pneg %p43
      %p313 = pneg %p67
      %p314 = pneg %p64
      %s315 = smul.u32 %s23, 8
      %s316 = ssub.s32 %s315, 1
      %p317 = scmp.gt.s32.totalorder %s316, 0
      %s318 = scalar_select %p317, %s316, 0
      %p319 = scmp.lt.s32.totalorder %s22, 1
      %s320 = scalar_select %p319, %s22, 1
      %p321 = scmp.lt.s32.totalorder %s318, 15
      %s322 = scalar_select %p321, %s318, 15
      %s323 = smul.addr %s322, 2
      %s324 = smul.addr %s320, 32
      %s325 = sadd.s32 %s323, %s324
      %s326 = smul.addr %s325, 8
      %s327 = scalar_lea.vmem %s2, %s326
      %p328 = pneg %p103
      %p329 = pneg %p100
      %s330 = smul.u32 8, %s23
      %p331 = scmp.lt.s32.totalorder %s22, 1
      %s332 = scalar_select %p331, %s22, 1
      %p333 = scmp.lt.s32.totalorder %s330, 15
      %s334 = scalar_select %p333, %s330, 15
      %s335 = smul.addr %s334, 2
      %s336 = smul.addr %s332, 32
      %s337 = sadd.s32 %s335, %s336
      %s338 = smul.addr %s337, 8
      %s339 = scalar_lea.vmem %s3, %s338
      %p340 = pneg %p131
      %p341 = pneg %p128
      %s342 = sadd.s32 %s23, 1
      %s343 = smul.u32 %s342, 8
      %p344 = scmp.lt.s32.totalorder %s343, 15
      %s345 = scalar_select %p344, %s343, 15
      %p346 = scmp.lt.s32.totalorder %s22, 1
      %s347 = scalar_select %p346, %s22, 1
      %p348 = scmp.lt.s32.totalorder %s345, 15
      %s349 = scalar_select %p348, %s345, 15
      %s350 = smul.addr %s349, 2
      %s351 = smul.addr %s347, 32
      %s352 = sadd.s32 %s350, %s351
      %s353 = smul.addr %s352, 8
      %s354 = scalar_lea.vmem %s4, %s353
      %p355 = pneg %p167
      %p356 = pneg %p164
      %p357 = pneg %p195
      %p358 = pneg %p192
      %s359 = smul.u32 8, %s23
      %p360 = scmp.lt.s32.totalorder %s22, 1
      %s361 = scalar_select %p360, %s22, 1
      %p362 = scmp.lt.s32.totalorder %s359, 15
      %s363 = scalar_select %p362, %s359, 15
      %s364 = smul.addr %s363, 2
      %s365 = smul.addr %s361, 32
      %s366 = sadd.s32 %s364, %s365
      %s367 = smul.addr %s366, 8
      %s368 = scalar_lea.vmem %s5, %s367
      %p369 = pneg %p225
      %p370 = pneg %p222
      %s371 = smul.u32 %s22, 2
      %s372 = sadd.s32 %s371, %s23
      %p373 = scmp.lt.s32.totalorder %s372, 3
      %s374 = scalar_select %p373, %s372, 3
      %s375 = smul.addr %s374, 2
      %s376 = scalar_lea.vmem %s6, %s375
      %s377 = smul.u32 %s23, 8
      %s378 = ssub.s32 %s377, 1
      %p379 = scmp.gt.s32.totalorder %s378, 0
      %s380 = scalar_select %p379, %s378, 0
      %p381 = scmp.lt.s32.totalorder %s22, 1
      %s382 = scalar_select %p381, %s22, 1
      %p383 = scmp.lt.s32.totalorder %s380, 15
      %s384 = scalar_select %p383, %s380, 15
      %s385 = smul.addr %s384, 2
      %s386 = smul.addr %s382, 32
      %s387 = sadd.s32 %s385, %s386
      %s388 = smul.addr %s387, 8
      %s389 = scalar_lea.vmem %s2, %s388
      %s390 = smul.u32 %s23, 8
      %s391 = ssub.s32 %s390, 1
      %p392 = scmp.gt.s32.totalorder %s391, 0
      %s393 = scalar_select %p392, %s391, 0
      %s394 = smul.u32 8, %s23
      %p395 = scmp.lt.s32.totalorder %s22, 1
      %s396 = scalar_select %p395, %s22, 1
      %p397 = scmp.lt.s32.totalorder %s394, 15
      %s398 = scalar_select %p397, %s394, 15
      %s399 = smul.addr %s398, 2
      %s400 = smul.addr %s396, 32
      %s401 = sadd.s32 %s399, %s400
      %s402 = smul.addr %s401, 8
      %s403 = scalar_lea.vmem %s3, %s402
      %s404 = smul.u32 8, %s23
      %s405 = sadd.s32 %s23, 1
      %s406 = smul.u32 %s405, 8
      %p407 = scmp.lt.s32.totalorder %s406, 15
      %s408 = scalar_select %p407, %s406, 15
      %p409 = scmp.lt.s32.totalorder %s22, 1
      %s410 = scalar_select %p409, %s22, 1
      %p411 = scmp.lt.s32.totalorder %s408, 15
      %s412 = scalar_select %p411, %s408, 15
      %s413 = smul.addr %s412, 2
      %s414 = smul.addr %s410, 32
      %s415 = sadd.s32 %s413, %s414
      %s416 = smul.addr %s415, 8
      %s417 = scalar_lea.vmem %s4, %s416
      %s418 = sadd.s32 %s23, 1
      %s419 = smul.u32 %s418, 8
      %p420 = scmp.lt.s32.totalorder %s419, 15
      %s421 = scalar_select %p420, %s419, 15
      %s422 = smul.u32 8, %s23
      %p423 = scmp.lt.s32.totalorder %s22, 1
      %s424 = scalar_select %p423, %s22, 1
      %p425 = scmp.lt.s32.totalorder %s422, 15
      %s426 = scalar_select %p425, %s422, 15
      %s427 = smul.addr %s426, 2
      %s428 = smul.addr %s424, 32
      %s429 = sadd.s32 %s427, %s428
      %s430 = smul.addr %s429, 8
      %s431 = scalar_lea.vmem %s5, %s430
      %s432 = smul.u32 8, %s23
      %s433 = smul.u32 %s22, 2
      %s434 = sadd.s32 %s433, %s23
      %p435 = scmp.lt.s32.totalorder %s434, 3
      %s436 = scalar_select %p435, %s434, 3
      %s437 = smul.addr %s436, 2
      %s438 = scalar_lea.vmem %s6, %s437
      %s439 = smul.u32 %s22, 2
      %s440 = sadd.s32 %s439, %s23
      %v441 = vld [vmem:[%s389] sm:$0xff]
      %v442 = vld [vmem:[%s389 + $0x8] sm:$0xff]
      %v443 = vld [vmem:[%s403] sm:$0xff]
      %v444 = vld [vmem:[%s403 + $0x8] sm:$0xff]
      %v445 = vld [vmem:[%s403 + $0x10] sm:$0xff]
      %v446 = vld [vmem:[%s403 + $0x18] sm:$0xff]
      %v447 = vld [vmem:[%s403 + $0x20] sm:$0xff]
      %v448 = vld [vmem:[%s403 + $0x28] sm:$0xff]
      %v449 = vld [vmem:[%s403 + $0x30] sm:$0xff]
      %v450 = vld [vmem:[%s403 + $0x38] sm:$0xff]
      %v451 = vld [vmem:[%s403 + $0x40] sm:$0xff]
      %v452 = vld [vmem:[%s403 + $0x48] sm:$0xff]
      %v453 = vld [vmem:[%s403 + $0x50] sm:$0xff]
      %v454 = vld [vmem:[%s403 + $0x58] sm:$0xff]
      %v455 = vld [vmem:[%s403 + $0x60] sm:$0xff]
      %v456 = vld [vmem:[%s403 + $0x68] sm:$0xff]
      %v457 = vld [vmem:[%s403 + $0x70] sm:$0xff]
      %v458 = vld [vmem:[%s403 + $0x78] sm:$0xff]
      %v459 = vld [vmem:[%s417] sm:$0xff]
      %v460 = vld [vmem:[%s417 + $0x8] sm:$0xff]
      %v461 = vld [vmem:[%s0] sm:$0x3]
      %v462 = vperm.slane %v461, 0
      %v463 = vmul.f32 %v441, %v462
      %v464 = vmul.f32 %v442, %v462
      %v465 = vperm.slane %v461, 1
      %v466 = vadd.f32 %v463, %v465
      %v467 = vadd.f32 %v464, %v465
      %v468 = vmax.f32 %v466, 0.0
      %v469 = vmax.f32 %v467, 0.0
      %v470 = vmul.f32 %v443, %v462
      %v471 = vmul.f32 %v444, %v462
      %v472 = vmul.f32 %v445, %v462
      %v473 = vmul.f32 %v446, %v462
      %v474 = vmul.f32 %v447, %v462
      %v475 = vmul.f32 %v448, %v462
      %v476 = vmul.f32 %v449, %v462
      %v477 = vmul.f32 %v450, %v462
      %v478 = vmul.f32 %v451, %v462
      %v479 = vmul.f32 %v452, %v462
      %v480 = vmul.f32 %v453, %v462
      %v481 = vmul.f32 %v454, %v462
      %v482 = vmul.f32 %v455, %v462
      %v483 = vmul.f32 %v456, %v462
      %v484 = vmul.f32 %v457, %v462
      %v485 = vmul.f32 %v458, %v462
      %v486 = vadd.f32 %v470, %v465
      %v487 = vadd.f32 %v471, %v465
      %v488 = vadd.f32 %v472, %v465
      %v489 = vadd.f32 %v473, %v465
      %v490 = vadd.f32 %v474, %v465
      %v491 = vadd.f32 %v475, %v465
      %v492 = vadd.f32 %v476, %v465
      %v493 = vadd.f32 %v477, %v465
      %v494 = vadd.f32 %v478, %v465
      %v495 = vadd.f32 %v479, %v465
      %v496 = vadd.f32 %v480, %v465
      %v497 = vadd.f32 %v481, %v465
      %v498 = vadd.f32 %v482, %v465
      %v499 = vadd.f32 %v483, %v465
      %v500 = vadd.f32 %v484, %v465
      %v501 = vadd.f32 %v485, %v465
      %v502 = vmax.f32 %v486, 0.0
      %v503 = vmax.f32 %v487, 0.0
      %v504 = vmax.f32 %v488, 0.0
      %v505 = vmax.f32 %v489, 0.0
      %v506 = vmax.f32 %v490, 0.0
      %v507 = vmax.f32 %v491, 0.0
      %v508 = vmax.f32 %v492, 0.0
      %v509 = vmax.f32 %v493, 0.0
      %v510 = vmax.f32 %v494, 0.0
      %v511 = vmax.f32 %v495, 0.0
      %v512 = vmax.f32 %v496, 0.0
      %v513 = vmax.f32 %v497, 0.0
      %v514 = vmax.f32 %v498, 0.0
      %v515 = vmax.f32 %v499, 0.0
      %v516 = vmax.f32 %v500, 0.0
      %v517 = vmax.f32 %v501, 0.0
      %v518 = vmul.f32 %v459, %v462
      %v519 = vmul.f32 %v460, %v462
      %v520 = vadd.f32 %v518, %v465
      %v521 = vadd.f32 %v519, %v465
      %v522 = vmax.f32 %v520, 0.0
      %v523 = vmax.f32 %v521, 0.0
      %p524 = scmp.gt.s32.totalorder %s23, 0
      %s525 = scalar_select %p524, 1, 0
      %v526 = vstv %s525
      %vm527 = vcmp.eq.s32.totalorder %v526, 1
      %v528 = vsel %vm527, %v468, 0.0
      %v529 = vsel %vm527, %v469, 0.0
      %p530 = scmp.lt.s32.totalorder %s23, 1
      %s531 = scalar_select %p530, 1, 0
      %v532 = vstv %s531
      %vm533 = vcmp.eq.s32.totalorder %v532, 1
      %v534 = vsel %vm533, %v522, 0.0
      %v535 = vsel %vm533, %v523, 0.0
      %vm556 = vcmask 1040384
      %v557 = vrot.slane %v528, 7
      %v558 = vrot.slane %v529, 7
      %v559 = vsel %vm556, %v557, %v558
      %v560 = vrot.slane %v502, 7
      %v561 = vrot.slane %v503, 7
      %v562 = vsel %vm556, %v560, %v561
      %v563 = vrot.slane %v504, 7
      %v564 = vrot.slane %v505, 7
      %v565 = vsel %vm556, %v563, %v564
      %v566 = vrot.slane %v506, 7
      %v567 = vrot.slane %v507, 7
      %v568 = vsel %vm556, %v566, %v567
      %v569 = vrot.slane %v508, 7
      %v570 = vrot.slane %v509, 7
      %v571 = vsel %vm556, %v569, %v570
      %v572 = vrot.slane %v510, 7
      %v573 = vrot.slane %v511, 7
      %v574 = vsel %vm556, %v572, %v573
      %v575 = vrot.slane %v512, 7
      %v576 = vrot.slane %v513, 7
      %v577 = vsel %vm556, %v575, %v576
      %v578 = vrot.slane %v514, 7
      %v579 = vrot.slane %v515, 7
      %v580 = vsel %vm556, %v578, %v579
      %v581 = vrot.slane %v516, 7
      %v582 = vrot.slane %v517, 7
      %v583 = vsel %vm556, %v581, %v582
      %v584 = vrot.slane %v534, 7
      %v585 = vrot.slane %v535, 7
      %v586 = vsel %vm556, %v584, %v585
      %v607 = vsel %vm556, 0.0, %v557
      %v608 = vsel %vm556, 0.0, %v560
      %v609 = vsel %vm556, 0.0, %v563
      %v610 = vsel %vm556, 0.0, %v566
      %v611 = vsel %vm556, 0.0, %v569
      %v612 = vsel %vm556, 0.0, %v572
      %v613 = vsel %vm556, 0.0, %v575
      %v614 = vsel %vm556, 0.0, %v578
      %v615 = vsel %vm556, 0.0, %v581
      %v616 = vsel %vm556, 0.0, %v584
      %v617 = vsel %vm556, %v558, 0.0
      %v618 = vsel %vm556, %v561, 0.0
      %v619 = vsel %vm556, %v564, 0.0
      %v620 = vsel %vm556, %v567, 0.0
      %v621 = vsel %vm556, %v570, 0.0
      %v622 = vsel %vm556, %v573, 0.0
      %v623 = vsel %vm556, %v576, 0.0
      %v624 = vsel %vm556, %v579, 0.0
      %v625 = vsel %vm556, %v582, 0.0
      %v626 = vsel %vm556, %v585, 0.0
      %v627 = vld [vmem:[%s1] sm:$0xff]
      %vm644 = vcmask 1046528
      %v645 = vrot.slane %v607, 1
      %v646 = vrot.slane %v559, 1
      %v647 = vsel %vm644, %v645, %v646
      %v648 = vrot.slane %v617, 1
      %v649 = vsel %vm644, %v646, %v648
      %v650 = vrot.slane %v608, 1
      %v651 = vrot.slane %v562, 1
      %v652 = vsel %vm644, %v650, %v651
      %v653 = vrot.slane %v618, 1
      %v654 = vsel %vm644, %v651, %v653
      %v655 = vrot.slane %v609, 1
      %v656 = vrot.slane %v565, 1
      %v657 = vsel %vm644, %v655, %v656
      %v658 = vrot.slane %v619, 1
      %v659 = vsel %vm644, %v656, %v658
      %v660 = vrot.slane %v610, 1
      %v661 = vrot.slane %v568, 1
      %v662 = vsel %vm644, %v660, %v661
      %v663 = vrot.slane %v620, 1
      %v664 = vsel %vm644, %v661, %v663
      %v665 = vrot.slane %v611, 1
      %v666 = vrot.slane %v571, 1
      %v667 = vsel %vm644, %v665, %v666
      %v668 = vrot.slane %v621, 1
      %v669 = vsel %vm644, %v666, %v668
      %v670 = vrot.slane %v612, 1
      %v671 = vrot.slane %v574, 1
      %v672 = vsel %vm644, %v670, %v671
      %v673 = vrot.slane %v622, 1
      %v674 = vsel %vm644, %v671, %v673
      %v675 = vrot.slane %v613, 1
      %v676 = vrot.slane %v577, 1
      %v677 = vsel %vm644, %v675, %v676
      %v678 = vrot.slane %v623, 1
      %v679 = vsel %vm644, %v676, %v678
      %v680 = vrot.slane %v614, 1
      %v681 = vrot.slane %v580, 1
      %v682 = vsel %vm644, %v680, %v681
      %v683 = vrot.slane %v624, 1
      %v684 = vsel %vm644, %v681, %v683
      %s685 = scalar_lea.vmem %s1, 8
      %v686 = vld [vmem:[%s685] sm:$0xff]
      %vm687 = vcmask 64512
      %v688 = vsel %vm687, %v647, 0
      %v690 = vsel %vm687, %v649, 0
      %v692 = vsel %vm687, %v652, 0
      %v694 = vsel %vm687, %v654, 0
      %v696 = vsel %vm687, %v657, 0
      %v698 = vsel %vm687, %v659, 0
      %v700 = vsel %vm687, %v662, 0
      %v702 = vsel %vm687, %v664, 0
      %v704 = vsel %vm687, %v667, 0
      %v706 = vsel %vm687, %v669, 0
      %v708 = vsel %vm687, %v672, 0
      %v710 = vsel %vm687, %v674, 0
      %v712 = vsel %vm687, %v677, 0
      %v714 = vsel %vm687, %v679, 0
      %v716 = vsel %vm687, %v682, 0
      %v718 = vsel %vm687, %v684, 0
      %720 = vmatpush.msra.mxu0 0.0
      %721 = vmatpush.msra.mxu0 0.0
      %722 = vmatpush.msra.mxu0 0.0
      %723 = vmatpush.msra.mxu0 0.0
      %724 = vmatpush.msra.mxu0 0.0
      %725 = vmatpush.msra.mxu0 0.0
      %726 = vmatpush.msra.mxu0 0.0
      %727 = vmatpush.msra.mxu0 0.0
      %728 = vmatpush.msra.mxu0 0.0
      %729 = vmatpush.msra.mxu0 0.0
      %730 = vmatpush.msra.mxu0 0.0
      %731 = vmatpush.msra.mxu0 0.0
      %732 = vmatpush.msra.mxu0 0.0
      %733 = vmatpush.msra.mxu0 0.0
      %734 = vmatpush.msra.mxu0 0.0
      %735 = vmatpush.msra.mxu0 %v686
      %736 = vmatmul.f32.gmra.mxu0 %v688
      %v737 = vpop.f32.mrf.mxu0
      %v738 = vadd.f32 0.0, %v737
      %739 = vmatmul.f32.gmra.mxu0 %v690
      %v740 = vpop.f32.mrf.mxu0
      %v741 = vadd.f32 0.0, %v740
      %742 = vmatmul.f32.gmra.mxu0 %v692
      %v743 = vpop.f32.mrf.mxu0
      %v744 = vadd.f32 0.0, %v743
      %745 = vmatmul.f32.gmra.mxu0 %v694
      %v746 = vpop.f32.mrf.mxu0
      %v747 = vadd.f32 0.0, %v746
      %748 = vmatmul.f32.gmra.mxu0 %v696
      %v749 = vpop.f32.mrf.mxu0
      %v750 = vadd.f32 0.0, %v749
      %751 = vmatmul.f32.gmra.mxu0 %v698
      %v752 = vpop.f32.mrf.mxu0
      %v753 = vadd.f32 0.0, %v752
      %754 = vmatmul.f32.gmra.mxu0 %v700
      %v755 = vpop.f32.mrf.mxu0
      %v756 = vadd.f32 0.0, %v755
      %757 = vmatmul.f32.gmra.mxu0 %v702
      %v758 = vpop.f32.mrf.mxu0
      %v759 = vadd.f32 0.0, %v758
      %760 = vmatmul.f32.gmra.mxu0 %v704
      %v761 = vpop.f32.mrf.mxu0
      %v762 = vadd.f32 0.0, %v761
      %763 = vmatmul.f32.gmra.mxu0 %v706
      %v764 = vpop.f32.mrf.mxu0
      %v765 = vadd.f32 0.0, %v764
      %766 = vmatmul.f32.gmra.mxu0 %v708
      %v767 = vpop.f32.mrf.mxu0
      %v768 = vadd.f32 0.0, %v767
      %769 = vmatmul.f32.gmra.mxu0 %v710
      %v770 = vpop.f32.mrf.mxu0
      %v771 = vadd.f32 0.0, %v770
      %772 = vmatmul.f32.gmra.mxu0 %v712
      %v773 = vpop.f32.mrf.mxu0
      %v774 = vadd.f32 0.0, %v773
      %775 = vmatmul.f32.gmra.mxu0 %v714
      %v776 = vpop.f32.mrf.mxu0
      %v777 = vadd.f32 0.0, %v776
      %778 = vmatmul.f32.gmra.mxu0 %v716
      %v779 = vpop.f32.mrf.mxu0
      %v780 = vadd.f32 0.0, %v779
      %781 = vmatmul.f32.gmra.mxu0 %v718
      %v782 = vpop.f32.mrf.mxu0
      %v783 = vadd.f32 0.0, %v782
      %784 = vdwg.mxu0
      %v785 = vsel %vm687, %v607, 0
      %v787 = vsel %vm687, %v559, 0
      %v789 = vsel %vm687, %v608, 0
      %v791 = vsel %vm687, %v562, 0
      %v793 = vsel %vm687, %v609, 0
      %v795 = vsel %vm687, %v565, 0
      %v797 = vsel %vm687, %v610, 0
      %v799 = vsel %vm687, %v568, 0
      %v801 = vsel %vm687, %v611, 0
      %v803 = vsel %vm687, %v571, 0
      %v805 = vsel %vm687, %v612, 0
      %v807 = vsel %vm687, %v574, 0
      %v809 = vsel %vm687, %v613, 0
      %v811 = vsel %vm687, %v577, 0
      %v813 = vsel %vm687, %v614, 0
      %v815 = vsel %vm687, %v580, 0
      %817 = vmatpush.msra.mxu0 0.0
      %818 = vmatpush.msra.mxu0 0.0
      %819 = vmatpush.msra.mxu0 0.0
      %820 = vmatpush.msra.mxu0 0.0
      %821 = vmatpush.msra.mxu0 0.0
      %822 = vmatpush.msra.mxu0 0.0
      %823 = vmatpush.msra.mxu0 0.0
      %824 = vmatpush.msra.mxu0 0.0
      %825 = vmatpush.msra.mxu0 0.0
      %826 = vmatpush.msra.mxu0 0.0
      %827 = vmatpush.msra.mxu0 0.0
      %828 = vmatpush.msra.mxu0 0.0
      %829 = vmatpush.msra.mxu0 0.0
      %830 = vmatpush.msra.mxu0 0.0
      %831 = vmatpush.msra.mxu0 0.0
      %832 = vmatpush.msra.mxu0 %v627
      %833 = vmatmul.f32.gmra.mxu0 %v785
      %v834 = vpop.f32.mrf.mxu0
      %v835 = vadd.f32 %v738, %v834
      %836 = vmatmul.f32.gmra.mxu0 %v787
      %v837 = vpop.f32.mrf.mxu0
      %v838 = vadd.f32 %v741, %v837
      %839 = vmatmul.f32.gmra.mxu0 %v789
      %v840 = vpop.f32.mrf.mxu0
      %v841 = vadd.f32 %v744, %v840
      %842 = vmatmul.f32.gmra.mxu0 %v791
      %v843 = vpop.f32.mrf.mxu0
      %v844 = vadd.f32 %v747, %v843
      %845 = vmatmul.f32.gmra.mxu0 %v793
      %v846 = vpop.f32.mrf.mxu0
      %v847 = vadd.f32 %v750, %v846
      %848 = vmatmul.f32.gmra.mxu0 %v795
      %v849 = vpop.f32.mrf.mxu0
      %v850 = vadd.f32 %v753, %v849
      %851 = vmatmul.f32.gmra.mxu0 %v797
      %v852 = vpop.f32.mrf.mxu0
      %v853 = vadd.f32 %v756, %v852
      %854 = vmatmul.f32.gmra.mxu0 %v799
      %v855 = vpop.f32.mrf.mxu0
      %v856 = vadd.f32 %v759, %v855
      %857 = vmatmul.f32.gmra.mxu0 %v801
      %v858 = vpop.f32.mrf.mxu0
      %v859 = vadd.f32 %v762, %v858
      %860 = vmatmul.f32.gmra.mxu0 %v803
      %v861 = vpop.f32.mrf.mxu0
      %v862 = vadd.f32 %v765, %v861
      %863 = vmatmul.f32.gmra.mxu0 %v805
      %v864 = vpop.f32.mrf.mxu0
      %v865 = vadd.f32 %v768, %v864
      %866 = vmatmul.f32.gmra.mxu0 %v807
      %v867 = vpop.f32.mrf.mxu0
      %v868 = vadd.f32 %v771, %v867
      %869 = vmatmul.f32.gmra.mxu0 %v809
      %v870 = vpop.f32.mrf.mxu0
      %v871 = vadd.f32 %v774, %v870
      %872 = vmatmul.f32.gmra.mxu0 %v811
      %v873 = vpop.f32.mrf.mxu0
      %v874 = vadd.f32 %v777, %v873
      %875 = vmatmul.f32.gmra.mxu0 %v813
      %v876 = vpop.f32.mrf.mxu0
      %v877 = vadd.f32 %v780, %v876
      %878 = vmatmul.f32.gmra.mxu0 %v815
      %v879 = vpop.f32.mrf.mxu0
      %v880 = vadd.f32 %v783, %v879
      %881 = vdwg.mxu0
      %vm882 = vcmask 1045504
      %v883 = vrot.slane %v607, 2
      %v884 = vrot.slane %v559, 2
      %v885 = vsel %vm882, %v883, %v884
      %v886 = vrot.slane %v617, 2
      %v887 = vsel %vm882, %v884, %v886
      %v888 = vrot.slane %v608, 2
      %v889 = vrot.slane %v562, 2
      %v890 = vsel %vm882, %v888, %v889
      %v891 = vrot.slane %v618, 2
      %v892 = vsel %vm882, %v889, %v891
      %v893 = vrot.slane %v609, 2
      %v894 = vrot.slane %v565, 2
      %v895 = vsel %vm882, %v893, %v894
      %v896 = vrot.slane %v619, 2
      %v897 = vsel %vm882, %v894, %v896
      %v898 = vrot.slane %v610, 2
      %v899 = vrot.slane %v568, 2
      %v900 = vsel %vm882, %v898, %v899
      %v901 = vrot.slane %v620, 2
      %v902 = vsel %vm882, %v899, %v901
      %v903 = vrot.slane %v611, 2
      %v904 = vrot.slane %v571, 2
      %v905 = vsel %vm882, %v903, %v904
      %v906 = vrot.slane %v621, 2
      %v907 = vsel %vm882, %v904, %v906
      %v908 = vrot.slane %v612, 2
      %v909 = vrot.slane %v574, 2
      %v910 = vsel %vm882, %v908, %v909
      %v911 = vrot.slane %v622, 2
      %v912 = vsel %vm882, %v909, %v911
      %v913 = vrot.slane %v613, 2
      %v914 = vrot.slane %v577, 2
      %v915 = vsel %vm882, %v913, %v914
      %v916 = vrot.slane %v623, 2
      %v917 = vsel %vm882, %v914, %v916
      %v918 = vrot.slane %v614, 2
      %v919 = vrot.slane %v580, 2
      %v920 = vsel %vm882, %v918, %v919
      %v921 = vrot.slane %v624, 2
      %v922 = vsel %vm882, %v919, %v921
      %s923 = scalar_lea.vmem %s1, 16
      %v924 = vld [vmem:[%s923] sm:$0xff]
      %v925 = vsel %vm687, %v885, 0
      %v927 = vsel %vm687, %v887, 0
      %v929 = vsel %vm687, %v890, 0
      %v931 = vsel %vm687, %v892, 0
      %v933 = vsel %vm687, %v895, 0
      %v935 = vsel %vm687, %v897, 0
      %v937 = vsel %vm687, %v900, 0
      %v939 = vsel %vm687, %v902, 0
      %v941 = vsel %vm687, %v905, 0
      %v943 = vsel %vm687, %v907, 0
      %v945 = vsel %vm687, %v910, 0
      %v947 = vsel %vm687, %v912, 0
      %v949 = vsel %vm687, %v915, 0
      %v951 = vsel %vm687, %v917, 0
      %v953 = vsel %vm687, %v920, 0
      %v955 = vsel %vm687, %v922, 0
      %957 = vmatpush.msra.mxu0 0.0
      %958 = vmatpush.msra.mxu0 0.0
      %959 = vmatpush.msra.mxu0 0.0
      %960 = vmatpush.msra.mxu0 0.0
      %961 = vmatpush.msra.mxu0 0.0
      %962 = vmatpush.msra.mxu0 0.0
      %963 = vmatpush.msra.mxu0 0.0
      %964 = vmatpush.msra.mxu0 0.0
      %965 = vmatpush.msra.mxu0 0.0
      %966 = vmatpush.msra.mxu0 0.0
      %967 = vmatpush.msra.mxu0 0.0
      %968 = vmatpush.msra.mxu0 0.0
      %969 = vmatpush.msra.mxu0 0.0
      %970 = vmatpush.msra.mxu0 0.0
      %971 = vmatpush.msra.mxu0 0.0
      %972 = vmatpush.msra.mxu0 %v924
      %973 = vmatmul.f32.gmra.mxu0 %v925
      %v974 = vpop.f32.mrf.mxu0
      %v975 = vadd.f32 0.0, %v974
      %976 = vmatmul.f32.gmra.mxu0 %v927
      %v977 = vpop.f32.mrf.mxu0
      %v978 = vadd.f32 0.0, %v977
      %979 = vmatmul.f32.gmra.mxu0 %v929
      %v980 = vpop.f32.mrf.mxu0
      %v981 = vadd.f32 0.0, %v980
      %982 = vmatmul.f32.gmra.mxu0 %v931
      %v983 = vpop.f32.mrf.mxu0
      %v984 = vadd.f32 0.0, %v983
      %985 = vmatmul.f32.gmra.mxu0 %v933
      %v986 = vpop.f32.mrf.mxu0
      %v987 = vadd.f32 0.0, %v986
      %988 = vmatmul.f32.gmra.mxu0 %v935
      %v989 = vpop.f32.mrf.mxu0
      %v990 = vadd.f32 0.0, %v989
      %991 = vmatmul.f32.gmra.mxu0 %v937
      %v992 = vpop.f32.mrf.mxu0
      %v993 = vadd.f32 0.0, %v992
      %994 = vmatmul.f32.gmra.mxu0 %v939
      %v995 = vpop.f32.mrf.mxu0
      %v996 = vadd.f32 0.0, %v995
      %997 = vmatmul.f32.gmra.mxu0 %v941
      %v998 = vpop.f32.mrf.mxu0
      %v999 = vadd.f32 0.0, %v998
      %1000 = vmatmul.f32.gmra.mxu0 %v943
      %v1001 = vpop.f32.mrf.mxu0
      %v1002 = vadd.f32 0.0, %v1001
      %1003 = vmatmul.f32.gmra.mxu0 %v945
      %v1004 = vpop.f32.mrf.mxu0
      %v1005 = vadd.f32 0.0, %v1004
      %1006 = vmatmul.f32.gmra.mxu0 %v947
      %v1007 = vpop.f32.mrf.mxu0
      %v1008 = vadd.f32 0.0, %v1007
      %1009 = vmatmul.f32.gmra.mxu0 %v949
      %v1010 = vpop.f32.mrf.mxu0
      %v1011 = vadd.f32 0.0, %v1010
      %1012 = vmatmul.f32.gmra.mxu0 %v951
      %v1013 = vpop.f32.mrf.mxu0
      %v1014 = vadd.f32 0.0, %v1013
      %1015 = vmatmul.f32.gmra.mxu0 %v953
      %v1016 = vpop.f32.mrf.mxu0
      %v1017 = vadd.f32 0.0, %v1016
      %1018 = vmatmul.f32.gmra.mxu0 %v955
      %v1019 = vpop.f32.mrf.mxu0
      %v1020 = vadd.f32 0.0, %v1019
      %1021 = vdwg.mxu0
      %v1022 = vadd.f32 %v835, %v975
      %v1023 = vadd.f32 %v838, %v978
      %v1024 = vadd.f32 %v841, %v981
      %v1025 = vadd.f32 %v844, %v984
      %v1026 = vadd.f32 %v847, %v987
      %v1027 = vadd.f32 %v850, %v990
      %v1028 = vadd.f32 %v853, %v993
      %v1029 = vadd.f32 %v856, %v996
      %v1030 = vadd.f32 %v859, %v999
      %v1031 = vadd.f32 %v862, %v1002
      %v1032 = vadd.f32 %v865, %v1005
      %v1033 = vadd.f32 %v868, %v1008
      %v1034 = vadd.f32 %v871, %v1011
      %v1035 = vadd.f32 %v874, %v1014
      %v1036 = vadd.f32 %v877, %v1017
      %v1037 = vadd.f32 %v880, %v1020
      %s1038 = scalar_lea.vmem %s1, 24
      %v1039 = vld [vmem:[%s1038] sm:$0xff]
      %v1041 = vsel %vm687, %v615, 0
      %v1043 = vsel %vm687, %v583, 0
      %1045 = vmatpush.msra.mxu0 0.0
      %1046 = vmatpush.msra.mxu0 0.0
      %1047 = vmatpush.msra.mxu0 0.0
      %1048 = vmatpush.msra.mxu0 0.0
      %1049 = vmatpush.msra.mxu0 0.0
      %1050 = vmatpush.msra.mxu0 0.0
      %1051 = vmatpush.msra.mxu0 0.0
      %1052 = vmatpush.msra.mxu0 0.0
      %1053 = vmatpush.msra.mxu0 0.0
      %1054 = vmatpush.msra.mxu0 0.0
      %1055 = vmatpush.msra.mxu0 0.0
      %1056 = vmatpush.msra.mxu0 0.0
      %1057 = vmatpush.msra.mxu0 0.0
      %1058 = vmatpush.msra.mxu0 0.0
      %1059 = vmatpush.msra.mxu0 0.0
      %1060 = vmatpush.msra.mxu0 %v1039
      %1061 = vmatmul.f32.gmra.mxu0 %v789
      %v1062 = vpop.f32.mrf.mxu0
      %v1063 = vadd.f32 0.0, %v1062
      %1064 = vmatmul.f32.gmra.mxu0 %v791
      %v1065 = vpop.f32.mrf.mxu0
      %v1066 = vadd.f32 0.0, %v1065
      %1067 = vmatmul.f32.gmra.mxu0 %v793
      %v1068 = vpop.f32.mrf.mxu0
      %v1069 = vadd.f32 0.0, %v1068
      %1070 = vmatmul.f32.gmra.mxu0 %v795
      %v1071 = vpop.f32.mrf.mxu0
      %v1072 = vadd.f32 0.0, %v1071
      %1073 = vmatmul.f32.gmra.mxu0 %v797
      %v1074 = vpop.f32.mrf.mxu0
      %v1075 = vadd.f32 0.0, %v1074
      %1076 = vmatmul.f32.gmra.mxu0 %v799
      %v1077 = vpop.f32.mrf.mxu0
      %v1078 = vadd.f32 0.0, %v1077
      %1079 = vmatmul.f32.gmra.mxu0 %v801
      %v1080 = vpop.f32.mrf.mxu0
      %v1081 = vadd.f32 0.0, %v1080
      %1082 = vmatmul.f32.gmra.mxu0 %v803
      %v1083 = vpop.f32.mrf.mxu0
      %v1084 = vadd.f32 0.0, %v1083
      %1085 = vmatmul.f32.gmra.mxu0 %v805
      %v1086 = vpop.f32.mrf.mxu0
      %v1087 = vadd.f32 0.0, %v1086
      %1088 = vmatmul.f32.gmra.mxu0 %v807
      %v1089 = vpop.f32.mrf.mxu0
      %v1090 = vadd.f32 0.0, %v1089
      %1091 = vmatmul.f32.gmra.mxu0 %v809
      %v1092 = vpop.f32.mrf.mxu0
      %v1093 = vadd.f32 0.0, %v1092
      %1094 = vmatmul.f32.gmra.mxu0 %v811
      %v1095 = vpop.f32.mrf.mxu0
      %v1096 = vadd.f32 0.0, %v1095
      %1097 = vmatmul.f32.gmra.mxu0 %v813
      %v1098 = vpop.f32.mrf.mxu0
      %v1099 = vadd.f32 0.0, %v1098
      %1100 = vmatmul.f32.gmra.mxu0 %v815
      %v1101 = vpop.f32.mrf.mxu0
      %v1102 = vadd.f32 0.0, %v1101
      %1103 = vmatmul.f32.gmra.mxu0 %v1041
      %v1104 = vpop.f32.mrf.mxu0
      %v1105 = vadd.f32 0.0, %v1104
      %1106 = vmatmul.f32.gmra.mxu0 %v1043
      %v1107 = vpop.f32.mrf.mxu0
      %v1108 = vadd.f32 0.0, %v1107
      %1109 = vdwg.mxu0
      %v1110 = vadd.f32 %v1022, %v1063
      %v1111 = vadd.f32 %v1023, %v1066
      %v1112 = vadd.f32 %v1024, %v1069
      %v1113 = vadd.f32 %v1025, %v1072
      %v1114 = vadd.f32 %v1026, %v1075
      %v1115 = vadd.f32 %v1027, %v1078
      %v1116 = vadd.f32 %v1028, %v1081
      %v1117 = vadd.f32 %v1029, %v1084
      %v1118 = vadd.f32 %v1030, %v1087
      %v1119 = vadd.f32 %v1031, %v1090
      %v1120 = vadd.f32 %v1032, %v1093
      %v1121 = vadd.f32 %v1033, %v1096
      %v1122 = vadd.f32 %v1034, %v1099
      %v1123 = vadd.f32 %v1035, %v1102
      %v1124 = vadd.f32 %v1036, %v1105
      %v1125 = vadd.f32 %v1037, %v1108
      %v1127 = vrot.slane %v615, 1
      %v1128 = vrot.slane %v583, 1
      %v1129 = vsel %vm644, %v1127, %v1128
      %v1130 = vrot.slane %v625, 1
      %v1131 = vsel %vm644, %v1128, %v1130
      %s1132 = scalar_lea.vmem %s1, 32
      %v1133 = vld [vmem:[%s1132] sm:$0xff]
      %v1134 = vsel %vm687, %v1129, 0
      %v1136 = vsel %vm687, %v1131, 0
      %1138 = vmatpush.msra.mxu0 0.0
      %1139 = vmatpush.msra.mxu0 0.0
      %1140 = vmatpush.msra.mxu0 0.0
      %1141 = vmatpush.msra.mxu0 0.0
      %1142 = vmatpush.msra.mxu0 0.0
      %1143 = vmatpush.msra.mxu0 0.0
      %1144 = vmatpush.msra.mxu0 0.0
      %1145 = vmatpush.msra.mxu0 0.0
      %1146 = vmatpush.msra.mxu0 0.0
      %1147 = vmatpush.msra.mxu0 0.0
      %1148 = vmatpush.msra.mxu0 0.0
      %1149 = vmatpush.msra.mxu0 0.0
      %1150 = vmatpush.msra.mxu0 0.0
      %1151 = vmatpush.msra.mxu0 0.0
      %1152 = vmatpush.msra.mxu0 0.0
      %1153 = vmatpush.msra.mxu0 %v1133
      %1154 = vmatmul.f32.gmra.mxu0 %v692
      %v1155 = vpop.f32.mrf.mxu0
      %v1156 = vadd.f32 0.0, %v1155
      %1157 = vmatmul.f32.gmra.mxu0 %v694
      %v1158 = vpop.f32.mrf.mxu0
      %v1159 = vadd.f32 0.0, %v1158
      %1160 = vmatmul.f32.gmra.mxu0 %v696
      %v1161 = vpop.f32.mrf.mxu0
      %v1162 = vadd.f32 0.0, %v1161
      %1163 = vmatmul.f32.gmra.mxu0 %v698
      %v1164 = vpop.f32.mrf.mxu0
      %v1165 = vadd.f32 0.0, %v1164
      %1166 = vmatmul.f32.gmra.mxu0 %v700
      %v1167 = vpop.f32.mrf.mxu0
      %v1168 = vadd.f32 0.0, %v1167
      %1169 = vmatmul.f32.gmra.mxu0 %v702
      %v1170 = vpop.f32.mrf.mxu0
      %v1171 = vadd.f32 0.0, %v1170
      %1172 = vmatmul.f32.gmra.mxu0 %v704
      %v1173 = vpop.f32.mrf.mxu0
      %v1174 = vadd.f32 0.0, %v1173
      %1175 = vmatmul.f32.gmra.mxu0 %v706
      %v1176 = vpop.f32.mrf.mxu0
      %v1177 = vadd.f32 0.0, %v1176
      %1178 = vmatmul.f32.gmra.mxu0 %v708
      %v1179 = vpop.f32.mrf.mxu0
      %v1180 = vadd.f32 0.0, %v1179
      %1181 = vmatmul.f32.gmra.mxu0 %v710
      %v1182 = vpop.f32.mrf.mxu0
      %v1183 = vadd.f32 0.0, %v1182
      %1184 = vmatmul.f32.gmra.mxu0 %v712
      %v1185 = vpop.f32.mrf.mxu0
      %v1186 = vadd.f32 0.0, %v1185
      %1187 = vmatmul.f32.gmra.mxu0 %v714
      %v1188 = vpop.f32.mrf.mxu0
      %v1189 = vadd.f32 0.0, %v1188
      %1190 = vmatmul.f32.gmra.mxu0 %v716
      %v1191 = vpop.f32.mrf.mxu0
      %v1192 = vadd.f32 0.0, %v1191
      %1193 = vmatmul.f32.gmra.mxu0 %v718
      %v1194 = vpop.f32.mrf.mxu0
      %v1195 = vadd.f32 0.0, %v1194
      %1196 = vmatmul.f32.gmra.mxu0 %v1134
      %v1197 = vpop.f32.mrf.mxu0
      %v1198 = vadd.f32 0.0, %v1197
      %1199 = vmatmul.f32.gmra.mxu0 %v1136
      %v1200 = vpop.f32.mrf.mxu0
      %v1201 = vadd.f32 0.0, %v1200
      %1202 = vdwg.mxu0
      %v1203 = vadd.f32 %v1110, %v1156
      %v1204 = vadd.f32 %v1111, %v1159
      %v1205 = vadd.f32 %v1112, %v1162
      %v1206 = vadd.f32 %v1113, %v1165
      %v1207 = vadd.f32 %v1114, %v1168
      %v1208 = vadd.f32 %v1115, %v1171
      %v1209 = vadd.f32 %v1116, %v1174
      %v1210 = vadd.f32 %v1117, %v1177
      %v1211 = vadd.f32 %v1118, %v1180
      %v1212 = vadd.f32 %v1119, %v1183
      %v1213 = vadd.f32 %v1120, %v1186
      %v1214 = vadd.f32 %v1121, %v1189
      %v1215 = vadd.f32 %v1122, %v1192
      %v1216 = vadd.f32 %v1123, %v1195
      %v1217 = vadd.f32 %v1124, %v1198
      %v1218 = vadd.f32 %v1125, %v1201
      %v1219 = vrot.slane %v615, 2
      %v1220 = vrot.slane %v583, 2
      %v1221 = vsel %vm882, %v1219, %v1220
      %v1222 = vrot.slane %v625, 2
      %v1223 = vsel %vm882, %v1220, %v1222
      %s1224 = scalar_lea.vmem %s1, 40
      %v1225 = vld [vmem:[%s1224] sm:$0xff]
      %v1226 = vsel %vm687, %v1221, 0
      %v1228 = vsel %vm687, %v1223, 0
      %1230 = vmatpush.msra.mxu0 0.0
      %1231 = vmatpush.msra.mxu0 0.0
      %1232 = vmatpush.msra.mxu0 0.0
      %1233 = vmatpush.msra.mxu0 0.0
      %1234 = vmatpush.msra.mxu0 0.0
      %1235 = vmatpush.msra.mxu0 0.0
      %1236 = vmatpush.msra.mxu0 0.0
      %1237 = vmatpush.msra.mxu0 0.0
      %1238 = vmatpush.msra.mxu0 0.0
      %1239 = vmatpush.msra.mxu0 0.0
      %1240 = vmatpush.msra.mxu0 0.0
      %1241 = vmatpush.msra.mxu0 0.0
      %1242 = vmatpush.msra.mxu0 0.0
      %1243 = vmatpush.msra.mxu0 0.0
      %1244 = vmatpush.msra.mxu0 0.0
      %1245 = vmatpush.msra.mxu0 %v1225
      %1246 = vmatmul.f32.gmra.mxu0 %v929
      %v1247 = vpop.f32.mrf.mxu0
      %v1248 = vadd.f32 0.0, %v1247
      %1249 = vmatmul.f32.gmra.mxu0 %v931
      %v1250 = vpop.f32.mrf.mxu0
      %v1251 = vadd.f32 0.0, %v1250
      %1252 = vmatmul.f32.gmra.mxu0 %v933
      %v1253 = vpop.f32.mrf.mxu0
      %v1254 = vadd.f32 0.0, %v1253
      %1255 = vmatmul.f32.gmra.mxu0 %v935
      %v1256 = vpop.f32.mrf.mxu0
      %v1257 = vadd.f32 0.0, %v1256
      %1258 = vmatmul.f32.gmra.mxu0 %v937
      %v1259 = vpop.f32.mrf.mxu0
      %v1260 = vadd.f32 0.0, %v1259
      %1261 = vmatmul.f32.gmra.mxu0 %v939
      %v1262 = vpop.f32.mrf.mxu0
      %v1263 = vadd.f32 0.0, %v1262
      %1264 = vmatmul.f32.gmra.mxu0 %v941
      %v1265 = vpop.f32.mrf.mxu0
      %v1266 = vadd.f32 0.0, %v1265
      %1267 = vmatmul.f32.gmra.mxu0 %v943
      %v1268 = vpop.f32.mrf.mxu0
      %v1269 = vadd.f32 0.0, %v1268
      %1270 = vmatmul.f32.gmra.mxu0 %v945
      %v1271 = vpop.f32.mrf.mxu0
      %v1272 = vadd.f32 0.0, %v1271
      %1273 = vmatmul.f32.gmra.mxu0 %v947
      %v1274 = vpop.f32.mrf.mxu0
      %v1275 = vadd.f32 0.0, %v1274
      %1276 = vmatmul.f32.gmra.mxu0 %v949
      %v1277 = vpop.f32.mrf.mxu0
      %v1278 = vadd.f32 0.0, %v1277
      %1279 = vmatmul.f32.gmra.mxu0 %v951
      %v1280 = vpop.f32.mrf.mxu0
      %v1281 = vadd.f32 0.0, %v1280
      %1282 = vmatmul.f32.gmra.mxu0 %v953
      %v1283 = vpop.f32.mrf.mxu0
      %v1284 = vadd.f32 0.0, %v1283
      %1285 = vmatmul.f32.gmra.mxu0 %v955
      %v1286 = vpop.f32.mrf.mxu0
      %v1287 = vadd.f32 0.0, %v1286
      %1288 = vmatmul.f32.gmra.mxu0 %v1226
      %v1289 = vpop.f32.mrf.mxu0
      %v1290 = vadd.f32 0.0, %v1289
      %1291 = vmatmul.f32.gmra.mxu0 %v1228
      %v1292 = vpop.f32.mrf.mxu0
      %v1293 = vadd.f32 0.0, %v1292
      %1294 = vdwg.mxu0
      %v1295 = vadd.f32 %v1203, %v1248
      %v1296 = vadd.f32 %v1204, %v1251
      %v1297 = vadd.f32 %v1205, %v1254
      %v1298 = vadd.f32 %v1206, %v1257
      %v1299 = vadd.f32 %v1207, %v1260
      %v1300 = vadd.f32 %v1208, %v1263
      %v1301 = vadd.f32 %v1209, %v1266
      %v1302 = vadd.f32 %v1210, %v1269
      %v1303 = vadd.f32 %v1211, %v1272
      %v1304 = vadd.f32 %v1212, %v1275
      %v1305 = vadd.f32 %v1213, %v1278
      %v1306 = vadd.f32 %v1214, %v1281
      %v1307 = vadd.f32 %v1215, %v1284
      %v1308 = vadd.f32 %v1216, %v1287
      %v1309 = vadd.f32 %v1217, %v1290
      %v1310 = vadd.f32 %v1218, %v1293
      %s1311 = scalar_lea.vmem %s1, 48
      %v1312 = vld [vmem:[%s1311] sm:$0xff]
      %v1314 = vsel %vm687, %v616, 0
      %v1316 = vsel %vm687, %v586, 0
      %1318 = vmatpush.msra.mxu0 0.0
      %1319 = vmatpush.msra.mxu0 0.0
      %1320 = vmatpush.msra.mxu0 0.0
      %1321 = vmatpush.msra.mxu0 0.0
      %1322 = vmatpush.msra.mxu0 0.0
      %1323 = vmatpush.msra.mxu0 0.0
      %1324 = vmatpush.msra.mxu0 0.0
      %1325 = vmatpush.msra.mxu0 0.0
      %1326 = vmatpush.msra.mxu0 0.0
      %1327 = vmatpush.msra.mxu0 0.0
      %1328 = vmatpush.msra.mxu0 0.0
      %1329 = vmatpush.msra.mxu0 0.0
      %1330 = vmatpush.msra.mxu0 0.0
      %1331 = vmatpush.msra.mxu0 0.0
      %1332 = vmatpush.msra.mxu0 0.0
      %1333 = vmatpush.msra.mxu0 %v1312
      %1334 = vmatmul.f32.gmra.mxu0 %v793
      %v1335 = vpop.f32.mrf.mxu0
      %v1336 = vadd.f32 0.0, %v1335
      %1337 = vmatmul.f32.gmra.mxu0 %v795
      %v1338 = vpop.f32.mrf.mxu0
      %v1339 = vadd.f32 0.0, %v1338
      %1340 = vmatmul.f32.gmra.mxu0 %v797
      %v1341 = vpop.f32.mrf.mxu0
      %v1342 = vadd.f32 0.0, %v1341
      %1343 = vmatmul.f32.gmra.mxu0 %v799
      %v1344 = vpop.f32.mrf.mxu0
      %v1345 = vadd.f32 0.0, %v1344
      %1346 = vmatmul.f32.gmra.mxu0 %v801
      %v1347 = vpop.f32.mrf.mxu0
      %v1348 = vadd.f32 0.0, %v1347
      %1349 = vmatmul.f32.gmra.mxu0 %v803
      %v1350 = vpop.f32.mrf.mxu0
      %v1351 = vadd.f32 0.0, %v1350
      %1352 = vmatmul.f32.gmra.mxu0 %v805
      %v1353 = vpop.f32.mrf.mxu0
      %v1354 = vadd.f32 0.0, %v1353
      %1355 = vmatmul.f32.gmra.mxu0 %v807
      %v1356 = vpop.f32.mrf.mxu0
      %v1357 = vadd.f32 0.0, %v1356
      %1358 = vmatmul.f32.gmra.mxu0 %v809
      %v1359 = vpop.f32.mrf.mxu0
      %v1360 = vadd.f32 0.0, %v1359
      %1361 = vmatmul.f32.gmra.mxu0 %v811
      %v1362 = vpop.f32.mrf.mxu0
      %v1363 = vadd.f32 0.0, %v1362
      %1364 = vmatmul.f32.gmra.mxu0 %v813
      %v1365 = vpop.f32.mrf.mxu0
      %v1366 = vadd.f32 0.0, %v1365
      %1367 = vmatmul.f32.gmra.mxu0 %v815
      %v1368 = vpop.f32.mrf.mxu0
      %v1369 = vadd.f32 0.0, %v1368
      %1370 = vmatmul.f32.gmra.mxu0 %v1041
      %v1371 = vpop.f32.mrf.mxu0
      %v1372 = vadd.f32 0.0, %v1371
      %1373 = vmatmul.f32.gmra.mxu0 %v1043
      %v1374 = vpop.f32.mrf.mxu0
      %v1375 = vadd.f32 0.0, %v1374
      %1376 = vmatmul.f32.gmra.mxu0 %v1314
      %v1377 = vpop.f32.mrf.mxu0
      %v1378 = vadd.f32 0.0, %v1377
      %1379 = vmatmul.f32.gmra.mxu0 %v1316
      %v1380 = vpop.f32.mrf.mxu0
      %v1381 = vadd.f32 0.0, %v1380
      %1382 = vdwg.mxu0
      %v1383 = vadd.f32 %v1295, %v1336
      %v1384 = vadd.f32 %v1296, %v1339
      %v1385 = vadd.f32 %v1297, %v1342
      %v1386 = vadd.f32 %v1298, %v1345
      %v1387 = vadd.f32 %v1299, %v1348
      %v1388 = vadd.f32 %v1300, %v1351
      %v1389 = vadd.f32 %v1301, %v1354
      %v1390 = vadd.f32 %v1302, %v1357
      %v1391 = vadd.f32 %v1303, %v1360
      %v1392 = vadd.f32 %v1304, %v1363
      %v1393 = vadd.f32 %v1305, %v1366
      %v1394 = vadd.f32 %v1306, %v1369
      %v1395 = vadd.f32 %v1307, %v1372
      %v1396 = vadd.f32 %v1308, %v1375
      %v1397 = vadd.f32 %v1309, %v1378
      %v1398 = vadd.f32 %v1310, %v1381
      %v1400 = vrot.slane %v616, 1
      %v1401 = vrot.slane %v586, 1
      %v1402 = vsel %vm644, %v1400, %v1401
      %v1403 = vrot.slane %v626, 1
      %v1404 = vsel %vm644, %v1401, %v1403
      %s1405 = scalar_lea.vmem %s1, 56
      %v1406 = vld [vmem:[%s1405] sm:$0xff]
      %v1407 = vsel %vm687, %v1402, 0
      %v1409 = vsel %vm687, %v1404, 0
      %1411 = vmatpush.msra.mxu0 0.0
      %1412 = vmatpush.msra.mxu0 0.0
      %1413 = vmatpush.msra.mxu0 0.0
      %1414 = vmatpush.msra.mxu0 0.0
      %1415 = vmatpush.msra.mxu0 0.0
      %1416 = vmatpush.msra.mxu0 0.0
      %1417 = vmatpush.msra.mxu0 0.0
      %1418 = vmatpush.msra.mxu0 0.0
      %1419 = vmatpush.msra.mxu0 0.0
      %1420 = vmatpush.msra.mxu0 0.0
      %1421 = vmatpush.msra.mxu0 0.0
      %1422 = vmatpush.msra.mxu0 0.0
      %1423 = vmatpush.msra.mxu0 0.0
      %1424 = vmatpush.msra.mxu0 0.0
      %1425 = vmatpush.msra.mxu0 0.0
      %1426 = vmatpush.msra.mxu0 %v1406
      %1427 = vmatmul.f32.gmra.mxu0 %v696
      %v1428 = vpop.f32.mrf.mxu0
      %v1429 = vadd.f32 0.0, %v1428
      %1430 = vmatmul.f32.gmra.mxu0 %v698
      %v1431 = vpop.f32.mrf.mxu0
      %v1432 = vadd.f32 0.0, %v1431
      %1433 = vmatmul.f32.gmra.mxu0 %v700
      %v1434 = vpop.f32.mrf.mxu0
      %v1435 = vadd.f32 0.0, %v1434
      %1436 = vmatmul.f32.gmra.mxu0 %v702
      %v1437 = vpop.f32.mrf.mxu0
      %v1438 = vadd.f32 0.0, %v1437
      %1439 = vmatmul.f32.gmra.mxu0 %v704
      %v1440 = vpop.f32.mrf.mxu0
      %v1441 = vadd.f32 0.0, %v1440
      %1442 = vmatmul.f32.gmra.mxu0 %v706
      %v1443 = vpop.f32.mrf.mxu0
      %v1444 = vadd.f32 0.0, %v1443
      %1445 = vmatmul.f32.gmra.mxu0 %v708
      %v1446 = vpop.f32.mrf.mxu0
      %v1447 = vadd.f32 0.0, %v1446
      %1448 = vmatmul.f32.gmra.mxu0 %v710
      %v1449 = vpop.f32.mrf.mxu0
      %v1450 = vadd.f32 0.0, %v1449
      %1451 = vmatmul.f32.gmra.mxu0 %v712
      %v1452 = vpop.f32.mrf.mxu0
      %v1453 = vadd.f32 0.0, %v1452
      %1454 = vmatmul.f32.gmra.mxu0 %v714
      %v1455 = vpop.f32.mrf.mxu0
      %v1456 = vadd.f32 0.0, %v1455
      %1457 = vmatmul.f32.gmra.mxu0 %v716
      %v1458 = vpop.f32.mrf.mxu0
      %v1459 = vadd.f32 0.0, %v1458
      %1460 = vmatmul.f32.gmra.mxu0 %v718
      %v1461 = vpop.f32.mrf.mxu0
      %v1462 = vadd.f32 0.0, %v1461
      %1463 = vmatmul.f32.gmra.mxu0 %v1134
      %v1464 = vpop.f32.mrf.mxu0
      %v1465 = vadd.f32 0.0, %v1464
      %1466 = vmatmul.f32.gmra.mxu0 %v1136
      %v1467 = vpop.f32.mrf.mxu0
      %v1468 = vadd.f32 0.0, %v1467
      %1469 = vmatmul.f32.gmra.mxu0 %v1407
      %v1470 = vpop.f32.mrf.mxu0
      %v1471 = vadd.f32 0.0, %v1470
      %1472 = vmatmul.f32.gmra.mxu0 %v1409
      %v1473 = vpop.f32.mrf.mxu0
      %v1474 = vadd.f32 0.0, %v1473
      %1475 = vdwg.mxu0
      %v1476 = vadd.f32 %v1383, %v1429
      %v1477 = vadd.f32 %v1384, %v1432
      %v1478 = vadd.f32 %v1385, %v1435
      %v1479 = vadd.f32 %v1386, %v1438
      %v1480 = vadd.f32 %v1387, %v1441
      %v1481 = vadd.f32 %v1388, %v1444
      %v1482 = vadd.f32 %v1389, %v1447
      %v1483 = vadd.f32 %v1390, %v1450
      %v1484 = vadd.f32 %v1391, %v1453
      %v1485 = vadd.f32 %v1392, %v1456
      %v1486 = vadd.f32 %v1393, %v1459
      %v1487 = vadd.f32 %v1394, %v1462
      %v1488 = vadd.f32 %v1395, %v1465
      %v1489 = vadd.f32 %v1396, %v1468
      %v1490 = vadd.f32 %v1397, %v1471
      %v1491 = vadd.f32 %v1398, %v1474
      %v1492 = vrot.slane %v616, 2
      %v1493 = vrot.slane %v586, 2
      %v1494 = vsel %vm882, %v1492, %v1493
      %v1495 = vrot.slane %v626, 2
      %v1496 = vsel %vm882, %v1493, %v1495
      %s1497 = scalar_lea.vmem %s1, 64
      %v1498 = vld [vmem:[%s1497] sm:$0xff]
      %v1499 = vsel %vm687, %v1494, 0
      %v1501 = vsel %vm687, %v1496, 0
      %1503 = vmatpush.msra.mxu0 0.0
      %1504 = vmatpush.msra.mxu0 0.0
      %1505 = vmatpush.msra.mxu0 0.0
      %1506 = vmatpush.msra.mxu0 0.0
      %1507 = vmatpush.msra.mxu0 0.0
      %1508 = vmatpush.msra.mxu0 0.0
      %1509 = vmatpush.msra.mxu0 0.0
      %1510 = vmatpush.msra.mxu0 0.0
      %1511 = vmatpush.msra.mxu0 0.0
      %1512 = vmatpush.msra.mxu0 0.0
      %1513 = vmatpush.msra.mxu0 0.0
      %1514 = vmatpush.msra.mxu0 0.0
      %1515 = vmatpush.msra.mxu0 0.0
      %1516 = vmatpush.msra.mxu0 0.0
      %1517 = vmatpush.msra.mxu0 0.0
      %1518 = vmatpush.msra.mxu0 %v1498
      %1519 = vmatmul.f32.gmra.mxu0 %v933
      %v1520 = vpop.f32.mrf.mxu0
      %v1521 = vadd.f32 0.0, %v1520
      %1522 = vmatmul.f32.gmra.mxu0 %v935
      %v1523 = vpop.f32.mrf.mxu0
      %v1524 = vadd.f32 0.0, %v1523
      %1525 = vmatmul.f32.gmra.mxu0 %v937
      %v1526 = vpop.f32.mrf.mxu0
      %v1527 = vadd.f32 0.0, %v1526
      %1528 = vmatmul.f32.gmra.mxu0 %v939
      %v1529 = vpop.f32.mrf.mxu0
      %v1530 = vadd.f32 0.0, %v1529
      %1531 = vmatmul.f32.gmra.mxu0 %v941
      %v1532 = vpop.f32.mrf.mxu0
      %v1533 = vadd.f32 0.0, %v1532
      %1534 = vmatmul.f32.gmra.mxu0 %v943
      %v1535 = vpop.f32.mrf.mxu0
      %v1536 = vadd.f32 0.0, %v1535
      %1537 = vmatmul.f32.gmra.mxu0 %v945
      %v1538 = vpop.f32.mrf.mxu0
      %v1539 = vadd.f32 0.0, %v1538
      %1540 = vmatmul.f32.gmra.mxu0 %v947
      %v1541 = vpop.f32.mrf.mxu0
      %v1542 = vadd.f32 0.0, %v1541
      %1543 = vmatmul.f32.gmra.mxu0 %v949
      %v1544 = vpop.f32.mrf.mxu0
      %v1545 = vadd.f32 0.0, %v1544
      %1546 = vmatmul.f32.gmra.mxu0 %v951
      %v1547 = vpop.f32.mrf.mxu0
      %v1548 = vadd.f32 0.0, %v1547
      %1549 = vmatmul.f32.gmra.mxu0 %v953
      %v1550 = vpop.f32.mrf.mxu0
      %v1551 = vadd.f32 0.0, %v1550
      %1552 = vmatmul.f32.gmra.mxu0 %v955
      %v1553 = vpop.f32.mrf.mxu0
      %v1554 = vadd.f32 0.0, %v1553
      %1555 = vmatmul.f32.gmra.mxu0 %v1226
      %v1556 = vpop.f32.mrf.mxu0
      %v1557 = vadd.f32 0.0, %v1556
      %1558 = vmatmul.f32.gmra.mxu0 %v1228
      %v1559 = vpop.f32.mrf.mxu0
      %v1560 = vadd.f32 0.0, %v1559
      %1561 = vmatmul.f32.gmra.mxu0 %v1499
      %v1562 = vpop.f32.mrf.mxu0
      %v1563 = vadd.f32 0.0, %v1562
      %1564 = vmatmul.f32.gmra.mxu0 %v1501
      %v1565 = vpop.f32.mrf.mxu0
      %v1566 = vadd.f32 0.0, %v1565
      %1567 = vdwg.mxu0
      %v1568 = vadd.f32 %v1476, %v1521
      %v1569 = vadd.f32 %v1477, %v1524
      %v1570 = vadd.f32 %v1478, %v1527
      %v1571 = vadd.f32 %v1479, %v1530
      %v1572 = vadd.f32 %v1480, %v1533
      %v1573 = vadd.f32 %v1481, %v1536
      %v1574 = vadd.f32 %v1482, %v1539
      %v1575 = vadd.f32 %v1483, %v1542
      %v1576 = vadd.f32 %v1484, %v1545
      %v1577 = vadd.f32 %v1485, %v1548
      %v1578 = vadd.f32 %v1486, %v1551
      %v1579 = vadd.f32 %v1487, %v1554
      %v1580 = vadd.f32 %v1488, %v1557
      %v1581 = vadd.f32 %v1489, %v1560
      %v1582 = vadd.f32 %v1490, %v1563
      %v1583 = vadd.f32 %v1491, %v1566
      %1584 = vst.msk [vmem:[%s431] sm:$0xff] %vm687, %v1568
      %1585 = vst.msk [vmem:[%s431 + $0x8] sm:$0xff] %vm687, %v1569
      %1586 = vst.msk [vmem:[%s431 + $0x10] sm:$0xff] %vm687, %v1570
      %1587 = vst.msk [vmem:[%s431 + $0x18] sm:$0xff] %vm687, %v1571
      %1588 = vst.msk [vmem:[%s431 + $0x20] sm:$0xff] %vm687, %v1572
      %1589 = vst.msk [vmem:[%s431 + $0x28] sm:$0xff] %vm687, %v1573
      %1590 = vst.msk [vmem:[%s431 + $0x30] sm:$0xff] %vm687, %v1574
      %1591 = vst.msk [vmem:[%s431 + $0x38] sm:$0xff] %vm687, %v1575
      %1592 = vst.msk [vmem:[%s431 + $0x40] sm:$0xff] %vm687, %v1576
      %1593 = vst.msk [vmem:[%s431 + $0x48] sm:$0xff] %vm687, %v1577
      %1594 = vst.msk [vmem:[%s431 + $0x50] sm:$0xff] %vm687, %v1578
      %1595 = vst.msk [vmem:[%s431 + $0x58] sm:$0xff] %vm687, %v1579
      %1596 = vst.msk [vmem:[%s431 + $0x60] sm:$0xff] %vm687, %v1580
      %1597 = vst.msk [vmem:[%s431 + $0x68] sm:$0xff] %vm687, %v1581
      %1598 = vst.msk [vmem:[%s431 + $0x70] sm:$0xff] %vm687, %v1582
      %1599 = vst.msk [vmem:[%s431 + $0x78] sm:$0xff] %vm687, %v1583
      %v1600 = vsel %vm687, %v1568, 0.0
      %v1601 = vsel %vm687, %v1569, 0.0
      %v1602 = vadd.f32 %v1600, %v1601
      %v1603 = vsel %vm687, %v1570, 0.0
      %v1604 = vadd.f32 %v1602, %v1603
      %v1605 = vsel %vm687, %v1571, 0.0
      %v1606 = vadd.f32 %v1604, %v1605
      %v1607 = vsel %vm687, %v1572, 0.0
      %v1608 = vadd.f32 %v1606, %v1607
      %v1609 = vsel %vm687, %v1573, 0.0
      %v1610 = vadd.f32 %v1608, %v1609
      %v1611 = vsel %vm687, %v1574, 0.0
      %v1612 = vadd.f32 %v1610, %v1611
      %v1613 = vsel %vm687, %v1575, 0.0
      %v1614 = vadd.f32 %v1612, %v1613
      %v1615 = vsel %vm687, %v1576, 0.0
      %v1616 = vadd.f32 %v1614, %v1615
      %v1617 = vsel %vm687, %v1577, 0.0
      %v1618 = vadd.f32 %v1616, %v1617
      %v1619 = vsel %vm687, %v1578, 0.0
      %v1620 = vadd.f32 %v1618, %v1619
      %v1621 = vsel %vm687, %v1579, 0.0
      %v1622 = vadd.f32 %v1620, %v1621
      %v1623 = vsel %vm687, %v1580, 0.0
      %v1624 = vadd.f32 %v1622, %v1623
      %v1625 = vsel %vm687, %v1581, 0.0
      %v1626 = vadd.f32 %v1624, %v1625
      %v1627 = vsel %vm687, %v1582, 0.0
      %v1628 = vadd.f32 %v1626, %v1627
      %v1629 = vsel %vm687, %v1583, 0.0
      %v1630 = vadd.f32 %v1628, %v1629
      %v1631 = vrot.slane %v1630, 4
      %v1632 = vadd.f32 %v1630, %v1631
      %v1633 = vrot.slane %v1632, 2
      %v1634 = vadd.f32 %v1632, %v1633
      %v1635 = vrot.slane %v1634, 1
      %v1636 = vadd.f32 %v1634, %v1635
      %v1637 = vmul.f32 %v1636, 0.0078125
      %v1638 = vsub.f32 %v1568, %v1637
      %v1639 = vsub.f32 %v1569, %v1637
      %v1640 = vsub.f32 %v1570, %v1637
      %v1641 = vsub.f32 %v1571, %v1637
      %v1642 = vsub.f32 %v1572, %v1637
      %v1643 = vsub.f32 %v1573, %v1637
      %v1644 = vsub.f32 %v1574, %v1637
      %v1645 = vsub.f32 %v1575, %v1637
      %v1646 = vsub.f32 %v1576, %v1637
      %v1647 = vsub.f32 %v1577, %v1637
      %v1648 = vsub.f32 %v1578, %v1637
      %v1649 = vsub.f32 %v1579, %v1637
      %v1650 = vsub.f32 %v1580, %v1637
      %v1651 = vsub.f32 %v1581, %v1637
      %v1652 = vsub.f32 %v1582, %v1637
      %v1653 = vsub.f32 %v1583, %v1637
      %vm1654 = vcmask 57344
      %1655 = vst.msk [vmem:[%s438] sm:$0x1] %vm1654, %v1636
      %v1656 = vmul.f32 %v1638, %v1638
      %v1657 = vmul.f32 %v1639, %v1639
      %v1658 = vmul.f32 %v1640, %v1640
      %v1659 = vmul.f32 %v1641, %v1641
      %v1660 = vmul.f32 %v1642, %v1642
      %v1661 = vmul.f32 %v1643, %v1643
      %v1662 = vmul.f32 %v1644, %v1644
      %v1663 = vmul.f32 %v1645, %v1645
      %v1664 = vmul.f32 %v1646, %v1646
      %v1665 = vmul.f32 %v1647, %v1647
      %v1666 = vmul.f32 %v1648, %v1648
      %v1667 = vmul.f32 %v1649, %v1649
      %v1668 = vmul.f32 %v1650, %v1650
      %v1669 = vmul.f32 %v1651, %v1651
      %v1670 = vmul.f32 %v1652, %v1652
      %v1671 = vmul.f32 %v1653, %v1653
      %v1672 = vsel %vm687, %v1656, 0.0
      %v1673 = vsel %vm687, %v1657, 0.0
      %v1674 = vadd.f32 %v1672, %v1673
      %v1675 = vsel %vm687, %v1658, 0.0
      %v1676 = vadd.f32 %v1674, %v1675
      %v1677 = vsel %vm687, %v1659, 0.0
      %v1678 = vadd.f32 %v1676, %v1677
      %v1679 = vsel %vm687, %v1660, 0.0
      %v1680 = vadd.f32 %v1678, %v1679
      %v1681 = vsel %vm687, %v1661, 0.0
      %v1682 = vadd.f32 %v1680, %v1681
      %v1683 = vsel %vm687, %v1662, 0.0
      %v1684 = vadd.f32 %v1682, %v1683
      %v1685 = vsel %vm687, %v1663, 0.0
      %v1686 = vadd.f32 %v1684, %v1685
      %v1687 = vsel %vm687, %v1664, 0.0
      %v1688 = vadd.f32 %v1686, %v1687
      %v1689 = vsel %vm687, %v1665, 0.0
      %v1690 = vadd.f32 %v1688, %v1689
      %v1691 = vsel %vm687, %v1666, 0.0
      %v1692 = vadd.f32 %v1690, %v1691
      %v1693 = vsel %vm687, %v1667, 0.0
      %v1694 = vadd.f32 %v1692, %v1693
      %v1695 = vsel %vm687, %v1668, 0.0
      %v1696 = vadd.f32 %v1694, %v1695
      %v1697 = vsel %vm687, %v1669, 0.0
      %v1698 = vadd.f32 %v1696, %v1697
      %v1699 = vsel %vm687, %v1670, 0.0
      %v1700 = vadd.f32 %v1698, %v1699
      %v1701 = vsel %vm687, %v1671, 0.0
      %v1702 = vadd.f32 %v1700, %v1701
      %v1703 = vrot.slane %v1702, 4
      %v1704 = vadd.f32 %v1702, %v1703
      %v1705 = vrot.slane %v1704, 2
      %v1706 = vadd.f32 %v1704, %v1705
      %v1707 = vrot.slane %v1706, 1
      %v1708 = vadd.f32 %v1706, %v1707
      %1709 = vst.msk [vmem:[%s438 + $0x1] sm:$0x1] %vm1654, %v1708
      %s1710 = smul.u32 8, %s23
      %p1711 = scmp.lt.s32.totalorder %s22, 1
      %s1712 = scalar_select %p1711, %s22, 1
      %p1713 = scmp.lt.s32.totalorder %s1710, 15
      %s1714 = scalar_select %p1713, %s1710, 15
      %s1715 = smul.addr %s1714, 2
      %s1716 = smul.addr %s1712, 32
      %s1717 = sadd.s32 %s1715, %s1716
      %s1718 = smul.addr %s1717, 8
      %s1719 = scalar_lea.vmem %s5, %s1718
      %s1720 = smul.u32 %s22, 2
      %s1721 = sadd.s32 %s1720, %s23
      %p1722 = scmp.lt.s32.totalorder %s1721, 3
      %s1723 = scalar_select %p1722, %s1721, 3
      %s1724 = smul.addr %s1723, 2
      %s1725 = scalar_lea.vmem %s6, %s1724
      // Predicated region
      $region41: #{double_conv.3} parent=39 // pred_check
        %p1726 = pneg %p192
      $region42: #{double_conv.3} parent=39 // pred_check_branch
        %1728 = sbr.rel (%p1726) target = $region44
      $region43: #{double_conv.3} parent=39 // pred_region
        %s1729 = smul.u32 8, %s23
      $region44: #{double_conv.3} parent=39 // pred_fallthru
        _
      // Predicated region
      $region45: #{double_conv.3} parent=39 // pred_check
        %p1730 = pneg %p222
      $region46: #{double_conv.3} parent=39 // pred_check_branch
        %1732 = sbr.rel (%p1730) target = $region48
      $region47: #{double_conv.3} parent=39 // pred_region
        %s1733 = smul.u32 %s22, 2
        %s1734 = sadd.s32 %s1733, %s23
      $region48: #{double_conv.3} parent=39 // pred_fallthru
        _
    $region40: #{double_conv.3} parent=5 // pred_fallthru
      _
    %p1735 = scmp.le.s32.totalorder 2, %s13
    // Predicated region
    $region49: #{double_conv.3} parent=5 // pred_check
      %p1736 = pneg %p1735
    $region50: #{double_conv.3} parent=5 // pred_check_branch
      %1738 = sbr.rel (%p1736) target = $region52
    $region51: #{double_conv.3} parent=5 // pred_region
      %s1739 = ssub.s32 %s13, 2
      // Predicated region
      $region53: #{double_conv.3} parent=51 // pred_check
        %p1740 = pneg %p198
      $region54: #{double_conv.3} parent=51 // pred_check_branch
        %1742 = sbr.rel (%p1740) target = $region56
      $region55: #{double_conv.3} parent=51 // pred_region
        %s1743 = smul.u32 8, %s25
        %p1744 = scmp.lt.s32.totalorder %s24, 1
        %s1745 = scalar_select %p1744, %s24, 1
        %p1746 = scmp.lt.s32.totalorder %s1743, 15
        %s1747 = scalar_select %p1746, %s1743, 15
        %s1748 = smul.addr %s1747, 2
        %s1749 = smul.addr %s1745, 32
        %s1750 = sadd.s32 %s1748, %s1749
        %s1751 = smul.addr %s1750, 8
        %s1752 = scalar_lea.vmem %s5, %s1751
      $region56: #{double_conv.3} parent=51 // pred_fallthru
        _
      // Predicated region
      $region57: #{double_conv.3} parent=51 // pred_check
        %p1753 = pneg %p228
      $region58: #{double_conv.3} parent=51 // pred_check_branch
        %1755 = sbr.rel (%p1753) target = $region60
      $region59: #{double_conv.3} parent=51 // pred_region
        %s1756 = smul.u32 %s24, 2
        %s1757 = sadd.s32 %s1756, %s25
        %p1758 = scmp.lt.s32.totalorder %s1757, 3
        %s1759 = scalar_select %p1758, %s1757, 3
        %s1760 = smul.addr %s1759, 2
        %s1761 = scalar_lea.vmem %s6, %s1760
      $region60: #{double_conv.3} parent=51 // pred_fallthru
        _
    $region52: #{double_conv.3} parent=5 // pred_fallthru
      _
  $region6: #{double_conv.3} parent=0 // loop_footer
    %s17 = sadd.s32 1, %s13
  $region7: #{double_conv.3} parent=0 // loop_footer_branch
    %12 = sbr.rel target = $region3
  $region8: #{double_conv.3} parent=0 // loop_exit
    _

</llo_original>
